<compile_context>
chip_gen: v7x
topology: tpu7x:2x2x1
jax: 0.10.0
libtpu: 0.0.40
codegen_flags: <defaults>
</compile_context>

<pallas_src>
import math

import jax
import jax.numpy as jnp
from jax.experimental import pallas as pl
from jax.experimental.pallas import tpu as pltpu

# ----- hyper-params (structure matches the module; sizes shrunk for a small demo) -----
ENCODE_LAYER = 12            # number of transformer layers == rows seen by TextCNN
FILTER_SIZES = [2, 2, 2]
NUM_FILTERS = 3
NUM_FILTER_TOTAL = NUM_FILTERS * len(FILTER_SIZES)   # 9
N_CLASS = 2
HIDDEN = 128                 # "hidden_size" (768 in the original)
INTER = 256                  # FFN intermediate size
NUM_HEADS = 2
HEAD_DIM = HIDDEN // NUM_HEADS
SEQ = 8
BATCH = 2
VOCAB = 64
LN_EPS = 1e-12
LOGIT_PAD = 128              # pad the n_class output to a full lane width (unmasked store)
KSUM = sum(FILTER_SIZES)     # total conv taps -> packed conv matrix has KSUM*NUM_FILTERS cols


# --------------------------- in-kernel helpers (f32 VPU/EUP math) ---------------------------
def _layernorm(x, gamma, beta):
    mu = jnp.mean(x, axis=-1, keepdims=True)
    var = jnp.mean((x - mu) ** 2, axis=-1, keepdims=True)
    return (x - mu) * jax.lax.rsqrt(var + LN_EPS) * gamma + beta


def _gelu(x):
    c = math.sqrt(2.0 / math.pi)
    return 0.5 * x * (1.0 + jnp.tanh(c * (x + 0.044715 * x * x * x)))


# --------------------------- fused encoder + TextCNN kernel ---------------------------
def _fused_kernel(x0_ref, mask_ref,
                  wq_ref, wk_ref, wv_ref, wo_ref, w1_ref, w2_ref,
                  bq_ref, bk_ref, bv_ref, bo_ref,
                  g1_ref, be1_ref, b1_ref, b2_ref, g2_ref, be2_ref,
                  convw_ref, convb_ref, linw_ref, linb_ref,
                  out_ref,
                  act_ref, cls_ref):
    l = pl.program_id(1)

    # layer 0: load the embedded input for this batch element into the resident activation
    @pl.when(l == 0)
    def _():
        act_ref[...] = x0_ref[0]

    x = act_ref[...]                       # [SEQ, HIDDEN] f32 (resident across layers)
    mask = mask_ref[0]                     # [1, SEQ] additive attention bias

    # ---- self attention (bf16 MXU operands, f32 accumulation) ----
    xb = x.astype(jnp.bfloat16)
    q = jnp.dot(xb, wq_ref[0], preferred_element_type=jnp.float32) + bq_ref[0]
    k = jnp.dot(xb, wk_ref[0], preferred_element_type=jnp.float32) + bk_ref[0]
    v = jnp.dot(xb, wv_ref[0], preferred_element_type=jnp.float32) + bv_ref[0]
    qb = q.astype(jnp.bfloat16)
    kb = k.astype(jnp.bfloat16)
    vb = v.astype(jnp.bfloat16)

    scale = 1.0 / math.sqrt(HEAD_DIM)
    wo = wo_ref[0]                         # [HIDDEN, HIDDEN] bf16
    attn_out = bo_ref[0]                   # [1, HIDDEN] f32, broadcasts over SEQ
    for h in range(NUM_HEADS):             # static unroll; ctx folded into Wo (no concat)
        lo = h * HEAD_DIM
        qh = qb[:, lo:lo + HEAD_DIM]
        kh = kb[:, lo:lo + HEAD_DIM]
        vh = vb[:, lo:lo + HEAD_DIM]
        scores = jax.lax.dot_general(
            qh, kh, dimension_numbers=(((1,), (1,)), ((), ())),
            preferred_element_type=jnp.float32) * scale + mask
        m = jnp.max(scores, axis=-1, keepdims=True)
        e = jnp.exp(scores - m)
        p = e * pl.reciprocal(jnp.sum(e, axis=-1, keepdims=True), approx=True)
        ctx_h = jnp.dot(p.astype(jnp.bfloat16), vh,
                        preferred_element_type=jnp.float32)          # [SEQ, HEAD_DIM]
        attn_out = attn_out + jnp.dot(ctx_h.astype(jnp.bfloat16),
                                      wo[lo:lo + HEAD_DIM, :],
                                      preferred_element_type=jnp.float32)

    x1 = _layernorm(x + attn_out, g1_ref[0], be1_ref[0])

    # ---- FFN ----
    hid = _gelu(jnp.dot(x1.astype(jnp.bfloat16), w1_ref[0],
                        preferred_element_type=jnp.float32) + b1_ref[0])
    ffn = jnp.dot(hid.astype(jnp.bfloat16), w2_ref[0],
                  preferred_element_type=jnp.float32) + b2_ref[0]
    x2 = _layernorm(x1 + ffn, g2_ref[0], be2_ref[0])

    act_ref[...] = x2                                  # carry activation to next layer
    cls_ref[pl.ds(l, 1), :] = x2[0:1, :]               # stash this layer's CLS row

    # ---- TextCNN epilogue on the last layer ----
    @pl.when(l == ENCODE_LAYER - 1)
    def _():
        cls = cls_ref[...]                                            # [12, HIDDEN]
        y = jnp.dot(cls, convw_ref[...],
                    preferred_element_type=jnp.float32)               # [12, KSUM*NUM_FILTERS]
        feats = []
        col = 0
        for i, ksize in enumerate(FILTER_SIZES):
            rows = ENCODE_LAYER - ksize + 1
            h = convb_ref[i:i + 1, :]                                 # (1, NUM_FILTERS)
            for dt in range(ksize):
                h = h + y[dt:dt + rows, col:col + NUM_FILTERS]
                col += NUM_FILTERS
            h = jnp.maximum(h, 0.0)                                   # ReLU
            feats.append(jnp.max(h, axis=0, keepdims=True))           # MaxPool over rows
        feat = jnp.concatenate(feats, axis=1)                         # (1, NUM_FILTER_TOTAL)
        out_ref[0] = (jnp.dot(feat, linw_ref[...],
                              preferred_element_type=jnp.float32) + linb_ref[...])


def fused_bert_textcnn(x0, mask_bias, enc_p, cnn_p):
    B, S, H = x0.shape
    L = ENCODE_LAYER
    WQ, WK, WV, WO, W1, W2, BQ, BK, BV, BO, G1, BE1, B1, B2, G2, BE2 = enc_p
    convw, convb, linw, linb = cnn_p

    batch_map = lambda b, l: (b, 0, 0)      # per-batch blocks (constant across layer axis)
    layer_map = lambda b, l: (l, 0, 0)      # per-layer stacked weights (streamed/double-buffered)
    const_map = lambda b, l: (0, 0)         # tiny TextCNN params, fetched once

    in_specs = [
        pl.BlockSpec((1, S, H), batch_map),           # embedded input
        pl.BlockSpec((1, 1, S), batch_map),           # additive attention mask
        pl.BlockSpec((1, H, H), layer_map),           # WQ
        pl.BlockSpec((1, H, H), layer_map),           # WK
        pl.BlockSpec((1, H, H), layer_map),           # WV
        pl.BlockSpec((1, H, H), layer_map),           # WO
        pl.BlockSpec((1, H, INTER), layer_map),       # W1
        pl.BlockSpec((1, INTER, H), layer_map),       # W2
        pl.BlockSpec((1, 1, H), layer_map),           # BQ
        pl.BlockSpec((1, 1, H), layer_map),           # BK
        pl.BlockSpec((1, 1, H), layer_map),           # BV
        pl.BlockSpec((1, 1, H), layer_map),           # BO
        pl.BlockSpec((1, 1, H), layer_map),           # G1
        pl.BlockSpec((1, 1, H), layer_map),           # BE1
        pl.BlockSpec((1, 1, INTER), layer_map),       # B1
        pl.BlockSpec((1, 1, H), layer_map),           # B2
        pl.BlockSpec((1, 1, H), layer_map),           # G2
        pl.BlockSpec((1, 1, H), layer_map),           # BE2
        pl.BlockSpec(convw.shape, const_map),         # packed conv weights [H, 18]
        pl.BlockSpec(convb.shape, const_map),         # conv biases [3, 3]
        pl.BlockSpec(linw.shape, const_map),          # classifier weight [9, 128] (padded)
        pl.BlockSpec(linb.shape, const_map),          # classifier bias   [1, 128] (padded)
    ]
    grid_spec = pl.GridSpec(
        grid=(B, L),
        in_specs=in_specs,
        out_specs=pl.BlockSpec((1, 1, LOGIT_PAD), batch_map),
        scratch_shapes=[
            pltpu.VMEM((S, H), jnp.float32),          # resident activation
            pltpu.VMEM((L, H), jnp.float32),          # per-layer CLS rows
        ],
    )
    return pl.pallas_call(
        _fused_kernel,
        out_shape=jax.ShapeDtypeStruct((B, 1, LOGIT_PAD), jnp.float32),
        grid_spec=grid_spec,
        compiler_params=pltpu.CompilerParams(
            dimension_semantics=("parallel", "arbitrary"),
            vmem_limit_bytes=32 * 1024 * 1024,
        ),
    )(x0, mask_bias, WQ, WK, WV, WO, W1, W2, BQ, BK, BV, BO,
      G1, BE1, B1, B2, G2, BE2, convw, convb, linw, linb)


# --------------------------- deterministic parameter init ---------------------------
def init_params(key):
    keys = iter(jax.random.split(key, 16))

    def nrm(shape, scale=0.02, dtype=jnp.float32):
        return (scale * jax.random.normal(next(keys), shape, jnp.float32)).astype(dtype)

    # embeddings (gather stays in plain JAX)
    word_emb = nrm((VOCAB, HIDDEN))
    pos_emb = nrm((SEQ, HIDDEN))
    type_emb = nrm((2, HIDDEN))
    emb_gamma = jnp.ones((HIDDEN,), jnp.float32)
    emb_beta = jnp.zeros((HIDDEN,), jnp.float32)
    emb_p = (word_emb, pos_emb, type_emb, emb_gamma, emb_beta)

    L = ENCODE_LAYER
    # stacked per-layer weights; MXU operands stored bf16, VPU params stored f32
    WQ = nrm((L, HIDDEN, HIDDEN), dtype=jnp.bfloat16)
    WK = nrm((L, HIDDEN, HIDDEN), dtype=jnp.bfloat16)
    WV = nrm((L, HIDDEN, HIDDEN), dtype=jnp.bfloat16)
    WO = nrm((L, HIDDEN, HIDDEN), dtype=jnp.bfloat16)
    W1 = nrm((L, HIDDEN, INTER), dtype=jnp.bfloat16)
    W2 = nrm((L, INTER, HIDDEN), dtype=jnp.bfloat16)
    BQ = nrm((L, 1, HIDDEN))
    B1 = nrm((L, 1, INTER))
    BK = jnp.zeros((L, 1, HIDDEN), jnp.float32)
    BV = jnp.zeros((L, 1, HIDDEN), jnp.float32)
    BO = jnp.zeros((L, 1, HIDDEN), jnp.float32)
    B2 = jnp.zeros((L, 1, HIDDEN), jnp.float32)
    G1 = jnp.ones((L, 1, HIDDEN), jnp.float32)
    BE1 = jnp.zeros((L, 1, HIDDEN), jnp.float32)
    G2 = jnp.ones((L, 1, HIDDEN), jnp.float32)
    BE2 = jnp.zeros((L, 1, HIDDEN), jnp.float32)
    enc_p = (WQ, WK, WV, WO, W1, W2, BQ, BK, BV, BO, G1, BE1, B1, B2, G2, BE2)

    # TextCNN: Conv2d(1, NUM_FILTERS, (k, HIDDEN)) per filter size, packed so one
    # [12,HIDDEN]@[HIDDEN, KSUM*NUM_FILTERS] matmul produces every tap's contribution.
    # Column ordering: (conv index i, tap dt, filter f).
    convw_taps = nrm((KSUM, HIDDEN, NUM_FILTERS), 0.05)
    convw_packed = jnp.transpose(convw_taps, (1, 0, 2)).reshape(HIDDEN, KSUM * NUM_FILTERS)
    convb = nrm((len(FILTER_SIZES), NUM_FILTERS), 0.05)
    # nn.Linear(num_filter_total, n_class, bias=False): weight [n_class, 9]; pass transposed,
    # padded to 128 output lanes so the final store is unmasked (slice to n_class outside).
    lin_w = nrm((N_CLASS, NUM_FILTER_TOTAL), 0.1)
    linw_pad = jnp.zeros((NUM_FILTER_TOTAL, LOGIT_PAD), jnp.float32).at[:, :N_CLASS].set(lin_w.T)
    linb_pad = jnp.zeros((1, LOGIT_PAD), jnp.float32).at[:, :N_CLASS].set(1.0)  # torch.ones([n_class])
    cnn_p = (convw_packed, convb, linw_pad, linb_pad)

    return emb_p, enc_p, cnn_p


# --------------------------- full forward ---------------------------
def bert_blend_cnn_forward(input_ids, attention_mask, token_type_ids, params):
    emb_p, enc_p, cnn_p = params
    word_emb, pos_emb, type_emb, eg, eb = emb_p

    # embedding lookup + LayerNorm (glue: data-dependent gather stays in plain JAX)
    S = input_ids.shape[1]
    x = word_emb[input_ids] + pos_emb[None, :S, :] + type_emb[token_type_ids]
    mu = jnp.mean(x, axis=-1, keepdims=True)
    var = jnp.mean((x - mu) ** 2, axis=-1, keepdims=True)
    x = (x - mu) * jax.lax.rsqrt(var + LN_EPS) * eg + eb              # hidden_states[0]

    mask_bias = ((1.0 - attention_mask) * -1e9)[:, None, :]           # [B, 1, S]

    logits_pad = fused_bert_textcnn(x, mask_bias, enc_p, cnn_p)       # [B, 1, LOGIT_PAD]
    return logits_pad[:, 0, :N_CLASS]                                 # [B, N_CLASS]


if __name__ == "__main__":
    key = jax.random.PRNGKey(0)
    k_ids, k_params = jax.random.split(key, 2)
    input_ids = jax.random.randint(k_ids, (BATCH, SEQ), 0, VOCAB, dtype=jnp.int32)
    token_type_ids = jnp.zeros((BATCH, SEQ), jnp.int32)
    attention_mask = jnp.ones((BATCH, SEQ), jnp.float32)

    params = init_params(k_params)
    fwd = jax.jit(bert_blend_cnn_forward)
    logits = fwd(input_ids, attention_mask, token_type_ids, params)
    jax.block_until_ready(logits)
    assert logits.shape == (BATCH, N_CLASS) and logits.dtype == jnp.float32
    print("KERNEL_OK")
</pallas_src>

<mosaic_0001>
module attributes {stable_mosaic.version = 11 : i64} {
  func.func @_fused_kernel(%arg0: i32, %arg1: i32, %arg2: memref<1x8x128xf32, #tpu.memory_space<vmem>>, %arg3: memref<1x1x8xf32, #tpu.memory_space<vmem>>, %arg4: memref<1x128x128xbf16, #tpu.memory_space<vmem>>, %arg5: memref<1x128x128xbf16, #tpu.memory_space<vmem>>, %arg6: memref<1x128x128xbf16, #tpu.memory_space<vmem>>, %arg7: memref<1x128x128xbf16, #tpu.memory_space<vmem>>, %arg8: memref<1x128x256xbf16, #tpu.memory_space<vmem>>, %arg9: memref<1x256x128xbf16, #tpu.memory_space<vmem>>, %arg10: memref<1x1x128xf32, #tpu.memory_space<vmem>>, %arg11: memref<1x1x128xf32, #tpu.memory_space<vmem>>, %arg12: memref<1x1x128xf32, #tpu.memory_space<vmem>>, %arg13: memref<1x1x128xf32, #tpu.memory_space<vmem>>, %arg14: memref<1x1x128xf32, #tpu.memory_space<vmem>>, %arg15: memref<1x1x128xf32, #tpu.memory_space<vmem>>, %arg16: memref<1x1x256xf32, #tpu.memory_space<vmem>>, %arg17: memref<1x1x128xf32, #tpu.memory_space<vmem>>, %arg18: memref<1x1x128xf32, #tpu.memory_space<vmem>>, %arg19: memref<1x1x128xf32, #tpu.memory_space<vmem>>, %arg20: memref<128x18xf32, #tpu.memory_space<vmem>>, %arg21: memref<3x3xf32, #tpu.memory_space<vmem>>, %arg22: memref<9x128xf32, #tpu.memory_space<vmem>>, %arg23: memref<1x128xf32, #tpu.memory_space<vmem>>, %arg24: memref<1x1x128xf32, #tpu.memory_space<vmem>>, %arg25: memref<8x128xf32, #tpu.memory_space<vmem>>, %arg26: memref<12x128xf32, #tpu.memory_space<vmem>>) attributes {dimension_semantics = [#tpu.dimension_semantics<parallel>, #tpu.dimension_semantics<arbitrary>], iteration_bounds = array<i64: 2, 12>, scalar_prefetch = 0 : i64, scratch_operands = 2 : i64, tpu.core_type = #tpu.core_type<tc>, window_params = [{transform_indices = @transform_0, window_bounds = array<i64: 1, 8, 128>}, {transform_indices = @transform_1, window_bounds = array<i64: 1, 1, 8>}, {transform_indices = @transform_2, window_bounds = array<i64: 1, 128, 128>}, {transform_indices = @transform_3, window_bounds = array<i64: 1, 128, 128>}, {transform_indices = @transform_4, window_bounds = array<i64: 1, 128, 128>}, {transform_indices = @transform_5, window_bounds = array<i64: 1, 128, 128>}, {transform_indices = @transform_6, window_bounds = array<i64: 1, 128, 256>}, {transform_indices = @transform_7, window_bounds = array<i64: 1, 256, 128>}, {transform_indices = @transform_8, window_bounds = array<i64: 1, 1, 128>}, {transform_indices = @transform_9, window_bounds = array<i64: 1, 1, 128>}, {transform_indices = @transform_10, window_bounds = array<i64: 1, 1, 128>}, {transform_indices = @transform_11, window_bounds = array<i64: 1, 1, 128>}, {transform_indices = @transform_12, window_bounds = array<i64: 1, 1, 128>}, {transform_indices = @transform_13, window_bounds = array<i64: 1, 1, 128>}, {transform_indices = @transform_14, window_bounds = array<i64: 1, 1, 256>}, {transform_indices = @transform_15, window_bounds = array<i64: 1, 1, 128>}, {transform_indices = @transform_16, window_bounds = array<i64: 1, 1, 128>}, {transform_indices = @transform_17, window_bounds = array<i64: 1, 1, 128>}, {pipeline_mode = #tpu.pipeline_mode<synchronous>, transform_indices = @transform_18, window_bounds = array<i64: 128, 18>}, {pipeline_mode = #tpu.pipeline_mode<synchronous>, transform_indices = @transform_19, window_bounds = array<i64: 3, 3>}, {pipeline_mode = #tpu.pipeline_mode<synchronous>, transform_indices = @transform_20, window_bounds = array<i64: 9, 128>}, {pipeline_mode = #tpu.pipeline_mode<synchronous>, transform_indices = @transform_21, window_bounds = array<i64: 1, 128>}, {transform_indices = @transform_22, window_bounds = array<i64: 1, 1, 128>}]} {
    %c0_i32 = arith.constant 0 : i32
    %0 = arith.cmpi eq, %arg1, %c0_i32 : i32
    %1 = arith.extui %0 : i1 to i32
    %c0_i32_0 = arith.constant 0 : i32
    %2 = arith.cmpi ne, %1, %c0_i32_0 : i32
    scf.if %2 {
      %c0_87 = arith.constant 0 : index
      %c0_88 = arith.constant 0 : index
      %c0_89 = arith.constant 0 : index
      %174 = vector.load %arg2[%c0_87, %c0_88, %c0_89] : memref<1x8x128xf32, #tpu.memory_space<vmem>>, vector<1x8x128xf32>
      %175 = vector.shape_cast %174 : vector<1x8x128xf32> to vector<8x128xf32>
      %c0_90 = arith.constant 0 : index
      %c0_91 = arith.constant 0 : index
      %176 = vector.load %arg25[%c0_90, %c0_91] : memref<8x128xf32, #tpu.memory_space<vmem>>, vector<8x128xf32>
      tpu.vector_store %arg25[%c0_90, %c0_91], %175 {strides = array<i32>} : memref<8x128xf32, #tpu.memory_space<vmem>>, vector<8x128xf32>,
    } else {
    }
    %c0 = arith.constant 0 : index
    %c0_1 = arith.constant 0 : index
    %3 = vector.load %arg25[%c0, %c0_1] : memref<8x128xf32, #tpu.memory_space<vmem>>, vector<8x128xf32>
    %c0_2 = arith.constant 0 : index
    %c0_3 = arith.constant 0 : index
    %c0_4 = arith.constant 0 : index
    %4 = vector.load %arg3[%c0_2, %c0_3, %c0_4] : memref<1x1x8xf32, #tpu.memory_space<vmem>>, vector<1x1x8xf32>
    %5 = vector.shape_cast %4 : vector<1x1x8xf32> to vector<1x8xf32>
    %6 = arith.truncf %3 : vector<8x128xf32> to vector<8x128xbf16>
    %c0_5 = arith.constant 0 : index
    %c0_6 = arith.constant 0 : index
    %c0_7 = arith.constant 0 : index
    %7 = vector.load %arg4[%c0_5, %c0_6, %c0_7] : memref<1x128x128xbf16, #tpu.memory_space<vmem>>, vector<1x128x128xbf16>
    %8 = vector.shape_cast %7 : vector<1x128x128xbf16> to vector<128x128xbf16>
    %cst = arith.constant dense<0.000000e+00> : vector<8x128xf32>
    %9 = tpu.matmul %6, %8, %cst {dimension_numbers = #tpu.dot_dimension_numbers<[1], [0], [0], [1], [0, 0, 1, 1], [], []>} : vector<8x128xbf16>, vector<128x128xbf16>, vector<8x128xf32> -> vector<8x128xf32>
    %c0_8 = arith.constant 0 : index
    %c0_9 = arith.constant 0 : index
    %c0_10 = arith.constant 0 : index
    %10 = vector.load %arg10[%c0_8, %c0_9, %c0_10] : memref<1x1x128xf32, #tpu.memory_space<vmem>>, vector<1x1x128xf32>
    %11 = vector.shape_cast %10 : vector<1x1x128xf32> to vector<1x128xf32>
    %12 = vector.broadcast %11 : vector<1x128xf32> to vector<8x128xf32>
    %13 = arith.addf %9, %12 : vector<8x128xf32>
    %c0_11 = arith.constant 0 : index
    %c0_12 = arith.constant 0 : index
    %c0_13 = arith.constant 0 : index
    %14 = vector.load %arg5[%c0_11, %c0_12, %c0_13] : memref<1x128x128xbf16, #tpu.memory_space<vmem>>, vector<1x128x128xbf16>
    %15 = vector.shape_cast %14 : vector<1x128x128xbf16> to vector<128x128xbf16>
    %cst_14 = arith.constant dense<0.000000e+00> : vector<8x128xf32>
    %16 = tpu.matmul %6, %15, %cst_14 {dimension_numbers = #tpu.dot_dimension_numbers<[1], [0], [0], [1], [0, 0, 1, 1], [], []>} : vector<8x128xbf16>, vector<128x128xbf16>, vector<8x128xf32> -> vector<8x128xf32>
    %c0_15 = arith.constant 0 : index
    %c0_16 = arith.constant 0 : index
    %c0_17 = arith.constant 0 : index
    %17 = vector.load %arg11[%c0_15, %c0_16, %c0_17] : memref<1x1x128xf32, #tpu.memory_space<vmem>>, vector<1x1x128xf32>
    %18 = vector.shape_cast %17 : vector<1x1x128xf32> to vector<1x128xf32>
    %19 = vector.broadcast %18 : vector<1x128xf32> to vector<8x128xf32>
    %20 = arith.addf %16, %19 : vector<8x128xf32>
    %c0_18 = arith.constant 0 : index
    %c0_19 = arith.constant 0 : index
    %c0_20 = arith.constant 0 : index
    %21 = vector.load %arg6[%c0_18, %c0_19, %c0_20] : memref<1x128x128xbf16, #tpu.memory_space<vmem>>, vector<1x128x128xbf16>
    %22 = vector.shape_cast %21 : vector<1x128x128xbf16> to vector<128x128xbf16>
    %cst_21 = arith.constant dense<0.000000e+00> : vector<8x128xf32>
    %23 = tpu.matmul %6, %22, %cst_21 {dimension_numbers = #tpu.dot_dimension_numbers<[1], [0], [0], [1], [0, 0, 1, 1], [], []>} : vector<8x128xbf16>, vector<128x128xbf16>, vector<8x128xf32> -> vector<8x128xf32>
    %c0_22 = arith.constant 0 : index
    %c0_23 = arith.constant 0 : index
    %c0_24 = arith.constant 0 : index
    %24 = vector.load %arg12[%c0_22, %c0_23, %c0_24] : memref<1x1x128xf32, #tpu.memory_space<vmem>>, vector<1x1x128xf32>
    %25 = vector.shape_cast %24 : vector<1x1x128xf32> to vector<1x128xf32>
    %26 = vector.broadcast %25 : vector<1x128xf32> to vector<8x128xf32>
    %27 = arith.addf %23, %26 : vector<8x128xf32>
    %28 = arith.truncf %13 : vector<8x128xf32> to vector<8x128xbf16>
    %29 = arith.truncf %20 : vector<8x128xf32> to vector<8x128xbf16>
    %30 = arith.truncf %27 : vector<8x128xf32> to vector<8x128xbf16>
    %c0_25 = arith.constant 0 : index
    %c0_26 = arith.constant 0 : index
    %c0_27 = arith.constant 0 : index
    %31 = vector.load %arg7[%c0_25, %c0_26, %c0_27] : memref<1x128x128xbf16, #tpu.memory_space<vmem>>, vector<1x128x128xbf16>
    %32 = vector.shape_cast %31 : vector<1x128x128xbf16> to vector<128x128xbf16>
    %c0_28 = arith.constant 0 : index
    %c0_29 = arith.constant 0 : index
    %c0_30 = arith.constant 0 : index
    %33 = vector.load %arg13[%c0_28, %c0_29, %c0_30] : memref<1x1x128xf32, #tpu.memory_space<vmem>>, vector<1x1x128xf32>
    %34 = vector.shape_cast %33 : vector<1x1x128xf32> to vector<1x128xf32>
    %35 = vector.extract_strided_slice %28 {offsets = [0, 0], sizes = [8, 64], strides = [1, 1]} : vector<8x128xbf16> to vector<8x64xbf16>
    %36 = vector.extract_strided_slice %29 {offsets = [0, 0], sizes = [8, 64], strides = [1, 1]} : vector<8x128xbf16> to vector<8x64xbf16>
    %37 = vector.extract_strided_slice %30 {offsets = [0, 0], sizes = [8, 64], strides = [1, 1]} : vector<8x128xbf16> to vector<8x64xbf16>
    %cst_31 = arith.constant dense<0.000000e+00> : vector<8x8xf32>
    %38 = tpu.matmul %35, %36, %cst_31 {dimension_numbers = #tpu.dot_dimension_numbers<[1], [1], [0], [0], [0, 0, 1, 0], [], []>} : vector<8x64xbf16>, vector<8x64xbf16>, vector<8x8xf32> -> vector<8x8xf32>
    %cst_32 = arith.constant 1.250000e-01 : f32
    %39 = vector.broadcast %cst_32 : f32 to vector<8x8xf32>
    %40 = arith.mulf %38, %39 : vector<8x8xf32>
    %41 = vector.broadcast %5 : vector<1x8xf32> to vector<8x8xf32>
    %42 = arith.addf %40, %41 : vector<8x8xf32>
    %cst_33 = arith.constant dense<0xFF800000> : vector<8xf32>
    %43 = vector.multi_reduction <maximumf>, %42, %cst_33 [1] : vector<8x8xf32> to vector<8xf32>
    %44 = vector.shape_cast %43 : vector<8xf32> to vector<8x1xf32>
    %45 = vector.broadcast %44 : vector<8x1xf32> to vector<8x8xf32>
    %46 = arith.subf %42, %45 : vector<8x8xf32>
    %47 = math.exp %46 : vector<8x8xf32>
    %cst_34 = arith.constant dense<0.000000e+00> : vector<8xf32>
    %48 = vector.multi_reduction <add>, %47, %cst_34 [1] : vector<8x8xf32> to vector<8xf32>
    %49 = vector.shape_cast %48 : vector<8xf32> to vector<8x1xf32>
    %50 = tpu.reciprocal %49 {approx = true} : vector<8x1xf32> -> vector<8x1xf32>
    %51 = vector.broadcast %50 : vector<8x1xf32> to vector<8x8xf32>
    %52 = arith.mulf %47, %51 : vector<8x8xf32>
    %53 = arith.truncf %52 : vector<8x8xf32> to vector<8x8xbf16>
    %cst_35 = arith.constant dense<0.000000e+00> : vector<8x64xf32>
    %54 = tpu.matmul %53, %37, %cst_35 {dimension_numbers = #tpu.dot_dimension_numbers<[1], [0], [0], [1], [0, 0, 1, 1], [], []>} : vector<8x8xbf16>, vector<8x64xbf16>, vector<8x64xf32> -> vector<8x64xf32>
    %55 = arith.truncf %54 : vector<8x64xf32> to vector<8x64xbf16>
    %56 = vector.extract_strided_slice %32 {offsets = [0, 0], sizes = [64, 128], strides = [1, 1]} : vector<128x128xbf16> to vector<64x128xbf16>
    %cst_36 = arith.constant dense<0.000000e+00> : vector<8x128xf32>
    %57 = tpu.matmul %55, %56, %cst_36 {dimension_numbers = #tpu.dot_dimension_numbers<[1], [0], [0], [1], [0, 0, 1, 1], [], []>} : vector<8x64xbf16>, vector<64x128xbf16>, vector<8x128xf32> -> vector<8x128xf32>
    %58 = vector.broadcast %34 : vector<1x128xf32> to vector<8x128xf32>
    %59 = arith.addf %58, %57 : vector<8x128xf32>
    %60 = vector.extract_strided_slice %28 {offsets = [0, 64], sizes = [8, 64], strides = [1, 1]} : vector<8x128xbf16> to vector<8x64xbf16>
    %61 = vector.extract_strided_slice %29 {offsets = [0, 64], sizes = [8, 64], strides = [1, 1]} : vector<8x128xbf16> to vector<8x64xbf16>
    %62 = vector.extract_strided_slice %30 {offsets = [0, 64], sizes = [8, 64], strides = [1, 1]} : vector<8x128xbf16> to vector<8x64xbf16>
    %cst_37 = arith.constant dense<0.000000e+00> : vector<8x8xf32>
    %63 = tpu.matmul %60, %61, %cst_37 {dimension_numbers = #tpu.dot_dimension_numbers<[1], [1], [0], [0], [0, 0, 1, 0], [], []>} : vector<8x64xbf16>, vector<8x64xbf16>, vector<8x8xf32> -> vector<8x8xf32>
    %cst_38 = arith.constant 1.250000e-01 : f32
    %64 = vector.broadcast %cst_38 : f32 to vector<8x8xf32>
    %65 = arith.mulf %63, %64 : vector<8x8xf32>
    %66 = vector.broadcast %5 : vector<1x8xf32> to vector<8x8xf32>
    %67 = arith.addf %65, %66 : vector<8x8xf32>
    %cst_39 = arith.constant dense<0xFF800000> : vector<8xf32>
    %68 = vector.multi_reduction <maximumf>, %67, %cst_39 [1] : vector<8x8xf32> to vector<8xf32>
    %69 = vector.shape_cast %68 : vector<8xf32> to vector<8x1xf32>
    %70 = vector.broadcast %69 : vector<8x1xf32> to vector<8x8xf32>
    %71 = arith.subf %67, %70 : vector<8x8xf32>
    %72 = math.exp %71 : vector<8x8xf32>
    %cst_40 = arith.constant dense<0.000000e+00> : vector<8xf32>
    %73 = vector.multi_reduction <add>, %72, %cst_40 [1] : vector<8x8xf32> to vector<8xf32>
    %74 = vector.shape_cast %73 : vector<8xf32> to vector<8x1xf32>
    %75 = tpu.reciprocal %74 {approx = true} : vector<8x1xf32> -> vector<8x1xf32>
    %76 = vector.broadcast %75 : vector<8x1xf32> to vector<8x8xf32>
    %77 = arith.mulf %72, %76 : vector<8x8xf32>
    %78 = arith.truncf %77 : vector<8x8xf32> to vector<8x8xbf16>
    %cst_41 = arith.constant dense<0.000000e+00> : vector<8x64xf32>
    %79 = tpu.matmul %78, %62, %cst_41 {dimension_numbers = #tpu.dot_dimension_numbers<[1], [0], [0], [1], [0, 0, 1, 1], [], []>} : vector<8x8xbf16>, vector<8x64xbf16>, vector<8x64xf32> -> vector<8x64xf32>
    %80 = arith.truncf %79 : vector<8x64xf32> to vector<8x64xbf16>
    %81 = vector.extract_strided_slice %32 {offsets = [64, 0], sizes = [64, 128], strides = [1, 1]} : vector<128x128xbf16> to vector<64x128xbf16>
    %cst_42 = arith.constant dense<0.000000e+00> : vector<8x128xf32>
    %82 = tpu.matmul %80, %81, %cst_42 {dimension_numbers = #tpu.dot_dimension_numbers<[1], [0], [0], [1], [0, 0, 1, 1], [], []>} : vector<8x64xbf16>, vector<64x128xbf16>, vector<8x128xf32> -> vector<8x128xf32>
    %83 = arith.addf %59, %82 : vector<8x128xf32>
    %84 = arith.addf %3, %83 : vector<8x128xf32>
    %c0_43 = arith.constant 0 : index
    %c0_44 = arith.constant 0 : index
    %c0_45 = arith.constant 0 : index
    %85 = vector.load %arg14[%c0_43, %c0_44, %c0_45] : memref<1x1x128xf32, #tpu.memory_space<vmem>>, vector<1x1x128xf32>
    %86 = vector.shape_cast %85 : vector<1x1x128xf32> to vector<1x128xf32>
    %c0_46 = arith.constant 0 : index
    %c0_47 = arith.constant 0 : index
    %c0_48 = arith.constant 0 : index
    %87 = vector.load %arg15[%c0_46, %c0_47, %c0_48] : memref<1x1x128xf32, #tpu.memory_space<vmem>>, vector<1x1x128xf32>
    %88 = vector.shape_cast %87 : vector<1x1x128xf32> to vector<1x128xf32>
    %cst_49 = arith.constant dense<0.000000e+00> : vector<8xf32>
    %89 = vector.multi_reduction <add>, %84, %cst_49 [1] : vector<8x128xf32> to vector<8xf32>
    %90 = vector.shape_cast %89 : vector<8xf32> to vector<8x1xf32>
    %cst_50 = arith.constant 1.280000e+02 : f32
    %91 = vector.broadcast %cst_50 : f32 to vector<8x1xf32>
    %92 = arith.divf %90, %91 : vector<8x1xf32>
    %93 = vector.broadcast %92 : vector<8x1xf32> to vector<8x128xf32>
    %94 = arith.subf %84, %93 : vector<8x128xf32>
    %95 = arith.mulf %94, %94 : vector<8x128xf32>
    %cst_51 = arith.constant dense<0.000000e+00> : vector<8xf32>
    %96 = vector.multi_reduction <add>, %95, %cst_51 [1] : vector<8x128xf32> to vector<8xf32>
    %97 = vector.shape_cast %96 : vector<8xf32> to vector<8x1xf32>
    %cst_52 = arith.constant 1.280000e+02 : f32
    %98 = vector.broadcast %cst_52 : f32 to vector<8x1xf32>
    %99 = arith.divf %97, %98 : vector<8x1xf32>
    %100 = vector.broadcast %92 : vector<8x1xf32> to vector<8x128xf32>
    %101 = arith.subf %84, %100 : vector<8x128xf32>
    %cst_53 = arith.constant 9.99999996E-13 : f32
    %102 = vector.broadcast %cst_53 : f32 to vector<8x1xf32>
    %103 = arith.addf %99, %102 : vector<8x1xf32>
    %104 = math.rsqrt %103 : vector<8x1xf32>
    %105 = vector.broadcast %104 : vector<8x1xf32> to vector<8x128xf32>
    %106 = arith.mulf %101, %105 : vector<8x128xf32>
    %107 = vector.broadcast %86 : vector<1x128xf32> to vector<8x128xf32>
    %108 = arith.mulf %106, %107 : vector<8x128xf32>
    %109 = vector.broadcast %88 : vector<1x128xf32> to vector<8x128xf32>
    %110 = arith.addf %108, %109 : vector<8x128xf32>
    %111 = arith.truncf %110 : vector<8x128xf32> to vector<8x128xbf16>
    %c0_54 = arith.constant 0 : index
    %c0_55 = arith.constant 0 : index
    %c0_56 = arith.constant 0 : index
    %112 = vector.load %arg8[%c0_54, %c0_55, %c0_56] : memref<1x128x256xbf16, #tpu.memory_space<vmem>>, vector<1x128x256xbf16>
    %113 = vector.shape_cast %112 : vector<1x128x256xbf16> to vector<128x256xbf16>
    %cst_57 = arith.constant dense<0.000000e+00> : vector<8x256xf32>
    %114 = tpu.matmul %111, %113, %cst_57 {dimension_numbers = #tpu.dot_dimension_numbers<[1], [0], [0], [1], [0, 0, 1, 1], [], []>} : vector<8x128xbf16>, vector<128x256xbf16>, vector<8x256xf32> -> vector<8x256xf32>
    %c0_58 = arith.constant 0 : index
    %c0_59 = arith.constant 0 : index
    %c0_60 = arith.constant 0 : index
    %115 = vector.load %arg16[%c0_58, %c0_59, %c0_60] : memref<1x1x256xf32, #tpu.memory_space<vmem>>, vector<1x1x256xf32>
    %116 = vector.shape_cast %115 : vector<1x1x256xf32> to vector<1x256xf32>
    %117 = vector.broadcast %116 : vector<1x256xf32> to vector<8x256xf32>
    %118 = arith.addf %114, %117 : vector<8x256xf32>
    %cst_61 = arith.constant 5.000000e-01 : f32
    %119 = vector.broadcast %cst_61 : f32 to vector<8x256xf32>
    %120 = arith.mulf %119, %118 : vector<8x256xf32>
    %cst_62 = arith.constant 4.471500e-02 : f32
    %121 = vector.broadcast %cst_62 : f32 to vector<8x256xf32>
    %122 = arith.mulf %121, %118 : vector<8x256xf32>
    %123 = arith.mulf %122, %118 : vector<8x256xf32>
    %124 = arith.mulf %123, %118 : vector<8x256xf32>
    %125 = arith.addf %118, %124 : vector<8x256xf32>
    %cst_63 = arith.constant 0.797884583 : f32
    %126 = vector.broadcast %cst_63 : f32 to vector<8x256xf32>
    %127 = arith.mulf %126, %125 : vector<8x256xf32>
    %128 = math.tanh %127 : vector<8x256xf32>
    %cst_64 = arith.constant 1.000000e+00 : f32
    %129 = vector.broadcast %cst_64 : f32 to vector<8x256xf32>
    %130 = arith.addf %129, %128 : vector<8x256xf32>
    %131 = arith.mulf %120, %130 : vector<8x256xf32>
    %132 = arith.truncf %131 : vector<8x256xf32> to vector<8x256xbf16>
    %c0_65 = arith.constant 0 : index
    %c0_66 = arith.constant 0 : index
    %c0_67 = arith.constant 0 : index
    %133 = vector.load %arg9[%c0_65, %c0_66, %c0_67] : memref<1x256x128xbf16, #tpu.memory_space<vmem>>, vector<1x256x128xbf16>
    %134 = vector.shape_cast %133 : vector<1x256x128xbf16> to vector<256x128xbf16>
    %cst_68 = arith.constant dense<0.000000e+00> : vector<8x128xf32>
    %135 = tpu.matmul %132, %134, %cst_68 {dimension_numbers = #tpu.dot_dimension_numbers<[1], [0], [0], [1], [0, 0, 1, 1], [], []>} : vector<8x256xbf16>, vector<256x128xbf16>, vector<8x128xf32> -> vector<8x128xf32>
    %c0_69 = arith.constant 0 : index
    %c0_70 = arith.constant 0 : index
    %c0_71 = arith.constant 0 : index
    %136 = vector.load %arg17[%c0_69, %c0_70, %c0_71] : memref<1x1x128xf32, #tpu.memory_space<vmem>>, vector<1x1x128xf32>
    %137 = vector.shape_cast %136 : vector<1x1x128xf32> to vector<1x128xf32>
    %138 = vector.broadcast %137 : vector<1x128xf32> to vector<8x128xf32>
    %139 = arith.addf %135, %138 : vector<8x128xf32>
    %140 = arith.addf %110, %139 : vector<8x128xf32>
    %c0_72 = arith.constant 0 : index
    %c0_73 = arith.constant 0 : index
    %c0_74 = arith.constant 0 : index
    %141 = vector.load %arg18[%c0_72, %c0_73, %c0_74] : memref<1x1x128xf32, #tpu.memory_space<vmem>>, vector<1x1x128xf32>
    %142 = vector.shape_cast %141 : vector<1x1x128xf32> to vector<1x128xf32>
    %c0_75 = arith.constant 0 : index
    %c0_76 = arith.constant 0 : index
    %c0_77 = arith.constant 0 : index
    %143 = vector.load %arg19[%c0_75, %c0_76, %c0_77] : memref<1x1x128xf32, #tpu.memory_space<vmem>>, vector<1x1x128xf32>
    %144 = vector.shape_cast %143 : vector<1x1x128xf32> to vector<1x128xf32>
    %cst_78 = arith.constant dense<0.000000e+00> : vector<8xf32>
    %145 = vector.multi_reduction <add>, %140, %cst_78 [1] : vector<8x128xf32> to vector<8xf32>
    %146 = vector.shape_cast %145 : vector<8xf32> to vector<8x1xf32>
    %cst_79 = arith.constant 1.280000e+02 : f32
    %147 = vector.broadcast %cst_79 : f32 to vector<8x1xf32>
    %148 = arith.divf %146, %147 : vector<8x1xf32>
    %149 = vector.broadcast %148 : vector<8x1xf32> to vector<8x128xf32>
    %150 = arith.subf %140, %149 : vector<8x128xf32>
    %151 = arith.mulf %150, %150 : vector<8x128xf32>
    %cst_80 = arith.constant dense<0.000000e+00> : vector<8xf32>
    %152 = vector.multi_reduction <add>, %151, %cst_80 [1] : vector<8x128xf32> to vector<8xf32>
    %153 = vector.shape_cast %152 : vector<8xf32> to vector<8x1xf32>
    %cst_81 = arith.constant 1.280000e+02 : f32
    %154 = vector.broadcast %cst_81 : f32 to vector<8x1xf32>
    %155 = arith.divf %153, %154 : vector<8x1xf32>
    %156 = vector.broadcast %148 : vector<8x1xf32> to vector<8x128xf32>
    %157 = arith.subf %140, %156 : vector<8x128xf32>
    %cst_82 = arith.constant 9.99999996E-13 : f32
    %158 = vector.broadcast %cst_82 : f32 to vector<8x1xf32>
    %159 = arith.addf %155, %158 : vector<8x1xf32>
    %160 = math.rsqrt %159 : vector<8x1xf32>
    %161 = vector.broadcast %160 : vector<8x1xf32> to vector<8x128xf32>
    %162 = arith.mulf %157, %161 : vector<8x128xf32>
    %163 = vector.broadcast %142 : vector<1x128xf32> to vector<8x128xf32>
    %164 = arith.mulf %162, %163 : vector<8x128xf32>
    %165 = vector.broadcast %144 : vector<1x128xf32> to vector<8x128xf32>
    %166 = arith.addf %164, %165 : vector<8x128xf32>
    %c0_83 = arith.constant 0 : index
    %c0_84 = arith.constant 0 : index
    %167 = vector.load %arg25[%c0_83, %c0_84] : memref<8x128xf32, #tpu.memory_space<vmem>>, vector<8x128xf32>
    tpu.vector_store %arg25[%c0_83, %c0_84], %166 {strides = array<i32>} : memref<8x128xf32, #tpu.memory_space<vmem>>, vector<8x128xf32>,
    %168 = vector.extract_strided_slice %166 {offsets = [0, 0], sizes = [1, 128], strides = [1, 1]} : vector<8x128xf32> to vector<1x128xf32>
    %169 = arith.index_cast %arg1 : i32 to index
    %c0_85 = arith.constant 0 : index
    %170 = vector.load %arg26[%169, %c0_85] : memref<12x128xf32, #tpu.memory_space<vmem>>, vector<1x128xf32>
    tpu.vector_store %arg26[%169, %c0_85], %168 {strides = array<i32>} : memref<12x128xf32, #tpu.memory_space<vmem>>, vector<1x128xf32>,
    %c11_i32 = arith.constant 11 : i32
    %171 = arith.cmpi eq, %arg1, %c11_i32 : i32
    %172 = arith.extui %171 : i1 to i32
    %c0_i32_86 = arith.constant 0 : i32
    %173 = arith.cmpi ne, %172, %c0_i32_86 : i32
    scf.if %173 {
      %c0_87 = arith.constant 0 : index
      %c0_88 = arith.constant 0 : index
      %174 = vector.load %arg26[%c0_87, %c0_88] : memref<12x128xf32, #tpu.memory_space<vmem>>, vector<12x128xf32>
      %c0_89 = arith.constant 0 : index
      %c0_90 = arith.constant 0 : index
      %175 = vector.load %arg20[%c0_89, %c0_90] : memref<128x18xf32, #tpu.memory_space<vmem>>, vector<128x18xf32>
      %cst_91 = arith.constant dense<0.000000e+00> : vector<12x18xf32>
      %176 = tpu.matmul %174, %175, %cst_91 {dimension_numbers = #tpu.dot_dimension_numbers<[1], [0], [0], [1], [0, 0, 1, 1], [], []>} : vector<12x128xf32>, vector<128x18xf32>, vector<12x18xf32> -> vector<12x18xf32>
      %c0_92 = arith.constant 0 : index
      %c0_93 = arith.constant 0 : index
      %177 = vector.load %arg21[%c0_92, %c0_93] : memref<3x3xf32, #tpu.memory_space<vmem>>, vector<1x3xf32>
      %178 = vector.extract_strided_slice %176 {offsets = [0, 0], sizes = [11, 3], strides = [1, 1]} : vector<12x18xf32> to vector<11x3xf32>
      %179 = vector.broadcast %177 : vector<1x3xf32> to vector<11x3xf32>
      %180 = arith.addf %179, %178 : vector<11x3xf32>
      %181 = vector.extract_strided_slice %176 {offsets = [1, 3], sizes = [11, 3], strides = [1, 1]} : vector<12x18xf32> to vector<11x3xf32>
      %182 = arith.addf %180, %181 : vector<11x3xf32>
      %cst_94 = arith.constant 0.000000e+00 : f32
      %183 = vector.broadcast %cst_94 : f32 to vector<11x3xf32>
      %184 = arith.maximumf %182, %183 : vector<11x3xf32>
      %cst_95 = arith.constant dense<0xFF800000> : vector<3xf32>
      %185 = vector.multi_reduction <maximumf>, %184, %cst_95 [0] : vector<11x3xf32> to vector<3xf32>
      %186 = vector.shape_cast %185 : vector<3xf32> to vector<1x3xf32>
      %c1 = arith.constant 1 : index
      %c0_96 = arith.constant 0 : index
      %187 = vector.load %arg21[%c1, %c0_96] : memref<3x3xf32, #tpu.memory_space<vmem>>, vector<1x3xf32>
      %188 = vector.extract_strided_slice %176 {offsets = [0, 6], sizes = [11, 3], strides = [1, 1]} : vector<12x18xf32> to vector<11x3xf32>
      %189 = vector.broadcast %187 : vector<1x3xf32> to vector<11x3xf32>
      %190 = arith.addf %189, %188 : vector<11x3xf32>
      %191 = vector.extract_strided_slice %176 {offsets = [1, 9], sizes = [11, 3], strides = [1, 1]} : vector<12x18xf32> to vector<11x3xf32>
      %192 = arith.addf %190, %191 : vector<11x3xf32>
      %cst_97 = arith.constant 0.000000e+00 : f32
      %193 = vector.broadcast %cst_97 : f32 to vector<11x3xf32>
      %194 = arith.maximumf %192, %193 : vector<11x3xf32>
      %cst_98 = arith.constant dense<0xFF800000> : vector<3xf32>
      %195 = vector.multi_reduction <maximumf>, %194, %cst_98 [0] : vector<11x3xf32> to vector<3xf32>
      %196 = vector.shape_cast %195 : vector<3xf32> to vector<1x3xf32>
      %c2 = arith.constant 2 : index
      %c0_99 = arith.constant 0 : index
      %197 = vector.load %arg21[%c2, %c0_99] : memref<3x3xf32, #tpu.memory_space<vmem>>, vector<1x3xf32>
      %198 = vector.extract_strided_slice %176 {offsets = [0, 12], sizes = [11, 3], strides = [1, 1]} : vector<12x18xf32> to vector<11x3xf32>
      %199 = vector.broadcast %197 : vector<1x3xf32> to vector<11x3xf32>
      %200 = arith.addf %199, %198 : vector<11x3xf32>
      %201 = vector.extract_strided_slice %176 {offsets = [1, 15], sizes = [11, 3], strides = [1, 1]} : vector<12x18xf32> to vector<11x3xf32>
      %202 = arith.addf %200, %201 : vector<11x3xf32>
      %cst_100 = arith.constant 0.000000e+00 : f32
      %203 = vector.broadcast %cst_100 : f32 to vector<11x3xf32>
      %204 = arith.maximumf %202, %203 : vector<11x3xf32>
      %cst_101 = arith.constant dense<0xFF800000> : vector<3xf32>
      %205 = vector.multi_reduction <maximumf>, %204, %cst_101 [0] : vector<11x3xf32> to vector<3xf32>
      %206 = vector.shape_cast %205 : vector<3xf32> to vector<1x3xf32>
      %207 = tpu.concatenate %186, %196, %206 in 1 : vector<1x3xf32>, vector<1x3xf32>, vector<1x3xf32> -> vector<1x9xf32>
      %c0_102 = arith.constant 0 : index
      %c0_103 = arith.constant 0 : index
      %208 = vector.load %arg22[%c0_102, %c0_103] : memref<9x128xf32, #tpu.memory_space<vmem>>, vector<9x128xf32>
      %cst_104 = arith.constant dense<0.000000e+00> : vector<1x128xf32>
      %209 = tpu.matmul %207, %208, %cst_104 {dimension_numbers = #tpu.dot_dimension_numbers<[1], [0], [0], [1], [0, 0, 1, 1], [], []>} : vector<1x9xf32>, vector<9x128xf32>, vector<1x128xf32> -> vector<1x128xf32>
      %c0_105 = arith.constant 0 : index
      %c0_106 = arith.constant 0 : index
      %210 = vector.load %arg23[%c0_105, %c0_106] : memref<1x128xf32, #tpu.memory_space<vmem>>, vector<1x128xf32>
      %211 = arith.addf %209, %210 : vector<1x128xf32>
      %c0_107 = arith.constant 0 : index
      %c0_108 = arith.constant 0 : index
      %c0_109 = arith.constant 0 : index
      %212 = vector.load %arg24[%c0_107, %c0_108, %c0_109] : memref<1x1x128xf32, #tpu.memory_space<vmem>>, vector<1x1x128xf32>
      %213 = vector.shape_cast %212 : vector<1x1x128xf32> to vector<1x128xf32>
      %214 = vector.shape_cast %211 : vector<1x128xf32> to vector<1x1x128xf32>
      tpu.vector_store %arg24[%c0_107, %c0_108, %c0_109], %214 {strides = array<i32>} : memref<1x1x128xf32, #tpu.memory_space<vmem>>, vector<1x1x128xf32>,
    } else {
    }
    return
  }
  func.func @transform_0(%arg0: i32, %arg1: i32) -> (i32, i32, i32) {
    %c0_i32 = arith.constant 0 : i32
    %c0_i32_0 = arith.constant 0 : i32
    %c0_i32_1 = arith.constant 0 : i32
    return %arg0, %c0_i32, %c0_i32_0 : i32, i32, i32
  }
  func.func @transform_1(%arg0: i32, %arg1: i32) -> (i32, i32, i32) {
    %c0_i32 = arith.constant 0 : i32
    %c0_i32_0 = arith.constant 0 : i32
    %c0_i32_1 = arith.constant 0 : i32
    return %arg0, %c0_i32, %c0_i32_0 : i32, i32, i32
  }
  func.func @transform_2(%arg0: i32, %arg1: i32) -> (i32, i32, i32) {
    %c0_i32 = arith.constant 0 : i32
    %c0_i32_0 = arith.constant 0 : i32
    %c0_i32_1 = arith.constant 0 : i32
    return %arg1, %c0_i32, %c0_i32_0 : i32, i32, i32
  }
  func.func @transform_3(%arg0: i32, %arg1: i32) -> (i32, i32, i32) {
    %c0_i32 = arith.constant 0 : i32
    %c0_i32_0 = arith.constant 0 : i32
    %c0_i32_1 = arith.constant 0 : i32
    return %arg1, %c0_i32, %c0_i32_0 : i32, i32, i32
  }
  func.func @transform_4(%arg0: i32, %arg1: i32) -> (i32, i32, i32) {
    %c0_i32 = arith.constant 0 : i32
    %c0_i32_0 = arith.constant 0 : i32
    %c0_i32_1 = arith.constant 0 : i32
    return %arg1, %c0_i32, %c0_i32_0 : i32, i32, i32
  }
  func.func @transform_5(%arg0: i32, %arg1: i32) -> (i32, i32, i32) {
    %c0_i32 = arith.constant 0 : i32
    %c0_i32_0 = arith.constant 0 : i32
    %c0_i32_1 = arith.constant 0 : i32
    return %arg1, %c0_i32, %c0_i32_0 : i32, i32, i32
  }
  func.func @transform_6(%arg0: i32, %arg1: i32) -> (i32, i32, i32) {
    %c0_i32 = arith.constant 0 : i32
    %c0_i32_0 = arith.constant 0 : i32
    %c0_i32_1 = arith.constant 0 : i32
    return %arg1, %c0_i32, %c0_i32_0 : i32, i32, i32
  }
  func.func @transform_7(%arg0: i32, %arg1: i32) -> (i32, i32, i32) {
    %c0_i32 = arith.constant 0 : i32
    %c0_i32_0 = arith.constant 0 : i32
    %c0_i32_1 = arith.constant 0 : i32
    return %arg1, %c0_i32, %c0_i32_0 : i32, i32, i32
  }
  func.func @transform_8(%arg0: i32, %arg1: i32) -> (i32, i32, i32) {
    %c0_i32 = arith.constant 0 : i32
    %c0_i32_0 = arith.constant 0 : i32
    %c0_i32_1 = arith.constant 0 : i32
    return %arg1, %c0_i32, %c0_i32_0 : i32, i32, i32
  }
  func.func @transform_9(%arg0: i32, %arg1: i32) -> (i32, i32, i32) {
    %c0_i32 = arith.constant 0 : i32
    %c0_i32_0 = arith.constant 0 : i32
    %c0_i32_1 = arith.constant 0 : i32
    return %arg1, %c0_i32, %c0_i32_0 : i32, i32, i32
  }
  func.func @transform_10(%arg0: i32, %arg1: i32) -> (i32, i32, i32) {
    %c0_i32 = arith.constant 0 : i32
    %c0_i32_0 = arith.constant 0 : i32
    %c0_i32_1 = arith.constant 0 : i32
    return %arg1, %c0_i32, %c0_i32_0 : i32, i32, i32
  }
  func.func @transform_11(%arg0: i32, %arg1: i32) -> (i32, i32, i32) {
    %c0_i32 = arith.constant 0 : i32
    %c0_i32_0 = arith.constant 0 : i32
    %c0_i32_1 = arith.constant 0 : i32
    return %arg1, %c0_i32, %c0_i32_0 : i32, i32, i32
  }
  func.func @transform_12(%arg0: i32, %arg1: i32) -> (i32, i32, i32) {
    %c0_i32 = arith.constant 0 : i32
    %c0_i32_0 = arith.constant 0 : i32
    %c0_i32_1 = arith.constant 0 : i32
    return %arg1, %c0_i32, %c0_i32_0 : i32, i32, i32
  }
  func.func @transform_13(%arg0: i32, %arg1: i32) -> (i32, i32, i32) {
    %c0_i32 = arith.constant 0 : i32
    %c0_i32_0 = arith.constant 0 : i32
    %c0_i32_1 = arith.constant 0 : i32
    return %arg1, %c0_i32, %c0_i32_0 : i32, i32, i32
  }
  func.func @transform_14(%arg0: i32, %arg1: i32) -> (i32, i32, i32) {
    %c0_i32 = arith.constant 0 : i32
    %c0_i32_0 = arith.constant 0 : i32
    %c0_i32_1 = arith.constant 0 : i32
    return %arg1, %c0_i32, %c0_i32_0 : i32, i32, i32
  }
  func.func @transform_15(%arg0: i32, %arg1: i32) -> (i32, i32, i32) {
    %c0_i32 = arith.constant 0 : i32
    %c0_i32_0 = arith.constant 0 : i32
    %c0_i32_1 = arith.constant 0 : i32
    return %arg1, %c0_i32, %c0_i32_0 : i32, i32, i32
  }
  func.func @transform_16(%arg0: i32, %arg1: i32) -> (i32, i32, i32) {
    %c0_i32 = arith.constant 0 : i32
    %c0_i32_0 = arith.constant 0 : i32
    %c0_i32_1 = arith.constant 0 : i32
    return %arg1, %c0_i32, %c0_i32_0 : i32, i32, i32
  }
  func.func @transform_17(%arg0: i32, %arg1: i32) -> (i32, i32, i32) {
    %c0_i32 = arith.constant 0 : i32
    %c0_i32_0 = arith.constant 0 : i32
    %c0_i32_1 = arith.constant 0 : i32
    return %arg1, %c0_i32, %c0_i32_0 : i32, i32, i32
  }
  func.func @transform_18(%arg0: i32, %arg1: i32) -> (i32, i32) {
    %c0_i32 = arith.constant 0 : i32
    %c0_i32_0 = arith.constant 0 : i32
    %c0_i32_1 = arith.constant 0 : i32
    return %c0_i32, %c0_i32_0 : i32, i32
  }
  func.func @transform_19(%arg0: i32, %arg1: i32) -> (i32, i32) {
    %c0_i32 = arith.constant 0 : i32
    %c0_i32_0 = arith.constant 0 : i32
    %c0_i32_1 = arith.constant 0 : i32
    return %c0_i32, %c0_i32_0 : i32, i32
  }
  func.func @transform_20(%arg0: i32, %arg1: i32) -> (i32, i32) {
    %c0_i32 = arith.constant 0 : i32
    %c0_i32_0 = arith.constant 0 : i32
    %c0_i32_1 = arith.constant 0 : i32
    return %c0_i32, %c0_i32_0 : i32, i32
  }
  func.func @transform_21(%arg0: i32, %arg1: i32) -> (i32, i32) {
    %c0_i32 = arith.constant 0 : i32
    %c0_i32_0 = arith.constant 0 : i32
    %c0_i32_1 = arith.constant 0 : i32
    return %c0_i32, %c0_i32_0 : i32, i32
  }
  func.func @transform_22(%arg0: i32, %arg1: i32) -> (i32, i32, i32) {
    %c0_i32 = arith.constant 0 : i32
    %c0_i32_0 = arith.constant 0 : i32
    %c0_i32_1 = arith.constant 0 : i32
    return %arg0, %c0_i32, %c0_i32_0 : i32, i32, i32
  }
}

</mosaic_0001>

<llo_original>
// kernel: bert_blend_cnn_forward.1
$region0: #{bert_blend_cnn_forward.1}
  #allocation0 [shape = 'u32[]', space=smem, size = 0x4, offset = 0x4, fixed_abs, tag = 'smem constant byte address 0x4 - core index']
  #allocation1 [shape = 'u32[144,128]{1,0:T(1,128)}', space=vmem, size = 0x12000, scoped, tag = 'internal scratch']
  #allocation2 [shape = 'f32[8,128]{1,0:T(8,128)}', space=vmem, size = 0x1000, scoped, tag = 'scratch operand']
  #allocation3 [shape = 'f32[12,128]{1,0:T(8,128)}', space=vmem, size = 0x2000, scoped, tag = 'scratch operand']
  %s0 = inlined_call_operand.vmem [shape: f32[2,8,128], index: 0, kind: input, shape index: {}]
  %s1 = inlined_call_operand.vmem [shape: f32[2,1,8], index: 1, kind: input, shape index: {}]
  %s2 = inlined_call_operand.hbm [shape: bf16[12,128,128], index: 2, kind: input, shape index: {}]
  %s3 = inlined_call_operand.hbm [shape: bf16[12,128,128], index: 3, kind: input, shape index: {}]
  %s4 = inlined_call_operand.hbm [shape: bf16[12,128,128], index: 4, kind: input, shape index: {}]
  %s5 = inlined_call_operand.hbm [shape: bf16[12,128,128], index: 5, kind: input, shape index: {}]
  %s6 = inlined_call_operand.hbm [shape: bf16[12,128,256], index: 6, kind: input, shape index: {}]
  %s7 = inlined_call_operand.hbm [shape: bf16[12,256,128], index: 7, kind: input, shape index: {}]
  %s8 = inlined_call_operand.vmem [shape: f32[12,1,128], index: 8, kind: input, shape index: {}]
  %s9 = inlined_call_operand.vmem [shape: f32[12,1,128], index: 9, kind: input, shape index: {}]
  %s10 = inlined_call_operand.vmem [shape: f32[12,1,128], index: 10, kind: input, shape index: {}]
  %s11 = inlined_call_operand.vmem [shape: f32[12,1,128], index: 11, kind: input, shape index: {}]
  %s12 = inlined_call_operand.vmem [shape: f32[12,1,128], index: 12, kind: input, shape index: {}]
  %s13 = inlined_call_operand.vmem [shape: f32[12,1,128], index: 13, kind: input, shape index: {}]
  %s14 = inlined_call_operand.vmem [shape: f32[12,1,256], index: 14, kind: input, shape index: {}]
  %s15 = inlined_call_operand.vmem [shape: f32[12,1,128], index: 15, kind: input, shape index: {}]
  %s16 = inlined_call_operand.vmem [shape: f32[12,1,128], index: 16, kind: input, shape index: {}]
  %s17 = inlined_call_operand.vmem [shape: f32[12,1,128], index: 17, kind: input, shape index: {}]
  %s18 = inlined_call_operand.vmem [shape: f32[128,18], index: 18, kind: input, shape index: {}]
  %s19 = inlined_call_operand.vmem [shape: f32[3,3], index: 19, kind: input, shape index: {}]
  %s20 = inlined_call_operand.vmem [shape: f32[9,128], index: 20, kind: input, shape index: {}]
  %s21 = inlined_call_operand.vmem [shape: f32[1,128], index: 21, kind: input, shape index: {}]
  %s22 = inlined_call_operand.hbm [shape: f32[2,1,128], index: 22, kind: output, shape index: {}]
  %s23 = sld [smem:[#allocation0]]
  $region153: #{bert_blend_cnn_forward.1} parent=0
    _
  %s25 = ssub.s32 1, %s23
  %s26 = scalar_select 0, %s25, %s23
  $region1: #{bert_blend_cnn_forward.1} parent=0
    #allocation4 [shape = 'u8[65536]{0}', space=vmem, size = 0x10000, scoped, tag = 'input window, operand 2']
    #allocation5 [shape = 's32[2]{0}', space=sflag, size = 0x8, scoped, tag = 'scoped memory for bert_blend_cnn_forward.1']
    #allocation6 [shape = 's32[2]{0}', space=sflag, size = 0x8, scoped, tag = 'scoped memory for bert_blend_cnn_forward.1']
    #allocation7 [shape = 'u8[65536]{0}', space=vmem, size = 0x10000, scoped, tag = 'input window, operand 3']
    #allocation8 [shape = 's32[2]{0}', space=sflag, size = 0x8, scoped, tag = 'scoped memory for bert_blend_cnn_forward.1']
    #allocation9 [shape = 'u8[65536]{0}', space=vmem, size = 0x10000, scoped, tag = 'input window, operand 4']
    #allocation10 [shape = 'u8[65536]{0}', space=vmem, size = 0x10000, scoped, tag = 'input window, operand 5']
    #allocation11 [shape = 's32[2]{0}', space=sflag, size = 0x8, scoped, tag = 'scoped memory for bert_blend_cnn_forward.1']
    #allocation12 [shape = 'u8[131072]{0}', space=vmem, size = 0x20000, scoped, tag = 'input window, operand 6']
    #allocation13 [shape = 'u8[131072]{0}', space=vmem, size = 0x20000, scoped, tag = 'input window, operand 7']
    #allocation14 [shape = 's32[2]{0}', space=sflag, size = 0x8, scoped, tag = 'scoped memory for bert_blend_cnn_forward.1']
    #allocation15 [shape = 'u8[1024]{0}', space=vmem, size = 0x400, scoped, tag = 'output window, operand 0']
    %27 = vsyncpa [#allocation5], 0
    %s28 = scalar_lea.sflag [#allocation5], 1
    %29 = vsyncpa %s28, 0
    %30 = vsyncpa [#allocation8], 0
    %s31 = scalar_lea.sflag [#allocation8], 1
    %32 = vsyncpa %s31, 0
    %33 = vsyncpa [#allocation11], 0
    %s34 = scalar_lea.sflag [#allocation11], 1
    %35 = vsyncpa %s34, 0
    %36 = vsyncpa [#allocation14], 0
    %s37 = scalar_lea.sflag [#allocation14], 1
    %38 = vsyncpa %s37, 0
    %39 = vsyncpa [#allocation6], 0
    %s40 = scalar_lea.sflag [#allocation6], 1
    %41 = vsyncpa %s40, 0
    loop: start=0, step=1, limit=26
    $region2: #{bert_blend_cnn_forward.1} parent=1 // loop_pre_header
      _
    $region3: #{bert_blend_cnn_forward.1} parent=1 // loop_header
      %s43 = sphi 0, %s47
      %p44 = scmp.ge.s32.totalorder %s43, 26
      %s50 = sphi 0, %s62
      %s51 = sphi 0, %s58
      %s52 = sphi 0, %s50
      %s53 = sphi 0, %s51
      %s54 = sphi 0, %s52
      %s55 = sphi 0, %s53
      %s65 = sphi 0, %s67
      %s68 = sphi 0, %s65
      %s69 = sphi 0, %s68
      %s85 = sphi 0, %s69
      %s91 = sphi 0, %s93
      %s94 = sphi 0, %s91
      %s95 = sphi 0, %s94
      %s111 = sphi 0, %s95
      %s117 = sphi 0, %s119
      %s120 = sphi 0, %s117
      %s121 = sphi 0, %s120
      %s137 = sphi 0, %s121
      %s143 = sphi 0, %s145
      %s146 = sphi 0, %s143
      %s147 = sphi 0, %s146
      %s163 = sphi 0, %s147
      %s169 = sphi 0, %s171
      %s172 = sphi 0, %s169
      %s173 = sphi 0, %s172
      %s189 = sphi 0, %s173
      %s195 = sphi 0, %s197
      %s198 = sphi 0, %s195
      %s199 = sphi 0, %s198
      %s215 = sphi 0, %s199
      %s221 = sphi 0, %s223
      %s224 = sphi 0, %s221
      %s225 = sphi 0, %s224
      %s241 = sphi 0, %s225
      %s247 = sphi 0, %s249
      %s250 = sphi 0, %s247
      %s251 = sphi 0, %s250
      %s267 = sphi 0, %s251
      %s273 = sphi 0, %s275
      %s276 = sphi 0, %s273
      %s277 = sphi 0, %s276
      %s293 = sphi 0, %s277
      %s299 = sphi 0, %s301
      %s302 = sphi 0, %s299
      %s303 = sphi 0, %s302
      %s319 = sphi 0, %s303
      %s325 = sphi 0, %s327
      %s328 = sphi 0, %s325
      %s329 = sphi 0, %s328
      %s345 = sphi 0, %s329
      %s351 = sphi 0, %s353
      %s354 = sphi 0, %s351
      %s355 = sphi 0, %s354
      %s371 = sphi 0, %s355
      %s377 = sphi 0, %s379
      %s380 = sphi 0, %s377
      %s381 = sphi 0, %s380
      %s397 = sphi 0, %s381
      %s403 = sphi 0, %s405
      %s406 = sphi 0, %s403
      %s407 = sphi 0, %s406
      %s423 = sphi 0, %s407
      %s429 = sphi 0, %s431
      %s432 = sphi 0, %s429
      %s433 = sphi 0, %s432
      %s449 = sphi 0, %s433
      %s455 = sphi 0, %s457
      %s458 = sphi 0, %s455
      %s459 = sphi 0, %s458
      %s475 = sphi 0, %s459
      %s481 = sphi 0, %s483
      %s484 = sphi 0, %s481
      %s485 = sphi 0, %s484
      %s501 = sphi 0, %s485
      %s507 = sphi 0, %s509
      %s510 = sphi 0, %s507
      %s511 = sphi 0, %s510
      %s527 = sphi 0, %s511
      %s531 = sphi 0, %s531
      %s533 = sphi 0, %s531
      %s534 = sphi 0, %s533
      %s548 = sphi 0, %s534
      %s552 = sphi 0, %s552
      %s554 = sphi 0, %s552
      %s555 = sphi 0, %s554
      %s569 = sphi 0, %s555
      %s573 = sphi 0, %s573
      %s575 = sphi 0, %s573
      %s576 = sphi 0, %s575
      %s590 = sphi 0, %s576
      %s594 = sphi 0, %s594
      %s596 = sphi 0, %s594
      %s597 = sphi 0, %s596
      %s611 = sphi 0, %s597
      %s617 = sphi 0, %s619
      %s620 = sphi 0, %s617
      %s621 = sphi 0, %s620
      %s637 = sphi 0, %s621
    $region4: #{bert_blend_cnn_forward.1} parent=1 // loop_header_branch
      %46 = sbr.rel (%p44) target = $region8
    $region5: #{bert_blend_cnn_forward.1} parent=1 // loop_body
      %s48 = ssub.s32 %s43, 1
      %s49 = ssub.s32 %s43, 2
      %s56 = sadd.s32 1, %s51
      %p57 = scmp.ge.s32.totalorder %s56, 12
      %s58 = scalar_select %p57, 0, %s56
      %s59 = sadd.s32 1, %s50
      %s60 = scalar_select %p57, %s59, %s50
      %p61 = scmp.ge.s32.totalorder %s60, 2
      %s62 = scalar_select %p61, 0, %s60
      %s63 = ssub.s32 %s50, %s62
      %p64 = scmp.eq.s32.totalorder %s63, 0
      %s66 = sadd.s32 %s65, 1
      %s67 = scalar_select %p64, %s65, %s66
      %p70 = pneg %p64
      %p71 = scmp.eq.s32.totalorder %s43, 23
      %p72 = por %p70, %p71
      %p73 = scmp.ne.s32.totalorder %s65, %s68
      %p74 = scmp.eq.s32.totalorder %s43, 0
      %p75 = por %p73, %p74
      %p76 = scmp.ne.s32.totalorder %s65, %s68
      %p77 = scmp.eq.s32.totalorder %s48, 23
      %p78 = por %p76, %p77
      %p79 = scmp.ne.s32.totalorder %s68, %s69
      %p80 = scmp.eq.s32.totalorder %s48, 0
      %p81 = por %p79, %p80
      %p82 = scmp.ne.s32.totalorder %s68, %s69
      %p83 = scmp.eq.s32.totalorder %s49, 23
      %p84 = por %p82, %p83
      %p86 = scmp.ne.s32.totalorder %s69, %s85
      %p87 = scmp.eq.s32.totalorder %s49, 0
      %p88 = por %p86, %p87
      %s89 = ssub.s32 %s50, %s62
      %p90 = scmp.eq.s32.totalorder %s89, 0
      %s92 = sadd.s32 %s91, 1
      %s93 = scalar_select %p90, %s91, %s92
      %p96 = pneg %p90
      %p97 = scmp.eq.s32.totalorder %s43, 23
      %p98 = por %p96, %p97
      %p99 = scmp.ne.s32.totalorder %s91, %s94
      %p100 = scmp.eq.s32.totalorder %s43, 0
      %p101 = por %p99, %p100
      %p102 = scmp.ne.s32.totalorder %s91, %s94
      %p103 = scmp.eq.s32.totalorder %s48, 23
      %p104 = por %p102, %p103
      %p105 = scmp.ne.s32.totalorder %s94, %s95
      %p106 = scmp.eq.s32.totalorder %s48, 0
      %p107 = por %p105, %p106
      %p108 = scmp.ne.s32.totalorder %s94, %s95
      %p109 = scmp.eq.s32.totalorder %s49, 23
      %p110 = por %p108, %p109
      %p112 = scmp.ne.s32.totalorder %s95, %s111
      %p113 = scmp.eq.s32.totalorder %s49, 0
      %p114 = por %p112, %p113
      %s115 = ssub.s32 %s51, %s58
      %p116 = scmp.eq.s32.totalorder %s115, 0
      %s118 = sadd.s32 %s117, 1
      %s119 = scalar_select %p116, %s117, %s118
      %p122 = pneg %p116
      %p123 = scmp.eq.s32.totalorder %s43, 23
      %p124 = por %p122, %p123
      %p125 = scmp.ne.s32.totalorder %s117, %s120
      %p126 = scmp.eq.s32.totalorder %s43, 0
      %p127 = por %p125, %p126
      %p128 = scmp.ne.s32.totalorder %s117, %s120
      %p129 = scmp.eq.s32.totalorder %s48, 23
      %p130 = por %p128, %p129
      %p131 = scmp.ne.s32.totalorder %s120, %s121
      %p132 = scmp.eq.s32.totalorder %s48, 0
      %p133 = por %p131, %p132
      %p134 = scmp.ne.s32.totalorder %s120, %s121
      %p135 = scmp.eq.s32.totalorder %s49, 23
      %p136 = por %p134, %p135
      %p138 = scmp.ne.s32.totalorder %s121, %s137
      %p139 = scmp.eq.s32.totalorder %s49, 0
      %p140 = por %p138, %p139
      %s141 = ssub.s32 %s51, %s58
      %p142 = scmp.eq.s32.totalorder %s141, 0
      %s144 = sadd.s32 %s143, 1
      %s145 = scalar_select %p142, %s143, %s144
      %p148 = pneg %p142
      %p149 = scmp.eq.s32.totalorder %s43, 23
      %p150 = por %p148, %p149
      %p151 = scmp.ne.s32.totalorder %s143, %s146
      %p152 = scmp.eq.s32.totalorder %s43, 0
      %p153 = por %p151, %p152
      %p154 = scmp.ne.s32.totalorder %s143, %s146
      %p155 = scmp.eq.s32.totalorder %s48, 23
      %p156 = por %p154, %p155
      %p157 = scmp.ne.s32.totalorder %s146, %s147
      %p158 = scmp.eq.s32.totalorder %s48, 0
      %p159 = por %p157, %p158
      %p160 = scmp.ne.s32.totalorder %s146, %s147
      %p161 = scmp.eq.s32.totalorder %s49, 23
      %p162 = por %p160, %p161
      %p164 = scmp.ne.s32.totalorder %s147, %s163
      %p165 = scmp.eq.s32.totalorder %s49, 0
      %p166 = por %p164, %p165
      %s167 = ssub.s32 %s51, %s58
      %p168 = scmp.eq.s32.totalorder %s167, 0
      %s170 = sadd.s32 %s169, 1
      %s171 = scalar_select %p168, %s169, %s170
      %p174 = pneg %p168
      %p175 = scmp.eq.s32.totalorder %s43, 23
      %p176 = por %p174, %p175
      %p177 = scmp.ne.s32.totalorder %s169, %s172
      %p178 = scmp.eq.s32.totalorder %s43, 0
      %p179 = por %p177, %p178
      %p180 = scmp.ne.s32.totalorder %s169, %s172
      %p181 = scmp.eq.s32.totalorder %s48, 23
      %p182 = por %p180, %p181
      %p183 = scmp.ne.s32.totalorder %s172, %s173
      %p184 = scmp.eq.s32.totalorder %s48, 0
      %p185 = por %p183, %p184
      %p186 = scmp.ne.s32.totalorder %s172, %s173
      %p187 = scmp.eq.s32.totalorder %s49, 23
      %p188 = por %p186, %p187
      %p190 = scmp.ne.s32.totalorder %s173, %s189
      %p191 = scmp.eq.s32.totalorder %s49, 0
      %p192 = por %p190, %p191
      %s193 = ssub.s32 %s51, %s58
      %p194 = scmp.eq.s32.totalorder %s193, 0
      %s196 = sadd.s32 %s195, 1
      %s197 = scalar_select %p194, %s195, %s196
      %p200 = pneg %p194
      %p201 = scmp.eq.s32.totalorder %s43, 23
      %p202 = por %p200, %p201
      %p203 = scmp.ne.s32.totalorder %s195, %s198
      %p204 = scmp.eq.s32.totalorder %s43, 0
      %p205 = por %p203, %p204
      %p206 = scmp.ne.s32.totalorder %s195, %s198
      %p207 = scmp.eq.s32.totalorder %s48, 23
      %p208 = por %p206, %p207
      %p209 = scmp.ne.s32.totalorder %s198, %s199
      %p210 = scmp.eq.s32.totalorder %s48, 0
      %p211 = por %p209, %p210
      %p212 = scmp.ne.s32.totalorder %s198, %s199
      %p213 = scmp.eq.s32.totalorder %s49, 23
      %p214 = por %p212, %p213
      %p216 = scmp.ne.s32.totalorder %s199, %s215
      %p217 = scmp.eq.s32.totalorder %s49, 0
      %p218 = por %p216, %p217
      %s219 = ssub.s32 %s51, %s58
      %p220 = scmp.eq.s32.totalorder %s219, 0
      %s222 = sadd.s32 %s221, 1
      %s223 = scalar_select %p220, %s221, %s222
      %p226 = pneg %p220
      %p227 = scmp.eq.s32.totalorder %s43, 23
      %p228 = por %p226, %p227
      %p229 = scmp.ne.s32.totalorder %s221, %s224
      %p230 = scmp.eq.s32.totalorder %s43, 0
      %p231 = por %p229, %p230
      %p232 = scmp.ne.s32.totalorder %s221, %s224
      %p233 = scmp.eq.s32.totalorder %s48, 23
      %p234 = por %p232, %p233
      %p235 = scmp.ne.s32.totalorder %s224, %s225
      %p236 = scmp.eq.s32.totalorder %s48, 0
      %p237 = por %p235, %p236
      %p238 = scmp.ne.s32.totalorder %s224, %s225
      %p239 = scmp.eq.s32.totalorder %s49, 23
      %p240 = por %p238, %p239
      %p242 = scmp.ne.s32.totalorder %s225, %s241
      %p243 = scmp.eq.s32.totalorder %s49, 0
      %p244 = por %p242, %p243
      %s245 = ssub.s32 %s51, %s58
      %p246 = scmp.eq.s32.totalorder %s245, 0
      %s248 = sadd.s32 %s247, 1
      %s249 = scalar_select %p246, %s247, %s248
      %p252 = pneg %p246
      %p253 = scmp.eq.s32.totalorder %s43, 23
      %p254 = por %p252, %p253
      %p255 = scmp.ne.s32.totalorder %s247, %s250
      %p256 = scmp.eq.s32.totalorder %s43, 0
      %p257 = por %p255, %p256
      %p258 = scmp.ne.s32.totalorder %s247, %s250
      %p259 = scmp.eq.s32.totalorder %s48, 23
      %p260 = por %p258, %p259
      %p261 = scmp.ne.s32.totalorder %s250, %s251
      %p262 = scmp.eq.s32.totalorder %s48, 0
      %p263 = por %p261, %p262
      %p264 = scmp.ne.s32.totalorder %s250, %s251
      %p265 = scmp.eq.s32.totalorder %s49, 23
      %p266 = por %p264, %p265
      %p268 = scmp.ne.s32.totalorder %s251, %s267
      %p269 = scmp.eq.s32.totalorder %s49, 0
      %p270 = por %p268, %p269
      %s271 = ssub.s32 %s51, %s58
      %p272 = scmp.eq.s32.totalorder %s271, 0
      %s274 = sadd.s32 %s273, 1
      %s275 = scalar_select %p272, %s273, %s274
      %p278 = pneg %p272
      %p279 = scmp.eq.s32.totalorder %s43, 23
      %p280 = por %p278, %p279
      %p281 = scmp.ne.s32.totalorder %s273, %s276
      %p282 = scmp.eq.s32.totalorder %s43, 0
      %p283 = por %p281, %p282
      %p284 = scmp.ne.s32.totalorder %s273, %s276
      %p285 = scmp.eq.s32.totalorder %s48, 23
      %p286 = por %p284, %p285
      %p287 = scmp.ne.s32.totalorder %s276, %s277
      %p288 = scmp.eq.s32.totalorder %s48, 0
      %p289 = por %p287, %p288
      %p290 = scmp.ne.s32.totalorder %s276, %s277
      %p291 = scmp.eq.s32.totalorder %s49, 23
      %p292 = por %p290, %p291
      %p294 = scmp.ne.s32.totalorder %s277, %s293
      %p295 = scmp.eq.s32.totalorder %s49, 0
      %p296 = por %p294, %p295
      %s297 = ssub.s32 %s51, %s58
      %p298 = scmp.eq.s32.totalorder %s297, 0
      %s300 = sadd.s32 %s299, 1
      %s301 = scalar_select %p298, %s299, %s300
      %p304 = pneg %p298
      %p305 = scmp.eq.s32.totalorder %s43, 23
      %p306 = por %p304, %p305
      %p307 = scmp.ne.s32.totalorder %s299, %s302
      %p308 = scmp.eq.s32.totalorder %s43, 0
      %p309 = por %p307, %p308
      %p310 = scmp.ne.s32.totalorder %s299, %s302
      %p311 = scmp.eq.s32.totalorder %s48, 23
      %p312 = por %p310, %p311
      %p313 = scmp.ne.s32.totalorder %s302, %s303
      %p314 = scmp.eq.s32.totalorder %s48, 0
      %p315 = por %p313, %p314
      %p316 = scmp.ne.s32.totalorder %s302, %s303
      %p317 = scmp.eq.s32.totalorder %s49, 23
      %p318 = por %p316, %p317
      %p320 = scmp.ne.s32.totalorder %s303, %s319
      %p321 = scmp.eq.s32.totalorder %s49, 0
      %p322 = por %p320, %p321
      %s323 = ssub.s32 %s51, %s58
      %p324 = scmp.eq.s32.totalorder %s323, 0
      %s326 = sadd.s32 %s325, 1
      %s327 = scalar_select %p324, %s325, %s326
      %p330 = pneg %p324
      %p331 = scmp.eq.s32.totalorder %s43, 23
      %p332 = por %p330, %p331
      %p333 = scmp.ne.s32.totalorder %s325, %s328
      %p334 = scmp.eq.s32.totalorder %s43, 0
      %p335 = por %p333, %p334
      %p336 = scmp.ne.s32.totalorder %s325, %s328
      %p337 = scmp.eq.s32.totalorder %s48, 23
      %p338 = por %p336, %p337
      %p339 = scmp.ne.s32.totalorder %s328, %s329
      %p340 = scmp.eq.s32.totalorder %s48, 0
      %p341 = por %p339, %p340
      %p342 = scmp.ne.s32.totalorder %s328, %s329
      %p343 = scmp.eq.s32.totalorder %s49, 23
      %p344 = por %p342, %p343
      %p346 = scmp.ne.s32.totalorder %s329, %s345
      %p347 = scmp.eq.s32.totalorder %s49, 0
      %p348 = por %p346, %p347
      %s349 = ssub.s32 %s51, %s58
      %p350 = scmp.eq.s32.totalorder %s349, 0
      %s352 = sadd.s32 %s351, 1
      %s353 = scalar_select %p350, %s351, %s352
      %p356 = pneg %p350
      %p357 = scmp.eq.s32.totalorder %s43, 23
      %p358 = por %p356, %p357
      %p359 = scmp.ne.s32.totalorder %s351, %s354
      %p360 = scmp.eq.s32.totalorder %s43, 0
      %p361 = por %p359, %p360
      %p362 = scmp.ne.s32.totalorder %s351, %s354
      %p363 = scmp.eq.s32.totalorder %s48, 23
      %p364 = por %p362, %p363
      %p365 = scmp.ne.s32.totalorder %s354, %s355
      %p366 = scmp.eq.s32.totalorder %s48, 0
      %p367 = por %p365, %p366
      %p368 = scmp.ne.s32.totalorder %s354, %s355
      %p369 = scmp.eq.s32.totalorder %s49, 23
      %p370 = por %p368, %p369
      %p372 = scmp.ne.s32.totalorder %s355, %s371
      %p373 = scmp.eq.s32.totalorder %s49, 0
      %p374 = por %p372, %p373
      %s375 = ssub.s32 %s51, %s58
      %p376 = scmp.eq.s32.totalorder %s375, 0
      %s378 = sadd.s32 %s377, 1
      %s379 = scalar_select %p376, %s377, %s378
      %p382 = pneg %p376
      %p383 = scmp.eq.s32.totalorder %s43, 23
      %p384 = por %p382, %p383
      %p385 = scmp.ne.s32.totalorder %s377, %s380
      %p386 = scmp.eq.s32.totalorder %s43, 0
      %p387 = por %p385, %p386
      %p388 = scmp.ne.s32.totalorder %s377, %s380
      %p389 = scmp.eq.s32.totalorder %s48, 23
      %p390 = por %p388, %p389
      %p391 = scmp.ne.s32.totalorder %s380, %s381
      %p392 = scmp.eq.s32.totalorder %s48, 0
      %p393 = por %p391, %p392
      %p394 = scmp.ne.s32.totalorder %s380, %s381
      %p395 = scmp.eq.s32.totalorder %s49, 23
      %p396 = por %p394, %p395
      %p398 = scmp.ne.s32.totalorder %s381, %s397
      %p399 = scmp.eq.s32.totalorder %s49, 0
      %p400 = por %p398, %p399
      %s401 = ssub.s32 %s51, %s58
      %p402 = scmp.eq.s32.totalorder %s401, 0
      %s404 = sadd.s32 %s403, 1
      %s405 = scalar_select %p402, %s403, %s404
      %p408 = pneg %p402
      %p409 = scmp.eq.s32.totalorder %s43, 23
      %p410 = por %p408, %p409
      %p411 = scmp.ne.s32.totalorder %s403, %s406
      %p412 = scmp.eq.s32.totalorder %s43, 0
      %p413 = por %p411, %p412
      %p414 = scmp.ne.s32.totalorder %s403, %s406
      %p415 = scmp.eq.s32.totalorder %s48, 23
      %p416 = por %p414, %p415
      %p417 = scmp.ne.s32.totalorder %s406, %s407
      %p418 = scmp.eq.s32.totalorder %s48, 0
      %p419 = por %p417, %p418
      %p420 = scmp.ne.s32.totalorder %s406, %s407
      %p421 = scmp.eq.s32.totalorder %s49, 23
      %p422 = por %p420, %p421
      %p424 = scmp.ne.s32.totalorder %s407, %s423
      %p425 = scmp.eq.s32.totalorder %s49, 0
      %p426 = por %p424, %p425
      %s427 = ssub.s32 %s51, %s58
      %p428 = scmp.eq.s32.totalorder %s427, 0
      %s430 = sadd.s32 %s429, 1
      %s431 = scalar_select %p428, %s429, %s430
      %p434 = pneg %p428
      %p435 = scmp.eq.s32.totalorder %s43, 23
      %p436 = por %p434, %p435
      %p437 = scmp.ne.s32.totalorder %s429, %s432
      %p438 = scmp.eq.s32.totalorder %s43, 0
      %p439 = por %p437, %p438
      %p440 = scmp.ne.s32.totalorder %s429, %s432
      %p441 = scmp.eq.s32.totalorder %s48, 23
      %p442 = por %p440, %p441
      %p443 = scmp.ne.s32.totalorder %s432, %s433
      %p444 = scmp.eq.s32.totalorder %s48, 0
      %p445 = por %p443, %p444
      %p446 = scmp.ne.s32.totalorder %s432, %s433
      %p447 = scmp.eq.s32.totalorder %s49, 23
      %p448 = por %p446, %p447
      %p450 = scmp.ne.s32.totalorder %s433, %s449
      %p451 = scmp.eq.s32.totalorder %s49, 0
      %p452 = por %p450, %p451
      %s453 = ssub.s32 %s51, %s58
      %p454 = scmp.eq.s32.totalorder %s453, 0
      %s456 = sadd.s32 %s455, 1
      %s457 = scalar_select %p454, %s455, %s456
      %p460 = pneg %p454
      %p461 = scmp.eq.s32.totalorder %s43, 23
      %p462 = por %p460, %p461
      %p463 = scmp.ne.s32.totalorder %s455, %s458
      %p464 = scmp.eq.s32.totalorder %s43, 0
      %p465 = por %p463, %p464
      %p466 = scmp.ne.s32.totalorder %s455, %s458
      %p467 = scmp.eq.s32.totalorder %s48, 23
      %p468 = por %p466, %p467
      %p469 = scmp.ne.s32.totalorder %s458, %s459
      %p470 = scmp.eq.s32.totalorder %s48, 0
      %p471 = por %p469, %p470
      %p472 = scmp.ne.s32.totalorder %s458, %s459
      %p473 = scmp.eq.s32.totalorder %s49, 23
      %p474 = por %p472, %p473
      %p476 = scmp.ne.s32.totalorder %s459, %s475
      %p477 = scmp.eq.s32.totalorder %s49, 0
      %p478 = por %p476, %p477
      %s479 = ssub.s32 %s51, %s58
      %p480 = scmp.eq.s32.totalorder %s479, 0
      %s482 = sadd.s32 %s481, 1
      %s483 = scalar_select %p480, %s481, %s482
      %p486 = pneg %p480
      %p487 = scmp.eq.s32.totalorder %s43, 23
      %p488 = por %p486, %p487
      %p489 = scmp.ne.s32.totalorder %s481, %s484
      %p490 = scmp.eq.s32.totalorder %s43, 0
      %p491 = por %p489, %p490
      %p492 = scmp.ne.s32.totalorder %s481, %s484
      %p493 = scmp.eq.s32.totalorder %s48, 23
      %p494 = por %p492, %p493
      %p495 = scmp.ne.s32.totalorder %s484, %s485
      %p496 = scmp.eq.s32.totalorder %s48, 0
      %p497 = por %p495, %p496
      %p498 = scmp.ne.s32.totalorder %s484, %s485
      %p499 = scmp.eq.s32.totalorder %s49, 23
      %p500 = por %p498, %p499
      %p502 = scmp.ne.s32.totalorder %s485, %s501
      %p503 = scmp.eq.s32.totalorder %s49, 0
      %p504 = por %p502, %p503
      %s505 = ssub.s32 %s51, %s58
      %p506 = scmp.eq.s32.totalorder %s505, 0
      %s508 = sadd.s32 %s507, 1
      %s509 = scalar_select %p506, %s507, %s508
      %p512 = pneg %p506
      %p513 = scmp.eq.s32.totalorder %s43, 23
      %p514 = por %p512, %p513
      %p515 = scmp.ne.s32.totalorder %s507, %s510
      %p516 = scmp.eq.s32.totalorder %s43, 0
      %p517 = por %p515, %p516
      %p518 = scmp.ne.s32.totalorder %s507, %s510
      %p519 = scmp.eq.s32.totalorder %s48, 23
      %p520 = por %p518, %p519
      %p521 = scmp.ne.s32.totalorder %s510, %s511
      %p522 = scmp.eq.s32.totalorder %s48, 0
      %p523 = por %p521, %p522
      %p524 = scmp.ne.s32.totalorder %s510, %s511
      %p525 = scmp.eq.s32.totalorder %s49, 23
      %p526 = por %p524, %p525
      %p528 = scmp.ne.s32.totalorder %s511, %s527
      %p529 = scmp.eq.s32.totalorder %s49, 0
      %p530 = por %p528, %p529
      %s532 = sadd.s32 %s531, 1
      %p535 = scmp.eq.s32.totalorder %s43, 23
      %p536 = scmp.ne.s32.totalorder %s531, %s533
      %p537 = scmp.eq.s32.totalorder %s43, 0
      %p538 = por %p536, %p537
      %p539 = scmp.ne.s32.totalorder %s531, %s533
      %p540 = scmp.eq.s32.totalorder %s48, 23
      %p541 = por %p539, %p540
      %p542 = scmp.ne.s32.totalorder %s533, %s534
      %p543 = scmp.eq.s32.totalorder %s48, 0
      %p544 = por %p542, %p543
      %p545 = scmp.ne.s32.totalorder %s533, %s534
      %p546 = scmp.eq.s32.totalorder %s49, 23
      %p547 = por %p545, %p546
      %p549 = scmp.ne.s32.totalorder %s534, %s548
      %p550 = scmp.eq.s32.totalorder %s49, 0
      %p551 = por %p549, %p550
      %s553 = sadd.s32 %s552, 1
      %p556 = scmp.eq.s32.totalorder %s43, 23
      %p557 = scmp.ne.s32.totalorder %s552, %s554
      %p558 = scmp.eq.s32.totalorder %s43, 0
      %p559 = por %p557, %p558
      %p560 = scmp.ne.s32.totalorder %s552, %s554
      %p561 = scmp.eq.s32.totalorder %s48, 23
      %p562 = por %p560, %p561
      %p563 = scmp.ne.s32.totalorder %s554, %s555
      %p564 = scmp.eq.s32.totalorder %s48, 0
      %p565 = por %p563, %p564
      %p566 = scmp.ne.s32.totalorder %s554, %s555
      %p567 = scmp.eq.s32.totalorder %s49, 23
      %p568 = por %p566, %p567
      %p570 = scmp.ne.s32.totalorder %s555, %s569
      %p571 = scmp.eq.s32.totalorder %s49, 0
      %p572 = por %p570, %p571
      %s574 = sadd.s32 %s573, 1
      %p577 = scmp.eq.s32.totalorder %s43, 23
      %p578 = scmp.ne.s32.totalorder %s573, %s575
      %p579 = scmp.eq.s32.totalorder %s43, 0
      %p580 = por %p578, %p579
      %p581 = scmp.ne.s32.totalorder %s573, %s575
      %p582 = scmp.eq.s32.totalorder %s48, 23
      %p583 = por %p581, %p582
      %p584 = scmp.ne.s32.totalorder %s575, %s576
      %p585 = scmp.eq.s32.totalorder %s48, 0
      %p586 = por %p584, %p585
      %p587 = scmp.ne.s32.totalorder %s575, %s576
      %p588 = scmp.eq.s32.totalorder %s49, 23
      %p589 = por %p587, %p588
      %p591 = scmp.ne.s32.totalorder %s576, %s590
      %p592 = scmp.eq.s32.totalorder %s49, 0
      %p593 = por %p591, %p592
      %s595 = sadd.s32 %s594, 1
      %p598 = scmp.eq.s32.totalorder %s43, 23
      %p599 = scmp.ne.s32.totalorder %s594, %s596
      %p600 = scmp.eq.s32.totalorder %s43, 0
      %p601 = por %p599, %p600
      %p602 = scmp.ne.s32.totalorder %s594, %s596
      %p603 = scmp.eq.s32.totalorder %s48, 23
      %p604 = por %p602, %p603
      %p605 = scmp.ne.s32.totalorder %s596, %s597
      %p606 = scmp.eq.s32.totalorder %s48, 0
      %p607 = por %p605, %p606
      %p608 = scmp.ne.s32.totalorder %s596, %s597
      %p609 = scmp.eq.s32.totalorder %s49, 23
      %p610 = por %p608, %p609
      %p612 = scmp.ne.s32.totalorder %s597, %s611
      %p613 = scmp.eq.s32.totalorder %s49, 0
      %p614 = por %p612, %p613
      %s615 = ssub.s32 %s50, %s62
      %p616 = scmp.eq.s32.totalorder %s615, 0
      %s618 = sadd.s32 %s617, 1
      %s619 = scalar_select %p616, %s617, %s618
      %p622 = pneg %p616
      %p623 = scmp.eq.s32.totalorder %s43, 23
      %p624 = por %p622, %p623
      %p625 = scmp.ne.s32.totalorder %s617, %s620
      %p626 = scmp.eq.s32.totalorder %s43, 0
      %p627 = por %p625, %p626
      %p628 = scmp.ne.s32.totalorder %s617, %s620
      %p629 = scmp.eq.s32.totalorder %s48, 23
      %p630 = por %p628, %p629
      %p631 = scmp.ne.s32.totalorder %s620, %s621
      %p632 = scmp.eq.s32.totalorder %s48, 0
      %p633 = por %p631, %p632
      %p634 = scmp.ne.s32.totalorder %s620, %s621
      %p635 = scmp.eq.s32.totalorder %s49, 23
      %p636 = por %p634, %p635
      %p638 = scmp.ne.s32.totalorder %s621, %s637
      %p639 = scmp.eq.s32.totalorder %s49, 0
      %p640 = por %p638, %p639
      %p641 = scmp.le.s32.totalorder 1, %s43
      %p642 = scmp.lt.s32.totalorder %s43, 25
      %p643 = pnand %p641, %p642
      %p644 = pneg %p643
      // Predicated region
      $region9: #{bert_blend_cnn_forward.1} parent=5 // pred_check
        _
      $region10: #{bert_blend_cnn_forward.1} parent=5 // pred_check_branch
        %646 = sbr.rel (%p643) target = $region12
      $region11: #{bert_blend_cnn_forward.1} parent=5 // pred_region
        %s647 = ssub.s32 %s43, 1
        // Predicated region
        $region13: #{bert_blend_cnn_forward.1} parent=11 // pred_check
          %p648 = pneg %p544
        $region14: #{bert_blend_cnn_forward.1} parent=11 // pred_check_branch
          %650 = sbr.rel (%p648) target = $region16
        $region15: #{bert_blend_cnn_forward.1} parent=11 // pred_region
          _
        $region16: #{bert_blend_cnn_forward.1} parent=11 // pred_fallthru
          _
        // Predicated region
        $region17: #{bert_blend_cnn_forward.1} parent=11 // pred_check
          %p651 = pneg %p565
        $region18: #{bert_blend_cnn_forward.1} parent=11 // pred_check_branch
          %653 = sbr.rel (%p651) target = $region20
        $region19: #{bert_blend_cnn_forward.1} parent=11 // pred_region
          _
        $region20: #{bert_blend_cnn_forward.1} parent=11 // pred_fallthru
          _
        // Predicated region
        $region21: #{bert_blend_cnn_forward.1} parent=11 // pred_check
          %p654 = pneg %p586
        $region22: #{bert_blend_cnn_forward.1} parent=11 // pred_check_branch
          %656 = sbr.rel (%p654) target = $region24
        $region23: #{bert_blend_cnn_forward.1} parent=11 // pred_region
          _
        $region24: #{bert_blend_cnn_forward.1} parent=11 // pred_fallthru
          _
        // Predicated region
        $region25: #{bert_blend_cnn_forward.1} parent=11 // pred_check
          %p657 = pneg %p607
        $region26: #{bert_blend_cnn_forward.1} parent=11 // pred_check_branch
          %659 = sbr.rel (%p657) target = $region28
        $region27: #{bert_blend_cnn_forward.1} parent=11 // pred_region
          _
        $region28: #{bert_blend_cnn_forward.1} parent=11 // pred_fallthru
          _
      $region12: #{bert_blend_cnn_forward.1} parent=5 // pred_fallthru
        _
      %p660 = scmp.lt.s32.totalorder %s43, 24
      // Predicated region
      $region29: #{bert_blend_cnn_forward.1} parent=5 // pred_check
        %p661 = pneg %p660
      $region30: #{bert_blend_cnn_forward.1} parent=5 // pred_check_branch
        %663 = sbr.rel (%p661) target = $region32
      $region31: #{bert_blend_cnn_forward.1} parent=5 // pred_region
        // Predicated region
        $region33: #{bert_blend_cnn_forward.1} parent=31 // pred_check
          %p664 = pneg %p75
        $region34: #{bert_blend_cnn_forward.1} parent=31 // pred_check_branch
          %666 = sbr.rel (%p664) target = $region36
        $region35: #{bert_blend_cnn_forward.1} parent=31 // pred_region
          %p667 = scmp.lt.s32.totalorder %s50, 1
          %s668 = scalar_select %p667, %s50, 1
          %s669 = smul.addr %s668, 8
          %s670 = scalar_lea.vmem %s0, %s669
        $region36: #{bert_blend_cnn_forward.1} parent=31 // pred_fallthru
          _
        // Predicated region
        $region37: #{bert_blend_cnn_forward.1} parent=31 // pred_check
          %p671 = pneg %p101
        $region38: #{bert_blend_cnn_forward.1} parent=31 // pred_check_branch
          %673 = sbr.rel (%p671) target = $region40
        $region39: #{bert_blend_cnn_forward.1} parent=31 // pred_region
          %p674 = scmp.lt.s32.totalorder %s50, 1
          %s675 = scalar_select %p674, %s50, 1
          %s676 = scalar_lea.vmem %s1, %s675
        $region40: #{bert_blend_cnn_forward.1} parent=31 // pred_fallthru
          _
        // Predicated region
        $region41: #{bert_blend_cnn_forward.1} parent=31 // pred_check
          %p677 = pneg %p127
        $region42: #{bert_blend_cnn_forward.1} parent=31 // pred_check_branch
          %679 = sbr.rel (%p677) target = $region44
        $region43: #{bert_blend_cnn_forward.1} parent=31 // pred_region
          %s680 = sand.u32 %s117, 1
          %s681 = scalar_lea.sflag [#allocation5], %s680
          %s682 = sand.u32 %s117, 1
          %s683 = smul.addr %s682, 64
          %s684 = scalar_lea.vmem [#allocation4], %s683
          %s686 = ssub.s32 1024, 1024
          %687 = vsyncadd %s681, %s686
          %s688 = smul.addr %s51, 16
          %s689 = smul.addr %s688, 64
          %s690 = scalar_lea.hbm %s2, %s689
          %s691 = sshll.u32 %s684, 4
          %s692 = int_to_ptr.vmem [resolvable:$true] %s691
          %697 = dma.hbm_to_vmem [thread:$0]  %s690, 1024, %s692, %s681, 64, 64, 4
        $region44: #{bert_blend_cnn_forward.1} parent=31 // pred_fallthru
          _
        // Predicated region
        $region45: #{bert_blend_cnn_forward.1} parent=31 // pred_check
          %p698 = pneg %p153
        $region46: #{bert_blend_cnn_forward.1} parent=31 // pred_check_branch
          %700 = sbr.rel (%p698) target = $region48
        $region47: #{bert_blend_cnn_forward.1} parent=31 // pred_region
          %s701 = sand.u32 %s43, 1
          %s702 = scalar_lea.sflag [#allocation8], %s701
          %s703 = sand.u32 %s143, 1
          %s704 = smul.addr %s703, 64
          %s705 = scalar_lea.vmem [#allocation7], %s704
          %s707 = ssub.s32 1024, 1024
          %708 = vsyncadd %s702, %s707
          %s709 = smul.addr %s51, 16
          %s710 = smul.addr %s709, 64
          %s711 = scalar_lea.hbm %s3, %s710
          %s712 = sshll.u32 %s705, 4
          %s713 = int_to_ptr.vmem [resolvable:$true] %s712
          %718 = dma.hbm_to_vmem [thread:$0]  %s711, 1024, %s713, %s702, 64, 64, 4
        $region48: #{bert_blend_cnn_forward.1} parent=31 // pred_fallthru
          _
        // Predicated region
        $region49: #{bert_blend_cnn_forward.1} parent=31 // pred_check
          %p719 = pneg %p179
        $region50: #{bert_blend_cnn_forward.1} parent=31 // pred_check_branch
          %721 = sbr.rel (%p719) target = $region52
        $region51: #{bert_blend_cnn_forward.1} parent=31 // pred_region
          %s722 = sand.u32 %s43, 1
          %s723 = scalar_lea.sflag [#allocation8], %s722
          %s724 = sand.u32 %s169, 1
          %s725 = smul.addr %s724, 64
          %s726 = scalar_lea.vmem [#allocation9], %s725
          %s728 = ssub.s32 1024, 1024
          %729 = vsyncadd %s723, %s728
          %s730 = smul.addr %s51, 16
          %s731 = smul.addr %s730, 64
          %s732 = scalar_lea.hbm %s4, %s731
          %s733 = sshll.u32 %s726, 4
          %s734 = int_to_ptr.vmem [resolvable:$true] %s733
          %739 = dma.hbm_to_vmem [thread:$0]  %s732, 1024, %s734, %s723, 64, 64, 4
        $region52: #{bert_blend_cnn_forward.1} parent=31 // pred_fallthru
          _
        // Predicated region
        $region53: #{bert_blend_cnn_forward.1} parent=31 // pred_check
          %p740 = pneg %p205
        $region54: #{bert_blend_cnn_forward.1} parent=31 // pred_check_branch
          %742 = sbr.rel (%p740) target = $region56
        $region55: #{bert_blend_cnn_forward.1} parent=31 // pred_region
          %s743 = sand.u32 %s43, 1
          %s744 = scalar_lea.sflag [#allocation11], %s743
          %s745 = sand.u32 %s195, 1
          %s746 = smul.addr %s745, 64
          %s747 = scalar_lea.vmem [#allocation10], %s746
          %s749 = ssub.s32 1024, 1024
          %750 = vsyncadd %s744, %s749
          %s751 = smul.addr %s51, 16
          %s752 = smul.addr %s751, 64
          %s753 = scalar_lea.hbm %s5, %s752
          %s754 = sshll.u32 %s747, 4
          %s755 = int_to_ptr.vmem [resolvable:$true] %s754
          %760 = dma.hbm_to_vmem [thread:$0]  %s753, 1024, %s755, %s744, 64, 64, 4
        $region56: #{bert_blend_cnn_forward.1} parent=31 // pred_fallthru
          _
        // Predicated region
        $region57: #{bert_blend_cnn_forward.1} parent=31 // pred_check
          %p761 = pneg %p231
        $region58: #{bert_blend_cnn_forward.1} parent=31 // pred_check_branch
          %763 = sbr.rel (%p761) target = $region60
        $region59: #{bert_blend_cnn_forward.1} parent=31 // pred_region
          %s764 = sand.u32 %s43, 1
          %s765 = scalar_lea.sflag [#allocation11], %s764
          %s766 = sand.u32 %s221, 1
          %s767 = smul.addr %s766, 128
          %s768 = scalar_lea.vmem [#allocation12], %s767
          %s770 = ssub.s32 2048, 2048
          %771 = vsyncadd %s765, %s770
          %s772 = smul.addr %s51, 32
          %s773 = smul.addr %s772, 64
          %s774 = scalar_lea.hbm %s6, %s773
          %s775 = sshll.u32 %s768, 4
          %s776 = int_to_ptr.vmem [resolvable:$true] %s775
          %781 = dma.hbm_to_vmem [thread:$0]  %s774, 2048, %s776, %s765, 128, 128, 8
        $region60: #{bert_blend_cnn_forward.1} parent=31 // pred_fallthru
          _
        // Predicated region
        $region61: #{bert_blend_cnn_forward.1} parent=31 // pred_check
          %p782 = pneg %p257
        $region62: #{bert_blend_cnn_forward.1} parent=31 // pred_check_branch
          %784 = sbr.rel (%p782) target = $region64
        $region63: #{bert_blend_cnn_forward.1} parent=31 // pred_region
          %s785 = sand.u32 %s247, 1
          %s786 = scalar_lea.sflag [#allocation14], %s785
          %s787 = sand.u32 %s247, 1
          %s788 = smul.addr %s787, 128
          %s789 = scalar_lea.vmem [#allocation13], %s788
          %s791 = ssub.s32 2048, 2048
          %792 = vsyncadd %s786, %s791
          %s793 = smul.addr %s51, 32
          %s794 = smul.addr %s793, 64
          %s795 = scalar_lea.hbm %s7, %s794
          %s796 = sshll.u32 %s789, 4
          %s797 = int_to_ptr.vmem [resolvable:$true] %s796
          %802 = dma.hbm_to_vmem [thread:$0]  %s795, 2048, %s797, %s786, 64, 64, 4
        $region64: #{bert_blend_cnn_forward.1} parent=31 // pred_fallthru
          _
        // Predicated region
        $region65: #{bert_blend_cnn_forward.1} parent=31 // pred_check
          %p803 = pneg %p283
        $region66: #{bert_blend_cnn_forward.1} parent=31 // pred_check_branch
          %805 = sbr.rel (%p803) target = $region68
        $region67: #{bert_blend_cnn_forward.1} parent=31 // pred_region
          %p806 = scmp.lt.s32.totalorder %s51, 11
          %s807 = scalar_select %p806, %s51, 11
          %s808 = scalar_lea.vmem %s8, %s807
        $region68: #{bert_blend_cnn_forward.1} parent=31 // pred_fallthru
          _
        // Predicated region
        $region69: #{bert_blend_cnn_forward.1} parent=31 // pred_check
          %p809 = pneg %p309
        $region70: #{bert_blend_cnn_forward.1} parent=31 // pred_check_branch
          %811 = sbr.rel (%p809) target = $region72
        $region71: #{bert_blend_cnn_forward.1} parent=31 // pred_region
          %p812 = scmp.lt.s32.totalorder %s51, 11
          %s813 = scalar_select %p812, %s51, 11
          %s814 = scalar_lea.vmem %s9, %s813
        $region72: #{bert_blend_cnn_forward.1} parent=31 // pred_fallthru
          _
        // Predicated region
        $region73: #{bert_blend_cnn_forward.1} parent=31 // pred_check
          %p815 = pneg %p335
        $region74: #{bert_blend_cnn_forward.1} parent=31 // pred_check_branch
          %817 = sbr.rel (%p815) target = $region76
        $region75: #{bert_blend_cnn_forward.1} parent=31 // pred_region
          %p818 = scmp.lt.s32.totalorder %s51, 11
          %s819 = scalar_select %p818, %s51, 11
          %s820 = scalar_lea.vmem %s10, %s819
        $region76: #{bert_blend_cnn_forward.1} parent=31 // pred_fallthru
          _
        // Predicated region
        $region77: #{bert_blend_cnn_forward.1} parent=31 // pred_check
          %p821 = pneg %p361
        $region78: #{bert_blend_cnn_forward.1} parent=31 // pred_check_branch
          %823 = sbr.rel (%p821) target = $region80
        $region79: #{bert_blend_cnn_forward.1} parent=31 // pred_region
          %p824 = scmp.lt.s32.totalorder %s51, 11
          %s825 = scalar_select %p824, %s51, 11
          %s826 = scalar_lea.vmem %s11, %s825
        $region80: #{bert_blend_cnn_forward.1} parent=31 // pred_fallthru
          _
        // Predicated region
        $region81: #{bert_blend_cnn_forward.1} parent=31 // pred_check
          %p827 = pneg %p387
        $region82: #{bert_blend_cnn_forward.1} parent=31 // pred_check_branch
          %829 = sbr.rel (%p827) target = $region84
        $region83: #{bert_blend_cnn_forward.1} parent=31 // pred_region
          %p830 = scmp.lt.s32.totalorder %s51, 11
          %s831 = scalar_select %p830, %s51, 11
          %s832 = scalar_lea.vmem %s12, %s831
        $region84: #{bert_blend_cnn_forward.1} parent=31 // pred_fallthru
          _
        // Predicated region
        $region85: #{bert_blend_cnn_forward.1} parent=31 // pred_check
          %p833 = pneg %p413
        $region86: #{bert_blend_cnn_forward.1} parent=31 // pred_check_branch
          %835 = sbr.rel (%p833) target = $region88
        $region87: #{bert_blend_cnn_forward.1} parent=31 // pred_region
          %p836 = scmp.lt.s32.totalorder %s51, 11
          %s837 = scalar_select %p836, %s51, 11
          %s838 = scalar_lea.vmem %s13, %s837
        $region88: #{bert_blend_cnn_forward.1} parent=31 // pred_fallthru
          _
        // Predicated region
        $region89: #{bert_blend_cnn_forward.1} parent=31 // pred_check
          %p839 = pneg %p439
        $region90: #{bert_blend_cnn_forward.1} parent=31 // pred_check_branch
          %841 = sbr.rel (%p839) target = $region92
        $region91: #{bert_blend_cnn_forward.1} parent=31 // pred_region
          %p842 = scmp.lt.s32.totalorder %s51, 11
          %s843 = scalar_select %p842, %s51, 11
          %s844 = smul.addr %s843, 2
          %s845 = scalar_lea.vmem %s14, %s844
        $region92: #{bert_blend_cnn_forward.1} parent=31 // pred_fallthru
          _
        // Predicated region
        $region93: #{bert_blend_cnn_forward.1} parent=31 // pred_check
          %p846 = pneg %p465
        $region94: #{bert_blend_cnn_forward.1} parent=31 // pred_check_branch
          %848 = sbr.rel (%p846) target = $region96
        $region95: #{bert_blend_cnn_forward.1} parent=31 // pred_region
          %p849 = scmp.lt.s32.totalorder %s51, 11
          %s850 = scalar_select %p849, %s51, 11
          %s851 = scalar_lea.vmem %s15, %s850
        $region96: #{bert_blend_cnn_forward.1} parent=31 // pred_fallthru
          _
        // Predicated region
        $region97: #{bert_blend_cnn_forward.1} parent=31 // pred_check
          %p852 = pneg %p491
        $region98: #{bert_blend_cnn_forward.1} parent=31 // pred_check_branch
          %854 = sbr.rel (%p852) target = $region100
        $region99: #{bert_blend_cnn_forward.1} parent=31 // pred_region
          %p855 = scmp.lt.s32.totalorder %s51, 11
          %s856 = scalar_select %p855, %s51, 11
          %s857 = scalar_lea.vmem %s16, %s856
        $region100: #{bert_blend_cnn_forward.1} parent=31 // pred_fallthru
          _
        // Predicated region
        $region101: #{bert_blend_cnn_forward.1} parent=31 // pred_check
          %p858 = pneg %p517
        $region102: #{bert_blend_cnn_forward.1} parent=31 // pred_check_branch
          %860 = sbr.rel (%p858) target = $region104
        $region103: #{bert_blend_cnn_forward.1} parent=31 // pred_region
          %p861 = scmp.lt.s32.totalorder %s51, 11
          %s862 = scalar_select %p861, %s51, 11
          %s863 = scalar_lea.vmem %s17, %s862
        $region104: #{bert_blend_cnn_forward.1} parent=31 // pred_fallthru
          _
      $region32: #{bert_blend_cnn_forward.1} parent=5 // pred_fallthru
        _
      %p864 = scmp.le.s32.totalorder 1, %s43
      %p865 = scmp.lt.s32.totalorder %s43, 25
      %p866 = pnand %p864, %p865
      %p867 = pneg %p866
      // Predicated region
      $region105: #{bert_blend_cnn_forward.1} parent=5 // pred_check
        _
      $region106: #{bert_blend_cnn_forward.1} parent=5 // pred_check_branch
        %869 = sbr.rel (%p866) target = $region108
      $region107: #{bert_blend_cnn_forward.1} parent=5 // pred_region
        %s870 = ssub.s32 %s43, 1
        %s871 = sand.u32 %s120, 1
        %s872 = scalar_lea.sflag [#allocation5], %s871
        %s873 = sand.u32 %s120, 1
        %s874 = smul.addr %s873, 64
        %s875 = scalar_lea.vmem [#allocation4], %s874
        // Predicated region
        $region109: #{bert_blend_cnn_forward.1} parent=107 // pred_check
          %p876 = pneg %p133
        $region110: #{bert_blend_cnn_forward.1} parent=107 // pred_check_branch
          %878 = sbr.rel (%p876) target = $region112
        $region111: #{bert_blend_cnn_forward.1} parent=107 // pred_region
          %879 = dma.done %s872, 1024
        $region112: #{bert_blend_cnn_forward.1} parent=107 // pred_fallthru
          _
        %s880 = sand.u32 %s48, 1
        %s881 = scalar_lea.sflag [#allocation8], %s880
        %s882 = sand.u32 %s146, 1
        %s883 = smul.addr %s882, 64
        %s884 = scalar_lea.vmem [#allocation7], %s883
        // Predicated region
        $region113: #{bert_blend_cnn_forward.1} parent=107 // pred_check
          %p885 = pneg %p159
        $region114: #{bert_blend_cnn_forward.1} parent=107 // pred_check_branch
          %887 = sbr.rel (%p885) target = $region116
        $region115: #{bert_blend_cnn_forward.1} parent=107 // pred_region
          %888 = dma.done %s881, 1024
        $region116: #{bert_blend_cnn_forward.1} parent=107 // pred_fallthru
          _
        %s889 = sand.u32 %s48, 1
        %s890 = scalar_lea.sflag [#allocation8], %s889
        %s891 = sand.u32 %s172, 1
        %s892 = smul.addr %s891, 64
        %s893 = scalar_lea.vmem [#allocation9], %s892
        // Predicated region
        $region117: #{bert_blend_cnn_forward.1} parent=107 // pred_check
          %p894 = pneg %p185
        $region118: #{bert_blend_cnn_forward.1} parent=107 // pred_check_branch
          %896 = sbr.rel (%p894) target = $region120
        $region119: #{bert_blend_cnn_forward.1} parent=107 // pred_region
          %897 = dma.done %s890, 1024
        $region120: #{bert_blend_cnn_forward.1} parent=107 // pred_fallthru
          _
        %s898 = sand.u32 %s48, 1
        %s899 = scalar_lea.sflag [#allocation11], %s898
        %s900 = sand.u32 %s198, 1
        %s901 = smul.addr %s900, 64
        %s902 = scalar_lea.vmem [#allocation10], %s901
        // Predicated region
        $region121: #{bert_blend_cnn_forward.1} parent=107 // pred_check
          %p903 = pneg %p211
        $region122: #{bert_blend_cnn_forward.1} parent=107 // pred_check_branch
          %905 = sbr.rel (%p903) target = $region124
        $region123: #{bert_blend_cnn_forward.1} parent=107 // pred_region
          %906 = dma.done %s899, 1024
        $region124: #{bert_blend_cnn_forward.1} parent=107 // pred_fallthru
          _
        %s907 = sand.u32 %s48, 1
        %s908 = scalar_lea.sflag [#allocation11], %s907
        %s909 = sand.u32 %s224, 1
        %s910 = smul.addr %s909, 128
        %s911 = scalar_lea.vmem [#allocation12], %s910
        // Predicated region
        $region125: #{bert_blend_cnn_forward.1} parent=107 // pred_check
          %p912 = pneg %p237
        $region126: #{bert_blend_cnn_forward.1} parent=107 // pred_check_branch
          %914 = sbr.rel (%p912) target = $region128
        $region127: #{bert_blend_cnn_forward.1} parent=107 // pred_region
          %915 = dma.done %s908, 2048
        $region128: #{bert_blend_cnn_forward.1} parent=107 // pred_fallthru
          _
        %s916 = sand.u32 %s250, 1
        %s917 = scalar_lea.sflag [#allocation14], %s916
        %s918 = sand.u32 %s250, 1
        %s919 = smul.addr %s918, 128
        %s920 = scalar_lea.vmem [#allocation13], %s919
        // Predicated region
        $region129: #{bert_blend_cnn_forward.1} parent=107 // pred_check
          %p921 = pneg %p263
        $region130: #{bert_blend_cnn_forward.1} parent=107 // pred_check_branch
          %923 = sbr.rel (%p921) target = $region132
        $region131: #{bert_blend_cnn_forward.1} parent=107 // pred_region
          %924 = dma.done %s917, 2048
        $region132: #{bert_blend_cnn_forward.1} parent=107 // pred_fallthru
          _
        %p925 = scmp.lt.s32.totalorder %s52, 1
        %s926 = scalar_select %p925, %s52, 1
        %s927 = smul.addr %s926, 8
        %s928 = scalar_lea.vmem %s0, %s927
        %p929 = pneg %p81
        %p930 = pneg %p78
        %p931 = scmp.lt.s32.totalorder %s52, 1
        %s932 = scalar_select %p931, %s52, 1
        %s933 = scalar_lea.vmem %s1, %s932
        %p934 = pneg %p107
        %p935 = pneg %p104
        %s936 = sand.u32 %s120, 1
        %s937 = scalar_lea.sflag [#allocation5], %s936
        %s938 = sand.u32 %s120, 1
        %s939 = smul.addr %s938, 64
        %s940 = scalar_lea.vmem [#allocation4], %s939
        %p941 = pneg %p133
        %p942 = pneg %p130
        %s943 = sand.u32 %s48, 1
        %s944 = scalar_lea.sflag [#allocation8], %s943
        %s945 = sand.u32 %s146, 1
        %s946 = smul.addr %s945, 64
        %s947 = scalar_lea.vmem [#allocation7], %s946
        %p948 = pneg %p159
        %p949 = pneg %p156
        %s950 = sand.u32 %s48, 1
        %s951 = scalar_lea.sflag [#allocation8], %s950
        %s952 = sand.u32 %s172, 1
        %s953 = smul.addr %s952, 64
        %s954 = scalar_lea.vmem [#allocation9], %s953
        %p955 = pneg %p185
        %p956 = pneg %p182
        %s957 = sand.u32 %s48, 1
        %s958 = scalar_lea.sflag [#allocation11], %s957
        %s959 = sand.u32 %s198, 1
        %s960 = smul.addr %s959, 64
        %s961 = scalar_lea.vmem [#allocation10], %s960
        %p962 = pneg %p211
        %p963 = pneg %p208
        %s964 = sand.u32 %s48, 1
        %s965 = scalar_lea.sflag [#allocation11], %s964
        %s966 = sand.u32 %s224, 1
        %s967 = smul.addr %s966, 128
        %s968 = scalar_lea.vmem [#allocation12], %s967
        %p969 = pneg %p237
        %p970 = pneg %p234
        %s971 = sand.u32 %s250, 1
        %s972 = scalar_lea.sflag [#allocation14], %s971
        %s973 = sand.u32 %s250, 1
        %s974 = smul.addr %s973, 128
        %s975 = scalar_lea.vmem [#allocation13], %s974
        %p976 = pneg %p263
        %p977 = pneg %p260
        %p978 = scmp.lt.s32.totalorder %s53, 11
        %s979 = scalar_select %p978, %s53, 11
        %s980 = scalar_lea.vmem %s8, %s979
        %p981 = pneg %p289
        %p982 = pneg %p286
        %p983 = scmp.lt.s32.totalorder %s53, 11
        %s984 = scalar_select %p983, %s53, 11
        %s985 = scalar_lea.vmem %s9, %s984
        %p986 = pneg %p315
        %p987 = pneg %p312
        %p988 = scmp.lt.s32.totalorder %s53, 11
        %s989 = scalar_select %p988, %s53, 11
        %s990 = scalar_lea.vmem %s10, %s989
        %p991 = pneg %p341
        %p992 = pneg %p338
        %p993 = scmp.lt.s32.totalorder %s53, 11
        %s994 = scalar_select %p993, %s53, 11
        %s995 = scalar_lea.vmem %s11, %s994
        %p996 = pneg %p367
        %p997 = pneg %p364
        %p998 = scmp.lt.s32.totalorder %s53, 11
        %s999 = scalar_select %p998, %s53, 11
        %s1000 = scalar_lea.vmem %s12, %s999
        %p1001 = pneg %p393
        %p1002 = pneg %p390
        %p1003 = scmp.lt.s32.totalorder %s53, 11
        %s1004 = scalar_select %p1003, %s53, 11
        %s1005 = scalar_lea.vmem %s13, %s1004
        %p1006 = pneg %p419
        %p1007 = pneg %p416
        %p1008 = scmp.lt.s32.totalorder %s53, 11
        %s1009 = scalar_select %p1008, %s53, 11
        %s1010 = smul.addr %s1009, 2
        %s1011 = scalar_lea.vmem %s14, %s1010
        %p1012 = pneg %p445
        %p1013 = pneg %p442
        %p1014 = scmp.lt.s32.totalorder %s53, 11
        %s1015 = scalar_select %p1014, %s53, 11
        %s1016 = scalar_lea.vmem %s15, %s1015
        %p1017 = pneg %p471
        %p1018 = pneg %p468
        %p1019 = scmp.lt.s32.totalorder %s53, 11
        %s1020 = scalar_select %p1019, %s53, 11
        %s1021 = scalar_lea.vmem %s16, %s1020
        %p1022 = pneg %p497
        %p1023 = pneg %p494
        %p1024 = scmp.lt.s32.totalorder %s53, 11
        %s1025 = scalar_select %p1024, %s53, 11
        %s1026 = scalar_lea.vmem %s17, %s1025
        %p1027 = pneg %p523
        %p1028 = pneg %p520
        %p1029 = pneg %p544
        %p1030 = pneg %p541
        %p1031 = pneg %p565
        %p1032 = pneg %p562
        %p1033 = pneg %p586
        %p1034 = pneg %p583
        %p1035 = pneg %p607
        %p1036 = pneg %p604
        %p1037 = pneg %p633
        %p1038 = pneg %p630
        %s1039 = sand.u32 %s620, 1
        %s1040 = scalar_lea.sflag [#allocation6], %s1039
        %s1041 = sand.u32 %s620, 1
        %s1042 = scalar_lea.vmem [#allocation15], %s1041
        %p1043 = scmp.lt.s32.totalorder %s52, 1
        %s1044 = scalar_select %p1043, %s52, 1
        %s1045 = smul.addr %s1044, 8
        %s1046 = scalar_lea.vmem %s0, %s1045
        %p1047 = scmp.lt.s32.totalorder %s52, 1
        %s1048 = scalar_select %p1047, %s52, 1
        %s1049 = scalar_lea.vmem %s1, %s1048
        %p1050 = scmp.lt.s32.totalorder %s53, 11
        %s1051 = scalar_select %p1050, %s53, 11
        %s1052 = scalar_lea.vmem %s8, %s1051
        %p1053 = scmp.lt.s32.totalorder %s53, 11
        %s1054 = scalar_select %p1053, %s53, 11
        %s1055 = scalar_lea.vmem %s9, %s1054
        %p1056 = scmp.lt.s32.totalorder %s53, 11
        %s1057 = scalar_select %p1056, %s53, 11
        %s1058 = scalar_lea.vmem %s10, %s1057
        %p1059 = scmp.lt.s32.totalorder %s53, 11
        %s1060 = scalar_select %p1059, %s53, 11
        %s1061 = scalar_lea.vmem %s11, %s1060
        %p1062 = scmp.lt.s32.totalorder %s53, 11
        %s1063 = scalar_select %p1062, %s53, 11
        %s1064 = scalar_lea.vmem %s12, %s1063
        %p1065 = scmp.lt.s32.totalorder %s53, 11
        %s1066 = scalar_select %p1065, %s53, 11
        %s1067 = scalar_lea.vmem %s13, %s1066
        %p1068 = scmp.lt.s32.totalorder %s53, 11
        %s1069 = scalar_select %p1068, %s53, 11
        %s1070 = smul.addr %s1069, 2
        %s1071 = scalar_lea.vmem %s14, %s1070
        %p1072 = scmp.lt.s32.totalorder %s53, 11
        %s1073 = scalar_select %p1072, %s53, 11
        %s1074 = scalar_lea.vmem %s15, %s1073
        %p1075 = scmp.lt.s32.totalorder %s53, 11
        %s1076 = scalar_select %p1075, %s53, 11
        %s1077 = scalar_lea.vmem %s16, %s1076
        %p1078 = scmp.lt.s32.totalorder %s53, 11
        %s1079 = scalar_select %p1078, %s53, 11
        %s1080 = scalar_lea.vmem %s17, %s1079
        %p1082 = scmp.eq.s32.totalorder %s53, 0
        // Predicated region
        $region133: #{bert_blend_cnn_forward.1} parent=107 // pred_check
          %p1083 = pneg %p1082
        $region134: #{bert_blend_cnn_forward.1} parent=107 // pred_check_branch
          %1085 = sbr.rel (%p1083) target = $region136
        $region135: #{bert_blend_cnn_forward.1} parent=107 // pred_region
          %v1086 = vld [vmem:[%s1046] sm:$0xff]
          %1087 = vst [vmem:[#allocation2] sm:$0xff] %v1086
        $region136: #{bert_blend_cnn_forward.1} parent=107 // pred_fallthru
          _
        %v1088 = vld [vmem:[#allocation2] sm:$0xff]
        %v1089 = vld [vmem:[%s1049] sm:$0x1]
        %v1090 = vpack.c.bf16 %v1088, %v1088
        %v1091 = vld [vmem:[%s875] sm:$0xf]
        %v1092 = vld [vmem:[%s875 + $0x4] sm:$0xf]
        %v1093 = vld [vmem:[%s875 + $0x8] sm:$0xf]
        %v1094 = vld [vmem:[%s875 + $0xc] sm:$0xf]
        %v1095 = vld [vmem:[%s875 + $0x10] sm:$0xf]
        %v1096 = vld [vmem:[%s875 + $0x14] sm:$0xf]
        %v1097 = vld [vmem:[%s875 + $0x18] sm:$0xf]
        %v1098 = vld [vmem:[%s875 + $0x1c] sm:$0xf]
        %v1099 = vld [vmem:[%s875 + $0x20] sm:$0xf]
        %v1100 = vld [vmem:[%s875 + $0x24] sm:$0xf]
        %v1101 = vld [vmem:[%s875 + $0x28] sm:$0xf]
        %v1102 = vld [vmem:[%s875 + $0x2c] sm:$0xf]
        %v1103 = vld [vmem:[%s875 + $0x30] sm:$0xf]
        %v1104 = vld [vmem:[%s875 + $0x34] sm:$0xf]
        %v1105 = vld [vmem:[%s875 + $0x38] sm:$0xf]
        %v1106 = vld [vmem:[%s875 + $0x3c] sm:$0xf]
        %v1107 = vld [vmem:[%s1052] sm:$0x1]
        %v1109 = vlaneseq
        %v1110 = vshrl.u32 %v1109, 7
        %v1111 = vsub.s32 0, %v1110
        %v1112 = vrot.slane %v1107, %v1111
        %v1130 = vunpack.c.l.b16 %v1091
        %v1131 = vunpack.c.l.b16 %v1092
        %v1132 = vunpack.c.l.b16 %v1093
        %v1133 = vunpack.c.l.b16 %v1094
        %v1134 = vunpack.c.l.b16 %v1095
        %v1135 = vunpack.c.l.b16 %v1096
        %v1136 = vunpack.c.l.b16 %v1097
        %v1137 = vunpack.c.l.b16 %v1098
        %v1138 = vunpack.c.l.b16 %v1099
        %v1139 = vunpack.c.l.b16 %v1100
        %v1140 = vunpack.c.l.b16 %v1101
        %v1141 = vunpack.c.l.b16 %v1102
        %v1142 = vunpack.c.l.b16 %v1103
        %v1143 = vunpack.c.l.b16 %v1104
        %v1144 = vunpack.c.l.b16 %v1105
        %v1145 = vunpack.c.l.b16 %v1106
        %v1146 = vpack.c.b16 %v1131, %v1130
        %v1147 = vpack.c.b16 %v1133, %v1132
        %v1148 = vpack.c.b16 %v1135, %v1134
        %v1149 = vpack.c.b16 %v1137, %v1136
        %v1150 = vpack.c.b16 %v1139, %v1138
        %v1151 = vpack.c.b16 %v1141, %v1140
        %v1152 = vpack.c.b16 %v1143, %v1142
        %v1153 = vpack.c.b16 %v1145, %v1144
        %1162 = vmatprep.subr.bf16.mxu0 0
        %1163 = vmatpush1.bf16.msra.mxu0 %v1146
        %1164 = vmatprep.subr.bf16.mxu0 0
        %1165 = vmatpush1.bf16.msra.mxu0 %v1147
        %1166 = vmatprep.subr.bf16.mxu0 0
        %1167 = vmatpush1.bf16.msra.mxu0 %v1148
        %1168 = vmatprep.subr.bf16.mxu0 0
        %1169 = vmatpush1.bf16.msra.mxu0 %v1149
        %1170 = vmatprep.subr.bf16.mxu0 0
        %1171 = vmatpush1.bf16.msra.mxu0 %v1150
        %1172 = vmatprep.subr.bf16.mxu0 0
        %1173 = vmatpush1.bf16.msra.mxu0 %v1151
        %1174 = vmatprep.subr.bf16.mxu0 0
        %1175 = vmatpush1.bf16.msra.mxu0 %v1152
        %1176 = vmatprep.subr.bf16.mxu0 0
        %1177 = vmatpush1.bf16.msra.mxu0 %v1153
        %1178 = vmatprep.subr.bf16.mxu0 0
        %1179 = vmatpush1.bf16.msra.mxu0 0
        %1180 = vmatprep.subr.bf16.mxu0 0
        %1181 = vmatpush1.bf16.msra.mxu0 0
        %1182 = vmatprep.subr.bf16.mxu0 0
        %1183 = vmatpush1.bf16.msra.mxu0 0
        %1184 = vmatprep.subr.bf16.mxu0 0
        %1185 = vmatpush1.bf16.msra.mxu0 0
        %1186 = vmatprep.subr.bf16.mxu0 0
        %1187 = vmatpush1.bf16.msra.mxu0 0
        %1188 = vmatprep.subr.bf16.mxu0 0
        %1189 = vmatpush1.bf16.msra.mxu0 0
        %1190 = vmatprep.subr.bf16.mxu0 0
        %1191 = vmatpush1.bf16.msra.mxu0 0
        %1192 = vmatprep.subr.bf16.mxu0 0
        %1193 = vmatpush1.bf16.msra.mxu0 0
        %1194 = vmatprep.mubr.bf16.mxu0 0
        %1195 = vmatmul.mubr.bf16.gmra.mrb[0].mxu0 %v1090
        %v1196 = vpop.f32.mrb[0].mxu0
        %v1197 = vadd.f32 %v1112, %v1196
        %v1198 = vpop.f32.mrb[0].mxu0
        %v1199 = vpop.f32.mrb[0].mxu0
        %v1200 = vpop.f32.mrb[0].mxu0
        %1201 = vdwg.mxu0
        %v1202 = vld [vmem:[%s884] sm:$0xf]
        %v1203 = vld [vmem:[%s884 + $0x4] sm:$0xf]
        %v1204 = vld [vmem:[%s884 + $0x8] sm:$0xf]
        %v1205 = vld [vmem:[%s884 + $0xc] sm:$0xf]
        %v1206 = vld [vmem:[%s884 + $0x10] sm:$0xf]
        %v1207 = vld [vmem:[%s884 + $0x14] sm:$0xf]
        %v1208 = vld [vmem:[%s884 + $0x18] sm:$0xf]
        %v1209 = vld [vmem:[%s884 + $0x1c] sm:$0xf]
        %v1210 = vld [vmem:[%s884 + $0x20] sm:$0xf]
        %v1211 = vld [vmem:[%s884 + $0x24] sm:$0xf]
        %v1212 = vld [vmem:[%s884 + $0x28] sm:$0xf]
        %v1213 = vld [vmem:[%s884 + $0x2c] sm:$0xf]
        %v1214 = vld [vmem:[%s884 + $0x30] sm:$0xf]
        %v1215 = vld [vmem:[%s884 + $0x34] sm:$0xf]
        %v1216 = vld [vmem:[%s884 + $0x38] sm:$0xf]
        %v1217 = vld [vmem:[%s884 + $0x3c] sm:$0xf]
        %v1218 = vld [vmem:[%s1055] sm:$0x1]
        %v1220 = vlaneseq
        %v1221 = vshrl.u32 %v1220, 7
        %v1222 = vsub.s32 0, %v1221
        %v1223 = vrot.slane %v1218, %v1222
        %v1241 = vunpack.c.l.b16 %v1202
        %v1242 = vunpack.c.l.b16 %v1203
        %v1243 = vunpack.c.l.b16 %v1204
        %v1244 = vunpack.c.l.b16 %v1205
        %v1245 = vunpack.c.l.b16 %v1206
        %v1246 = vunpack.c.l.b16 %v1207
        %v1247 = vunpack.c.l.b16 %v1208
        %v1248 = vunpack.c.l.b16 %v1209
        %v1249 = vunpack.c.l.b16 %v1210
        %v1250 = vunpack.c.l.b16 %v1211
        %v1251 = vunpack.c.l.b16 %v1212
        %v1252 = vunpack.c.l.b16 %v1213
        %v1253 = vunpack.c.l.b16 %v1214
        %v1254 = vunpack.c.l.b16 %v1215
        %v1255 = vunpack.c.l.b16 %v1216
        %v1256 = vunpack.c.l.b16 %v1217
        %v1257 = vpack.c.b16 %v1242, %v1241
        %v1258 = vpack.c.b16 %v1244, %v1243
        %v1259 = vpack.c.b16 %v1246, %v1245
        %v1260 = vpack.c.b16 %v1248, %v1247
        %v1261 = vpack.c.b16 %v1250, %v1249
        %v1262 = vpack.c.b16 %v1252, %v1251
        %v1263 = vpack.c.b16 %v1254, %v1253
        %v1264 = vpack.c.b16 %v1256, %v1255
        %1273 = vmatprep.subr.bf16.mxu0 0
        %1274 = vmatpush1.bf16.msra.mxu0 %v1257
        %1275 = vmatprep.subr.bf16.mxu0 0
        %1276 = vmatpush1.bf16.msra.mxu0 %v1258
        %1277 = vmatprep.subr.bf16.mxu0 0
        %1278 = vmatpush1.bf16.msra.mxu0 %v1259
        %1279 = vmatprep.subr.bf16.mxu0 0
        %1280 = vmatpush1.bf16.msra.mxu0 %v1260
        %1281 = vmatprep.subr.bf16.mxu0 0
        %1282 = vmatpush1.bf16.msra.mxu0 %v1261
        %1283 = vmatprep.subr.bf16.mxu0 0
        %1284 = vmatpush1.bf16.msra.mxu0 %v1262
        %1285 = vmatprep.subr.bf16.mxu0 0
        %1286 = vmatpush1.bf16.msra.mxu0 %v1263
        %1287 = vmatprep.subr.bf16.mxu0 0
        %1288 = vmatpush1.bf16.msra.mxu0 %v1264
        %1289 = vmatprep.subr.bf16.mxu0 0
        %1290 = vmatpush1.bf16.msra.mxu0 0
        %1291 = vmatprep.subr.bf16.mxu0 0
        %1292 = vmatpush1.bf16.msra.mxu0 0
        %1293 = vmatprep.subr.bf16.mxu0 0
        %1294 = vmatpush1.bf16.msra.mxu0 0
        %1295 = vmatprep.subr.bf16.mxu0 0
        %1296 = vmatpush1.bf16.msra.mxu0 0
        %1297 = vmatprep.subr.bf16.mxu0 0
        %1298 = vmatpush1.bf16.msra.mxu0 0
        %1299 = vmatprep.subr.bf16.mxu0 0
        %1300 = vmatpush1.bf16.msra.mxu0 0
        %1301 = vmatprep.subr.bf16.mxu0 0
        %1302 = vmatpush1.bf16.msra.mxu0 0
        %1303 = vmatprep.subr.bf16.mxu0 0
        %1304 = vmatpush1.bf16.msra.mxu0 0
        %1305 = vmatprep.mubr.bf16.mxu0 0
        %1306 = vmatmul.mubr.bf16.gmra.mrb[0].mxu0 %v1090
        %v1307 = vpop.f32.mrb[0].mxu0
        %v1308 = vadd.f32 %v1223, %v1307
        %v1309 = vpop.f32.mrb[0].mxu0
        %v1310 = vpop.f32.mrb[0].mxu0
        %v1311 = vpop.f32.mrb[0].mxu0
        %1312 = vdwg.mxu0
        %v1313 = vld [vmem:[%s893] sm:$0xf]
        %v1314 = vld [vmem:[%s893 + $0x4] sm:$0xf]
        %v1315 = vld [vmem:[%s893 + $0x8] sm:$0xf]
        %v1316 = vld [vmem:[%s893 + $0xc] sm:$0xf]
        %v1317 = vld [vmem:[%s893 + $0x10] sm:$0xf]
        %v1318 = vld [vmem:[%s893 + $0x14] sm:$0xf]
        %v1319 = vld [vmem:[%s893 + $0x18] sm:$0xf]
        %v1320 = vld [vmem:[%s893 + $0x1c] sm:$0xf]
        %v1321 = vld [vmem:[%s893 + $0x20] sm:$0xf]
        %v1322 = vld [vmem:[%s893 + $0x24] sm:$0xf]
        %v1323 = vld [vmem:[%s893 + $0x28] sm:$0xf]
        %v1324 = vld [vmem:[%s893 + $0x2c] sm:$0xf]
        %v1325 = vld [vmem:[%s893 + $0x30] sm:$0xf]
        %v1326 = vld [vmem:[%s893 + $0x34] sm:$0xf]
        %v1327 = vld [vmem:[%s893 + $0x38] sm:$0xf]
        %v1328 = vld [vmem:[%s893 + $0x3c] sm:$0xf]
        %v1329 = vld [vmem:[%s1058] sm:$0x1]
        %v1331 = vlaneseq
        %v1332 = vshrl.u32 %v1331, 7
        %v1333 = vsub.s32 0, %v1332
        %v1334 = vrot.slane %v1329, %v1333
        %v1352 = vunpack.c.l.b16 %v1313
        %v1353 = vunpack.c.l.b16 %v1314
        %v1354 = vunpack.c.l.b16 %v1315
        %v1355 = vunpack.c.l.b16 %v1316
        %v1356 = vunpack.c.l.b16 %v1317
        %v1357 = vunpack.c.l.b16 %v1318
        %v1358 = vunpack.c.l.b16 %v1319
        %v1359 = vunpack.c.l.b16 %v1320
        %v1360 = vunpack.c.l.b16 %v1321
        %v1361 = vunpack.c.l.b16 %v1322
        %v1362 = vunpack.c.l.b16 %v1323
        %v1363 = vunpack.c.l.b16 %v1324
        %v1364 = vunpack.c.l.b16 %v1325
        %v1365 = vunpack.c.l.b16 %v1326
        %v1366 = vunpack.c.l.b16 %v1327
        %v1367 = vunpack.c.l.b16 %v1328
        %v1368 = vpack.c.b16 %v1353, %v1352
        %v1369 = vpack.c.b16 %v1355, %v1354
        %v1370 = vpack.c.b16 %v1357, %v1356
        %v1371 = vpack.c.b16 %v1359, %v1358
        %v1372 = vpack.c.b16 %v1361, %v1360
        %v1373 = vpack.c.b16 %v1363, %v1362
        %v1374 = vpack.c.b16 %v1365, %v1364
        %v1375 = vpack.c.b16 %v1367, %v1366
        %1384 = vmatprep.subr.bf16.mxu0 0
        %1385 = vmatpush1.bf16.msra.mxu0 %v1368
        %1386 = vmatprep.subr.bf16.mxu0 0
        %1387 = vmatpush1.bf16.msra.mxu0 %v1369
        %1388 = vmatprep.subr.bf16.mxu0 0
        %1389 = vmatpush1.bf16.msra.mxu0 %v1370
        %1390 = vmatprep.subr.bf16.mxu0 0
        %1391 = vmatpush1.bf16.msra.mxu0 %v1371
        %1392 = vmatprep.subr.bf16.mxu0 0
        %1393 = vmatpush1.bf16.msra.mxu0 %v1372
        %1394 = vmatprep.subr.bf16.mxu0 0
        %1395 = vmatpush1.bf16.msra.mxu0 %v1373
        %1396 = vmatprep.subr.bf16.mxu0 0
        %1397 = vmatpush1.bf16.msra.mxu0 %v1374
        %1398 = vmatprep.subr.bf16.mxu0 0
        %1399 = vmatpush1.bf16.msra.mxu0 %v1375
        %1400 = vmatprep.subr.bf16.mxu0 0
        %1401 = vmatpush1.bf16.msra.mxu0 0
        %1402 = vmatprep.subr.bf16.mxu0 0
        %1403 = vmatpush1.bf16.msra.mxu0 0
        %1404 = vmatprep.subr.bf16.mxu0 0
        %1405 = vmatpush1.bf16.msra.mxu0 0
        %1406 = vmatprep.subr.bf16.mxu0 0
        %1407 = vmatpush1.bf16.msra.mxu0 0
        %1408 = vmatprep.subr.bf16.mxu0 0
        %1409 = vmatpush1.bf16.msra.mxu0 0
        %1410 = vmatprep.subr.bf16.mxu0 0
        %1411 = vmatpush1.bf16.msra.mxu0 0
        %1412 = vmatprep.subr.bf16.mxu0 0
        %1413 = vmatpush1.bf16.msra.mxu0 0
        %1414 = vmatprep.subr.bf16.mxu0 0
        %1415 = vmatpush1.bf16.msra.mxu0 0
        %1416 = vmatprep.mubr.bf16.mxu0 0
        %1417 = vmatmul.mubr.bf16.gmra.mrb[0].mxu0 %v1090
        %v1418 = vpop.f32.mrb[0].mxu0
        %v1419 = vadd.f32 %v1334, %v1418
        %v1420 = vpop.f32.mrb[0].mxu0
        %v1421 = vpop.f32.mrb[0].mxu0
        %v1422 = vpop.f32.mrb[0].mxu0
        %1423 = vdwg.mxu0
        %v1424 = vpack.c.bf16 %v1197, %v1197
        %v1425 = vpack.c.bf16 %v1308, %v1308
        %v1426 = vpack.c.bf16 %v1419, %v1419
        %v1427 = vld [vmem:[%s902] sm:$0xf]
        %v1428 = vld [vmem:[%s902 + $0x4] sm:$0xf]
        %v1429 = vld [vmem:[%s902 + $0x8] sm:$0xf]
        %v1430 = vld [vmem:[%s902 + $0xc] sm:$0xf]
        %v1431 = vld [vmem:[%s902 + $0x10] sm:$0xf]
        %v1432 = vld [vmem:[%s902 + $0x14] sm:$0xf]
        %v1433 = vld [vmem:[%s902 + $0x18] sm:$0xf]
        %v1434 = vld [vmem:[%s902 + $0x1c] sm:$0xf]
        %v1435 = vld [vmem:[%s902 + $0x20] sm:$0xf]
        %v1436 = vld [vmem:[%s902 + $0x24] sm:$0xf]
        %v1437 = vld [vmem:[%s902 + $0x28] sm:$0xf]
        %v1438 = vld [vmem:[%s902 + $0x2c] sm:$0xf]
        %v1439 = vld [vmem:[%s902 + $0x30] sm:$0xf]
        %v1440 = vld [vmem:[%s902 + $0x34] sm:$0xf]
        %v1441 = vld [vmem:[%s902 + $0x38] sm:$0xf]
        %v1442 = vld [vmem:[%s902 + $0x3c] sm:$0xf]
        %v1443 = vld [vmem:[%s1061] sm:$0x1]
        %vm1444 = vcmask 523264
        %v1446 = vsel %vm1444, %v1424, 0
        %v1449 = vsel %vm1444, %v1425, 0
        %1451 = vmatprep.subr.bf16.mxu0 0
        %1452 = vmatpush1.bf16.xpose.msra.mxu0 %v1449
        %1453 = vmatprep.subr.bf16.mxu0 0
        %1454 = vmatpush1.bf16.xpose.msra.mxu0 0
        %1455 = vmatprep.subr.bf16.mxu0 0
        %1456 = vmatpush1.bf16.xpose.msra.mxu0 0
        %1457 = vmatprep.subr.bf16.mxu0 0
        %1458 = vmatpush1.bf16.xpose.msra.mxu0 0
        %1459 = vmatprep.subr.bf16.mxu0 0
        %1460 = vmatpush1.bf16.xpose.msra.mxu0 0
        %1461 = vmatprep.subr.bf16.mxu0 0
        %1462 = vmatpush1.bf16.xpose.msra.mxu0 0
        %1463 = vmatprep.subr.bf16.mxu0 0
        %1464 = vmatpush1.bf16.xpose.msra.mxu0 0
        %1465 = vmatprep.subr.bf16.mxu0 0
        %1466 = vmatpush1.bf16.xpose.msra.mxu0 0
        %1467 = vmatprep.subr.bf16.mxu0 0
        %1468 = vmatpush1.bf16.xpose.msra.mxu0 0
        %1469 = vmatprep.subr.bf16.mxu0 0
        %1470 = vmatpush1.bf16.xpose.msra.mxu0 0
        %1471 = vmatprep.subr.bf16.mxu0 0
        %1472 = vmatpush1.bf16.xpose.msra.mxu0 0
        %1473 = vmatprep.subr.bf16.mxu0 0
        %1474 = vmatpush1.bf16.xpose.msra.mxu0 0
        %1475 = vmatprep.subr.bf16.mxu0 0
        %1476 = vmatpush1.bf16.xpose.msra.mxu0 0
        %1477 = vmatprep.subr.bf16.mxu0 0
        %1478 = vmatpush1.bf16.xpose.msra.mxu0 0
        %1479 = vmatprep.subr.bf16.mxu0 0
        %1480 = vmatpush1.bf16.xpose.msra.mxu0 0
        %1481 = vmatprep.subr.bf16.mxu0 0
        %1482 = vmatpush1.bf16.xpose.msra.mxu0 0
        %1483 = vmatprep.mubr.bf16.mxu0 0
        %1484 = vmatmul.mubr.bf16.gmra.mrb[0].mxu0 %v1446
        %v1485 = vpop.f32.mrb[0].mxu0
        %v1486 = vadd.f32 0.0, %v1485
        %v1487 = vpop.f32.mrb[0].mxu0
        %v1488 = vpop.f32.mrb[0].mxu0
        %v1489 = vpop.f32.mrb[0].mxu0
        %1490 = vdwg.mxu0
        %v1491 = vmul.f32 %v1486, 0.125
        %v1493 = vlaneseq
        %v1494 = vshrl.u32 %v1493, 7
        %v1495 = vsub.s32 0, %v1494
        %v1496 = vrot.slane %v1089, %v1495
        %v1498 = vadd.f32 %v1491, %v1496
        %vm1499 = vcmask 64512
        %v1500 = vsel %vm1499, %v1498, -inf
        %1501 = vmax.xlane.f32.xlu0 %v1500
        %v1502 = vpop.xlane.xlu0 %1501
        %v1503 = vsub.f32 %v1498, %v1502
        %v1504 = vmul.f32 %v1503, 1.442695
        %v1505 = vpow.pop %v1504
        %v1506 = vsel %vm1499, %v1505, 0.0
        %1507 = vadd.xlane.f32.xlu0 %v1506
        %v1508 = vpop.xlane.xlu0 %1507
        %v1509 = vrcp.pop %v1508
        %v1510 = vmul.f32 %v1505, %v1509
        %v1511 = vpack.c.bf16 %v1510, %v1510
        %v1513 = vsel %vm1499, %v1511, 0
        %vm1515 = vcmask 1043456
        %v1517 = vsel %vm1515, %v1426, 0
        %1519 = vmatprep.subr.bf16.mxu0 0
        %1520 = vmatpush1.bf16.msra.mxu0 %v1517
        %1521 = vmatprep.subr.bf16.mxu0 0
        %1522 = vmatpush1.bf16.msra.mxu0 0
        %1523 = vmatprep.subr.bf16.mxu0 0
        %1524 = vmatpush1.bf16.msra.mxu0 0
        %1525 = vmatprep.subr.bf16.mxu0 0
        %1526 = vmatpush1.bf16.msra.mxu0 0
        %1527 = vmatprep.subr.bf16.mxu0 0
        %1528 = vmatpush1.bf16.msra.mxu0 0
        %1529 = vmatprep.subr.bf16.mxu0 0
        %1530 = vmatpush1.bf16.msra.mxu0 0
        %1531 = vmatprep.subr.bf16.mxu0 0
        %1532 = vmatpush1.bf16.msra.mxu0 0
        %1533 = vmatprep.subr.bf16.mxu0 0
        %1534 = vmatpush1.bf16.msra.mxu0 0
        %1535 = vmatprep.subr.bf16.mxu0 0
        %1536 = vmatpush1.bf16.msra.mxu0 0
        %1537 = vmatprep.subr.bf16.mxu0 0
        %1538 = vmatpush1.bf16.msra.mxu0 0
        %1539 = vmatprep.subr.bf16.mxu0 0
        %1540 = vmatpush1.bf16.msra.mxu0 0
        %1541 = vmatprep.subr.bf16.mxu0 0
        %1542 = vmatpush1.bf16.msra.mxu0 0
        %1543 = vmatprep.subr.bf16.mxu0 0
        %1544 = vmatpush1.bf16.msra.mxu0 0
        %1545 = vmatprep.subr.bf16.mxu0 0
        %1546 = vmatpush1.bf16.msra.mxu0 0
        %1547 = vmatprep.subr.bf16.mxu0 0
        %1548 = vmatpush1.bf16.msra.mxu0 0
        %1549 = vmatprep.subr.bf16.mxu0 0
        %1550 = vmatpush1.bf16.msra.mxu0 0
        %1551 = vmatprep.mubr.bf16.mxu0 0
        %1552 = vmatmul.mubr.bf16.gmra.mrb[0].mxu0 %v1513
        %v1553 = vpop.f32.mrb[0].mxu0
        %v1554 = vadd.f32 0.0, %v1553
        %v1555 = vpop.f32.mrb[0].mxu0
        %v1556 = vpop.f32.mrb[0].mxu0
        %v1557 = vpop.f32.mrb[0].mxu0
        %1558 = vdwg.mxu0
        %v1559 = vpack.c.bf16 %v1554, %v1554
        %v1568 = vunpack.c.l.b16 %v1427
        %v1569 = vunpack.c.l.b16 %v1428
        %v1570 = vunpack.c.l.b16 %v1429
        %v1571 = vunpack.c.l.b16 %v1430
        %v1572 = vunpack.c.l.b16 %v1431
        %v1573 = vunpack.c.l.b16 %v1432
        %v1574 = vunpack.c.l.b16 %v1433
        %v1575 = vunpack.c.l.b16 %v1434
        %v1576 = vpack.c.b16 %v1569, %v1568
        %v1577 = vpack.c.b16 %v1571, %v1570
        %v1578 = vpack.c.b16 %v1573, %v1572
        %v1579 = vpack.c.b16 %v1575, %v1574
        %v1585 = vsel %vm1444, %v1559, 0
        %1587 = vmatprep.subr.bf16.mxu0 0
        %1588 = vmatpush1.bf16.msra.mxu0 %v1576
        %1589 = vmatprep.subr.bf16.mxu0 0
        %1590 = vmatpush1.bf16.msra.mxu0 %v1577
        %1591 = vmatprep.subr.bf16.mxu0 0
        %1592 = vmatpush1.bf16.msra.mxu0 %v1578
        %1593 = vmatprep.subr.bf16.mxu0 0
        %1594 = vmatpush1.bf16.msra.mxu0 %v1579
        %1595 = vmatprep.subr.bf16.mxu0 0
        %1596 = vmatpush1.bf16.msra.mxu0 0
        %1597 = vmatprep.subr.bf16.mxu0 0
        %1598 = vmatpush1.bf16.msra.mxu0 0
        %1599 = vmatprep.subr.bf16.mxu0 0
        %1600 = vmatpush1.bf16.msra.mxu0 0
        %1601 = vmatprep.subr.bf16.mxu0 0
        %1602 = vmatpush1.bf16.msra.mxu0 0
        %1603 = vmatprep.subr.bf16.mxu0 0
        %1604 = vmatpush1.bf16.msra.mxu0 0
        %1605 = vmatprep.subr.bf16.mxu0 0
        %1606 = vmatpush1.bf16.msra.mxu0 0
        %1607 = vmatprep.subr.bf16.mxu0 0
        %1608 = vmatpush1.bf16.msra.mxu0 0
        %1609 = vmatprep.subr.bf16.mxu0 0
        %1610 = vmatpush1.bf16.msra.mxu0 0
        %1611 = vmatprep.subr.bf16.mxu0 0
        %1612 = vmatpush1.bf16.msra.mxu0 0
        %1613 = vmatprep.subr.bf16.mxu0 0
        %1614 = vmatpush1.bf16.msra.mxu0 0
        %1615 = vmatprep.subr.bf16.mxu0 0
        %1616 = vmatpush1.bf16.msra.mxu0 0
        %1617 = vmatprep.subr.bf16.mxu0 0
        %1618 = vmatpush1.bf16.msra.mxu0 0
        %1619 = vmatprep.mubr.bf16.mxu0 0
        %1620 = vmatmul.mubr.bf16.gmra.mrb[0].mxu0 %v1585
        %v1621 = vpop.f32.mrb[0].mxu0
        %v1622 = vadd.f32 0.0, %v1621
        %v1623 = vpop.f32.mrb[0].mxu0
        %v1624 = vpop.f32.mrb[0].mxu0
        %v1625 = vpop.f32.mrb[0].mxu0
        %1626 = vdwg.mxu0
        %v1628 = vlaneseq
        %v1629 = vshrl.u32 %v1628, 7
        %v1630 = vsub.s32 0, %v1629
        %v1631 = vrot.slane %v1443, %v1630
        %v1633 = vadd.f32 %v1631, %v1622
        %1635 = vrot.lane.b32.xlu0 %v1424, 64
        %v1636 = vpop.permute.xlu0 %1635
        %1638 = vrot.lane.b32.xlu0 %v1425, 64
        %v1639 = vpop.permute.xlu0 %1638
        %v1641 = vsel %vm1444, %v1636, 0
        %v1644 = vsel %vm1444, %v1639, 0
        %1646 = vmatprep.subr.bf16.mxu0 0
        %1647 = vmatpush1.bf16.xpose.msra.mxu0 %v1644
        %1648 = vmatprep.subr.bf16.mxu0 0
        %1649 = vmatpush1.bf16.xpose.msra.mxu0 0
        %1650 = vmatprep.subr.bf16.mxu0 0
        %1651 = vmatpush1.bf16.xpose.msra.mxu0 0
        %1652 = vmatprep.subr.bf16.mxu0 0
        %1653 = vmatpush1.bf16.xpose.msra.mxu0 0
        %1654 = vmatprep.subr.bf16.mxu0 0
        %1655 = vmatpush1.bf16.xpose.msra.mxu0 0
        %1656 = vmatprep.subr.bf16.mxu0 0
        %1657 = vmatpush1.bf16.xpose.msra.mxu0 0
        %1658 = vmatprep.subr.bf16.mxu0 0
        %1659 = vmatpush1.bf16.xpose.msra.mxu0 0
        %1660 = vmatprep.subr.bf16.mxu0 0
        %1661 = vmatpush1.bf16.xpose.msra.mxu0 0
        %1662 = vmatprep.subr.bf16.mxu0 0
        %1663 = vmatpush1.bf16.xpose.msra.mxu0 0
        %1664 = vmatprep.subr.bf16.mxu0 0
        %1665 = vmatpush1.bf16.xpose.msra.mxu0 0
        %1666 = vmatprep.subr.bf16.mxu0 0
        %1667 = vmatpush1.bf16.xpose.msra.mxu0 0
        %1668 = vmatprep.subr.bf16.mxu0 0
        %1669 = vmatpush1.bf16.xpose.msra.mxu0 0
        %1670 = vmatprep.subr.bf16.mxu0 0
        %1671 = vmatpush1.bf16.xpose.msra.mxu0 0
        %1672 = vmatprep.subr.bf16.mxu0 0
        %1673 = vmatpush1.bf16.xpose.msra.mxu0 0
        %1674 = vmatprep.subr.bf16.mxu0 0
        %1675 = vmatpush1.bf16.xpose.msra.mxu0 0
        %1676 = vmatprep.subr.bf16.mxu0 0
        %1677 = vmatpush1.bf16.xpose.msra.mxu0 0
        %1678 = vmatprep.mubr.bf16.mxu0 0
        %1679 = vmatmul.mubr.bf16.gmra.mrb[0].mxu0 %v1641
        %v1680 = vpop.f32.mrb[0].mxu0
        %v1681 = vadd.f32 0.0, %v1680
        %v1682 = vpop.f32.mrb[0].mxu0
        %v1683 = vpop.f32.mrb[0].mxu0
        %v1684 = vpop.f32.mrb[0].mxu0
        %1685 = vdwg.mxu0
        %v1686 = vmul.f32 %v1681, 0.125
        %v1687 = vadd.f32 %v1686, %v1496
        %v1688 = vsel %vm1499, %v1687, -inf
        %1689 = vmax.xlane.f32.xlu0 %v1688
        %v1690 = vpop.xlane.xlu0 %1689
        %v1691 = vsub.f32 %v1687, %v1690
        %v1692 = vmul.f32 %v1691, 1.442695
        %v1693 = vpow.pop %v1692
        %v1694 = vsel %vm1499, %v1693, 0.0
        %1695 = vadd.xlane.f32.xlu0 %v1694
        %v1696 = vpop.xlane.xlu0 %1695
        %v1697 = vrcp.pop %v1696
        %v1698 = vmul.f32 %v1693, %v1697
        %v1699 = vpack.c.bf16 %v1698, %v1698
        %1701 = vrot.lane.b32.xlu0 %v1426, 64
        %v1702 = vpop.permute.xlu0 %1701
        %v1704 = vsel %vm1499, %v1699, 0
        %v1707 = vsel %vm1515, %v1702, 0
        %1709 = vmatprep.subr.bf16.mxu0 0
        %1710 = vmatpush1.bf16.msra.mxu0 %v1707
        %1711 = vmatprep.subr.bf16.mxu0 0
        %1712 = vmatpush1.bf16.msra.mxu0 0
        %1713 = vmatprep.subr.bf16.mxu0 0
        %1714 = vmatpush1.bf16.msra.mxu0 0
        %1715 = vmatprep.subr.bf16.mxu0 0
        %1716 = vmatpush1.bf16.msra.mxu0 0
        %1717 = vmatprep.subr.bf16.mxu0 0
        %1718 = vmatpush1.bf16.msra.mxu0 0
        %1719 = vmatprep.subr.bf16.mxu0 0
        %1720 = vmatpush1.bf16.msra.mxu0 0
        %1721 = vmatprep.subr.bf16.mxu0 0
        %1722 = vmatpush1.bf16.msra.mxu0 0
        %1723 = vmatprep.subr.bf16.mxu0 0
        %1724 = vmatpush1.bf16.msra.mxu0 0
        %1725 = vmatprep.subr.bf16.mxu0 0
        %1726 = vmatpush1.bf16.msra.mxu0 0
        %1727 = vmatprep.subr.bf16.mxu0 0
        %1728 = vmatpush1.bf16.msra.mxu0 0
        %1729 = vmatprep.subr.bf16.mxu0 0
        %1730 = vmatpush1.bf16.msra.mxu0 0
        %1731 = vmatprep.subr.bf16.mxu0 0
        %1732 = vmatpush1.bf16.msra.mxu0 0
        %1733 = vmatprep.subr.bf16.mxu0 0
        %1734 = vmatpush1.bf16.msra.mxu0 0
        %1735 = vmatprep.subr.bf16.mxu0 0
        %1736 = vmatpush1.bf16.msra.mxu0 0
        %1737 = vmatprep.subr.bf16.mxu0 0
        %1738 = vmatpush1.bf16.msra.mxu0 0
        %1739 = vmatprep.subr.bf16.mxu0 0
        %1740 = vmatpush1.bf16.msra.mxu0 0
        %1741 = vmatprep.mubr.bf16.mxu0 0
        %1742 = vmatmul.mubr.bf16.gmra.mrb[0].mxu0 %v1704
        %v1743 = vpop.f32.mrb[0].mxu0
        %v1744 = vadd.f32 0.0, %v1743
        %v1745 = vpop.f32.mrb[0].mxu0
        %v1746 = vpop.f32.mrb[0].mxu0
        %v1747 = vpop.f32.mrb[0].mxu0
        %1748 = vdwg.mxu0
        %v1749 = vpack.c.bf16 %v1744, %v1744
        %v1758 = vunpack.c.l.b16 %v1435
        %v1759 = vunpack.c.l.b16 %v1436
        %v1760 = vunpack.c.l.b16 %v1437
        %v1761 = vunpack.c.l.b16 %v1438
        %v1762 = vunpack.c.l.b16 %v1439
        %v1763 = vunpack.c.l.b16 %v1440
        %v1764 = vunpack.c.l.b16 %v1441
        %v1765 = vunpack.c.l.b16 %v1442
        %v1766 = vpack.c.b16 %v1759, %v1758
        %v1767 = vpack.c.b16 %v1761, %v1760
        %v1768 = vpack.c.b16 %v1763, %v1762
        %v1769 = vpack.c.b16 %v1765, %v1764
        %v1775 = vsel %vm1444, %v1749, 0
        %1777 = vmatprep.subr.bf16.mxu0 0
        %1778 = vmatpush1.bf16.msra.mxu0 %v1766
        %1779 = vmatprep.subr.bf16.mxu0 0
        %1780 = vmatpush1.bf16.msra.mxu0 %v1767
        %1781 = vmatprep.subr.bf16.mxu0 0
        %1782 = vmatpush1.bf16.msra.mxu0 %v1768
        %1783 = vmatprep.subr.bf16.mxu0 0
        %1784 = vmatpush1.bf16.msra.mxu0 %v1769
        %1785 = vmatprep.subr.bf16.mxu0 0
        %1786 = vmatpush1.bf16.msra.mxu0 0
        %1787 = vmatprep.subr.bf16.mxu0 0
        %1788 = vmatpush1.bf16.msra.mxu0 0
        %1789 = vmatprep.subr.bf16.mxu0 0
        %1790 = vmatpush1.bf16.msra.mxu0 0
        %1791 = vmatprep.subr.bf16.mxu0 0
        %1792 = vmatpush1.bf16.msra.mxu0 0
        %1793 = vmatprep.subr.bf16.mxu0 0
        %1794 = vmatpush1.bf16.msra.mxu0 0
        %1795 = vmatprep.subr.bf16.mxu0 0
        %1796 = vmatpush1.bf16.msra.mxu0 0
        %1797 = vmatprep.subr.bf16.mxu0 0
        %1798 = vmatpush1.bf16.msra.mxu0 0
        %1799 = vmatprep.subr.bf16.mxu0 0
        %1800 = vmatpush1.bf16.msra.mxu0 0
        %1801 = vmatprep.subr.bf16.mxu0 0
        %1802 = vmatpush1.bf16.msra.mxu0 0
        %1803 = vmatprep.subr.bf16.mxu0 0
        %1804 = vmatpush1.bf16.msra.mxu0 0
        %1805 = vmatprep.subr.bf16.mxu0 0
        %1806 = vmatpush1.bf16.msra.mxu0 0
        %1807 = vmatprep.subr.bf16.mxu0 0
        %1808 = vmatpush1.bf16.msra.mxu0 0
        %1809 = vmatprep.mubr.bf16.mxu0 0
        %1810 = vmatmul.mubr.bf16.gmra.mrb[0].mxu0 %v1775
        %v1811 = vpop.f32.mrb[0].mxu0
        %v1812 = vadd.f32 0.0, %v1811
        %v1813 = vpop.f32.mrb[0].mxu0
        %v1814 = vpop.f32.mrb[0].mxu0
        %v1815 = vpop.f32.mrb[0].mxu0
        %1816 = vdwg.mxu0
        %v1817 = vadd.f32 %v1633, %v1812
        %v1818 = vadd.f32 %v1088, %v1817
        %v1819 = vld [vmem:[%s1064] sm:$0x1]
        %v1820 = vld [vmem:[%s1067] sm:$0x1]
        %1821 = vadd.xlane.f32.xlu0 %v1818
        %v1822 = vpop.xlane.xlu0 %1821
        %v1823 = vrcp.pop 128.0
        %v1824 = vmul.f32 %v1822, %v1823
        %v1825 = vsub.f32 %v1818, %v1824
        %v1826 = vmul.f32 %v1825, %v1825
        %1827 = vadd.xlane.f32.xlu0 %v1826
        %v1828 = vpop.xlane.xlu0 %1827
        %v1829 = vmul.f32 %v1828, %v1823
        %v1830 = vadd.f32 %v1829, 1e-12
        %v1831 = vrsqrt.pop %v1830
        %v1832 = vmul.f32 %v1825, %v1831
        %v1834 = vlaneseq
        %v1835 = vshrl.u32 %v1834, 7
        %v1836 = vsub.s32 0, %v1835
        %v1837 = vrot.slane %v1819, %v1836
        %v1839 = vmul.f32 %v1832, %v1837
        %v1841 = vlaneseq
        %v1842 = vshrl.u32 %v1841, 7
        %v1843 = vsub.s32 0, %v1842
        %v1844 = vrot.slane %v1820, %v1843
        %v1846 = vadd.f32 %v1839, %v1844
        %v1847 = vpack.c.bf16 %v1846, %v1846
        %v1848 = vld [vmem:[%s911] sm:$0xff]
        %v1849 = vld [vmem:[%s911 + $0x8] sm:$0xff]
        %v1850 = vld [vmem:[%s911 + $0x10] sm:$0xff]
        %v1851 = vld [vmem:[%s911 + $0x18] sm:$0xff]
        %v1852 = vld [vmem:[%s911 + $0x20] sm:$0xff]
        %v1853 = vld [vmem:[%s911 + $0x28] sm:$0xff]
        %v1854 = vld [vmem:[%s911 + $0x30] sm:$0xff]
        %v1855 = vld [vmem:[%s911 + $0x38] sm:$0xff]
        %v1856 = vld [vmem:[%s911 + $0x40] sm:$0xff]
        %v1857 = vld [vmem:[%s911 + $0x48] sm:$0xff]
        %v1858 = vld [vmem:[%s911 + $0x50] sm:$0xff]
        %v1859 = vld [vmem:[%s911 + $0x58] sm:$0xff]
        %v1860 = vld [vmem:[%s911 + $0x60] sm:$0xff]
        %v1861 = vld [vmem:[%s911 + $0x68] sm:$0xff]
        %v1862 = vld [vmem:[%s911 + $0x70] sm:$0xff]
        %v1863 = vld [vmem:[%s911 + $0x78] sm:$0xff]
        %v1864 = vld [vmem:[%s1071] sm:$0x3]
        %v1866 = vlaneseq
        %v1867 = vshrl.u32 %v1866, 7
        %v1868 = vsub.s32 0, %v1867
        %v1869 = vrot.slane %v1864, %v1868
        %v1870 = vlaneseq
        %v1871 = vshrl.u32 %v1870, 7
        %v1872 = vsub.s32 1, %v1871
        %v1873 = vrot.slane %v1864, %v1872
        %v1892 = vunpack.c.l.b16 %v1848
        %v1893 = vunpack.c.h.b16 %v1848
        %v1894 = vunpack.c.l.b16 %v1849
        %v1895 = vunpack.c.h.b16 %v1849
        %v1896 = vunpack.c.l.b16 %v1850
        %v1897 = vunpack.c.h.b16 %v1850
        %v1898 = vunpack.c.l.b16 %v1851
        %v1899 = vunpack.c.h.b16 %v1851
        %v1900 = vunpack.c.l.b16 %v1852
        %v1901 = vunpack.c.h.b16 %v1852
        %v1902 = vunpack.c.l.b16 %v1853
        %v1903 = vunpack.c.h.b16 %v1853
        %v1904 = vunpack.c.l.b16 %v1854
        %v1905 = vunpack.c.h.b16 %v1854
        %v1906 = vunpack.c.l.b16 %v1855
        %v1907 = vunpack.c.h.b16 %v1855
        %v1908 = vunpack.c.l.b16 %v1856
        %v1909 = vunpack.c.h.b16 %v1856
        %v1910 = vunpack.c.l.b16 %v1857
        %v1911 = vunpack.c.h.b16 %v1857
        %v1912 = vunpack.c.l.b16 %v1858
        %v1913 = vunpack.c.h.b16 %v1858
        %v1914 = vunpack.c.l.b16 %v1859
        %v1915 = vunpack.c.h.b16 %v1859
        %v1916 = vunpack.c.l.b16 %v1860
        %v1917 = vunpack.c.h.b16 %v1860
        %v1918 = vunpack.c.l.b16 %v1861
        %v1919 = vunpack.c.h.b16 %v1861
        %v1920 = vunpack.c.l.b16 %v1862
        %v1921 = vunpack.c.h.b16 %v1862
        %v1922 = vunpack.c.l.b16 %v1863
        %v1923 = vunpack.c.h.b16 %v1863
        %v1924 = vpack.c.b16 %v1894, %v1892
        %v1925 = vpack.c.b16 %v1895, %v1893
        %v1926 = vpack.c.b16 %v1898, %v1896
        %v1927 = vpack.c.b16 %v1899, %v1897
        %v1928 = vpack.c.b16 %v1902, %v1900
        %v1929 = vpack.c.b16 %v1903, %v1901
        %v1930 = vpack.c.b16 %v1906, %v1904
        %v1931 = vpack.c.b16 %v1907, %v1905
        %v1932 = vpack.c.b16 %v1910, %v1908
        %v1933 = vpack.c.b16 %v1911, %v1909
        %v1934 = vpack.c.b16 %v1914, %v1912
        %v1935 = vpack.c.b16 %v1915, %v1913
        %v1936 = vpack.c.b16 %v1918, %v1916
        %v1937 = vpack.c.b16 %v1919, %v1917
        %v1938 = vpack.c.b16 %v1922, %v1920
        %v1939 = vpack.c.b16 %v1923, %v1921
        %1956 = vmatprep.subr.bf16.mxu0 %v1925
        %1957 = vmatpush1.bf16.msra.mxu0 %v1924
        %1958 = vmatprep.subr.bf16.mxu0 %v1927
        %1959 = vmatpush1.bf16.msra.mxu0 %v1926
        %1960 = vmatprep.subr.bf16.mxu0 %v1929
        %1961 = vmatpush1.bf16.msra.mxu0 %v1928
        %1962 = vmatprep.subr.bf16.mxu0 %v1931
        %1963 = vmatpush1.bf16.msra.mxu0 %v1930
        %1964 = vmatprep.subr.bf16.mxu0 %v1933
        %1965 = vmatpush1.bf16.msra.mxu0 %v1932
        %1966 = vmatprep.subr.bf16.mxu0 %v1935
        %1967 = vmatpush1.bf16.msra.mxu0 %v1934
        %1968 = vmatprep.subr.bf16.mxu0 %v1937
        %1969 = vmatpush1.bf16.msra.mxu0 %v1936
        %1970 = vmatprep.subr.bf16.mxu0 %v1939
        %1971 = vmatpush1.bf16.msra.mxu0 %v1938
        %1972 = vmatprep.subr.bf16.mxu0 0
        %1973 = vmatpush1.bf16.msra.mxu0 0
        %1974 = vmatprep.subr.bf16.mxu0 0
        %1975 = vmatpush1.bf16.msra.mxu0 0
        %1976 = vmatprep.subr.bf16.mxu0 0
        %1977 = vmatpush1.bf16.msra.mxu0 0
        %1978 = vmatprep.subr.bf16.mxu0 0
        %1979 = vmatpush1.bf16.msra.mxu0 0
        %1980 = vmatprep.subr.bf16.mxu0 0
        %1981 = vmatpush1.bf16.msra.mxu0 0
        %1982 = vmatprep.subr.bf16.mxu0 0
        %1983 = vmatpush1.bf16.msra.mxu0 0
        %1984 = vmatprep.subr.bf16.mxu0 0
        %1985 = vmatpush1.bf16.msra.mxu0 0
        %1986 = vmatprep.subr.bf16.mxu0 0
        %1987 = vmatpush1.bf16.msra.mxu0 0
        %1988 = vmatprep.mubr.bf16.mxu0 0
        %1989 = vmatmul.mubr.bf16.gmra.mrb[0].mxu0 %v1847
        %v1990 = vpop.f32.mrb[0].mxu0
        %v1991 = vadd.f32 %v1869, %v1990
        %v1992 = vpop.f32.mrb[0].mxu0
        %v1993 = vadd.f32 %v1873, %v1992
        %v1994 = vpop.f32.mrb[0].mxu0
        %v1995 = vpop.f32.mrb[0].mxu0
        %1996 = vdwg.mxu0
        %v1997 = vmul.f32 %v1991, 0.5
        %v1998 = vmul.f32 %v1993, 0.5
        %v1999 = vmul.f32 %v1991, 0.044715
        %v2000 = vmul.f32 %v1993, 0.044715
        %v2001 = vmul.f32 %v1999, %v1991
        %v2002 = vmul.f32 %v2000, %v1993
        %v2003 = vmul.f32 %v2001, %v1991
        %v2004 = vmul.f32 %v2002, %v1993
        %v2005 = vadd.f32 %v1991, %v2003
        %v2006 = vadd.f32 %v1993, %v2004
        %v2007 = vmul.f32 %v2005, 0.7978846
        %v2008 = vmul.f32 %v2006, 0.7978846
        %v2009 = vtanh.pop %v2007
        %v2010 = vtanh.pop %v2008
        %v2011 = vadd.f32 %v2009, 1.0
        %v2012 = vadd.f32 %v2010, 1.0
        %v2013 = vmul.f32 %v1997, %v2011
        %v2014 = vmul.f32 %v1998, %v2012
        %v2015 = vpack.c.bf16 %v2013, %v2013
        %v2016 = vpack.c.bf16 %v2014, %v2014
        %v2017 = vld [vmem:[%s920] sm:$0xf]
        %v2018 = vld [vmem:[%s920 + $0x4] sm:$0xf]
        %v2019 = vld [vmem:[%s920 + $0x8] sm:$0xf]
        %v2020 = vld [vmem:[%s920 + $0xc] sm:$0xf]
        %v2021 = vld [vmem:[%s920 + $0x10] sm:$0xf]
        %v2022 = vld [vmem:[%s920 + $0x14] sm:$0xf]
        %v2023 = vld [vmem:[%s920 + $0x18] sm:$0xf]
        %v2024 = vld [vmem:[%s920 + $0x1c] sm:$0xf]
        %v2025 = vld [vmem:[%s920 + $0x20] sm:$0xf]
        %v2026 = vld [vmem:[%s920 + $0x24] sm:$0xf]
        %v2027 = vld [vmem:[%s920 + $0x28] sm:$0xf]
        %v2028 = vld [vmem:[%s920 + $0x2c] sm:$0xf]
        %v2029 = vld [vmem:[%s920 + $0x30] sm:$0xf]
        %v2030 = vld [vmem:[%s920 + $0x34] sm:$0xf]
        %v2031 = vld [vmem:[%s920 + $0x38] sm:$0xf]
        %v2032 = vld [vmem:[%s920 + $0x3c] sm:$0xf]
        %v2033 = vld [vmem:[%s920 + $0x40] sm:$0xf]
        %v2034 = vld [vmem:[%s920 + $0x44] sm:$0xf]
        %v2035 = vld [vmem:[%s920 + $0x48] sm:$0xf]
        %v2036 = vld [vmem:[%s920 + $0x4c] sm:$0xf]
        %v2037 = vld [vmem:[%s920 + $0x50] sm:$0xf]
        %v2038 = vld [vmem:[%s920 + $0x54] sm:$0xf]
        %v2039 = vld [vmem:[%s920 + $0x58] sm:$0xf]
        %v2040 = vld [vmem:[%s920 + $0x5c] sm:$0xf]
        %v2041 = vld [vmem:[%s920 + $0x60] sm:$0xf]
        %v2042 = vld [vmem:[%s920 + $0x64] sm:$0xf]
        %v2043 = vld [vmem:[%s920 + $0x68] sm:$0xf]
        %v2044 = vld [vmem:[%s920 + $0x6c] sm:$0xf]
        %v2045 = vld [vmem:[%s920 + $0x70] sm:$0xf]
        %v2046 = vld [vmem:[%s920 + $0x74] sm:$0xf]
        %v2047 = vld [vmem:[%s920 + $0x78] sm:$0xf]
        %v2048 = vld [vmem:[%s920 + $0x7c] sm:$0xf]
        %v2049 = vld [vmem:[%s1074] sm:$0x1]
        %v2051 = vlaneseq
        %v2052 = vshrl.u32 %v2051, 7
        %v2053 = vsub.s32 0, %v2052
        %v2054 = vrot.slane %v2049, %v2053
        %v2088 = vunpack.c.l.b16 %v2017
        %v2089 = vunpack.c.l.b16 %v2018
        %v2090 = vunpack.c.l.b16 %v2019
        %v2091 = vunpack.c.l.b16 %v2020
        %v2092 = vunpack.c.l.b16 %v2021
        %v2093 = vunpack.c.l.b16 %v2022
        %v2094 = vunpack.c.l.b16 %v2023
        %v2095 = vunpack.c.l.b16 %v2024
        %v2096 = vunpack.c.l.b16 %v2025
        %v2097 = vunpack.c.l.b16 %v2026
        %v2098 = vunpack.c.l.b16 %v2027
        %v2099 = vunpack.c.l.b16 %v2028
        %v2100 = vunpack.c.l.b16 %v2029
        %v2101 = vunpack.c.l.b16 %v2030
        %v2102 = vunpack.c.l.b16 %v2031
        %v2103 = vunpack.c.l.b16 %v2032
        %v2104 = vunpack.c.l.b16 %v2033
        %v2105 = vunpack.c.l.b16 %v2034
        %v2106 = vunpack.c.l.b16 %v2035
        %v2107 = vunpack.c.l.b16 %v2036
        %v2108 = vunpack.c.l.b16 %v2037
        %v2109 = vunpack.c.l.b16 %v2038
        %v2110 = vunpack.c.l.b16 %v2039
        %v2111 = vunpack.c.l.b16 %v2040
        %v2112 = vunpack.c.l.b16 %v2041
        %v2113 = vunpack.c.l.b16 %v2042
        %v2114 = vunpack.c.l.b16 %v2043
        %v2115 = vunpack.c.l.b16 %v2044
        %v2116 = vunpack.c.l.b16 %v2045
        %v2117 = vunpack.c.l.b16 %v2046
        %v2118 = vunpack.c.l.b16 %v2047
        %v2119 = vunpack.c.l.b16 %v2048
        %v2120 = vpack.c.b16 %v2089, %v2088
        %v2121 = vpack.c.b16 %v2091, %v2090
        %v2122 = vpack.c.b16 %v2093, %v2092
        %v2123 = vpack.c.b16 %v2095, %v2094
        %v2124 = vpack.c.b16 %v2097, %v2096
        %v2125 = vpack.c.b16 %v2099, %v2098
        %v2126 = vpack.c.b16 %v2101, %v2100
        %v2127 = vpack.c.b16 %v2103, %v2102
        %v2128 = vpack.c.b16 %v2105, %v2104
        %v2129 = vpack.c.b16 %v2107, %v2106
        %v2130 = vpack.c.b16 %v2109, %v2108
        %v2131 = vpack.c.b16 %v2111, %v2110
        %v2132 = vpack.c.b16 %v2113, %v2112
        %v2133 = vpack.c.b16 %v2115, %v2114
        %v2134 = vpack.c.b16 %v2117, %v2116
        %v2135 = vpack.c.b16 %v2119, %v2118
        %2152 = vmatprep.subr.bf16.mxu0 0
        %2153 = vmatpush1.bf16.msra.mxu0 %v2120
        %2154 = vmatprep.subr.bf16.mxu0 0
        %2155 = vmatpush1.bf16.msra.mxu0 %v2121
        %2156 = vmatprep.subr.bf16.mxu0 0
        %2157 = vmatpush1.bf16.msra.mxu0 %v2122
        %2158 = vmatprep.subr.bf16.mxu0 0
        %2159 = vmatpush1.bf16.msra.mxu0 %v2123
        %2160 = vmatprep.subr.bf16.mxu0 0
        %2161 = vmatpush1.bf16.msra.mxu0 %v2124
        %2162 = vmatprep.subr.bf16.mxu0 0
        %2163 = vmatpush1.bf16.msra.mxu0 %v2125
        %2164 = vmatprep.subr.bf16.mxu0 0
        %2165 = vmatpush1.bf16.msra.mxu0 %v2126
        %2166 = vmatprep.subr.bf16.mxu0 0
        %2167 = vmatpush1.bf16.msra.mxu0 %v2127
        %2168 = vmatprep.subr.bf16.mxu0 0
        %2169 = vmatpush1.bf16.msra.mxu0 %v2128
        %2170 = vmatprep.subr.bf16.mxu0 0
        %2171 = vmatpush1.bf16.msra.mxu0 %v2129
        %2172 = vmatprep.subr.bf16.mxu0 0
        %2173 = vmatpush1.bf16.msra.mxu0 %v2130
        %2174 = vmatprep.subr.bf16.mxu0 0
        %2175 = vmatpush1.bf16.msra.mxu0 %v2131
        %2176 = vmatprep.subr.bf16.mxu0 0
        %2177 = vmatpush1.bf16.msra.mxu0 %v2132
        %2178 = vmatprep.subr.bf16.mxu0 0
        %2179 = vmatpush1.bf16.msra.mxu0 %v2133
        %2180 = vmatprep.subr.bf16.mxu0 0
        %2181 = vmatpush1.bf16.msra.mxu0 %v2134
        %2182 = vmatprep.subr.bf16.mxu0 0
        %2183 = vmatpush1.bf16.msra.mxu0 %v2135
        %2184 = vmatprep.mubr.bf16.mxu0 %v2016
        %2185 = vmatmul.mubr.bf16.gmra.mrb[0].mxu0 %v2015
        %v2186 = vpop.f32.mrb[0].mxu0
        %v2187 = vadd.f32 %v2054, %v2186
        %v2188 = vpop.f32.mrb[0].mxu0
        %v2189 = vpop.f32.mrb[0].mxu0
        %v2190 = vpop.f32.mrb[0].mxu0
        %2191 = vdwg.mxu0
        %v2192 = vadd.f32 %v1846, %v2187
        %v2193 = vld [vmem:[%s1077] sm:$0x1]
        %v2194 = vld [vmem:[%s1080] sm:$0x1]
        %2195 = vadd.xlane.f32.xlu0 %v2192
        %v2196 = vpop.xlane.xlu0 %2195
        %v2197 = vmul.f32 %v2196, %v1823
        %v2198 = vsub.f32 %v2192, %v2197
        %v2199 = vmul.f32 %v2198, %v2198
        %2200 = vadd.xlane.f32.xlu0 %v2199
        %v2201 = vpop.xlane.xlu0 %2200
        %v2202 = vmul.f32 %v2201, %v1823
        %v2203 = vadd.f32 %v2202, 1e-12
        %v2204 = vrsqrt.pop %v2203
        %v2205 = vmul.f32 %v2198, %v2204
        %v2207 = vlaneseq
        %v2208 = vshrl.u32 %v2207, 7
        %v2209 = vsub.s32 0, %v2208
        %v2210 = vrot.slane %v2193, %v2209
        %v2212 = vmul.f32 %v2205, %v2210
        %v2214 = vlaneseq
        %v2215 = vshrl.u32 %v2214, 7
        %v2216 = vsub.s32 0, %v2215
        %v2217 = vrot.slane %v2194, %v2216
        %v2219 = vadd.f32 %v2212, %v2217
        %2220 = vst [vmem:[#allocation2] sm:$0xff] %v2219
        %s2221 = scalar_lea.vmem [#allocation3], %s53
        %2222 = vst [vmem:[%s2221] sm:$0x1] %v2219
        %p2223 = scmp.eq.s32.totalorder %s53, 11
        // Predicated region
        $region137: #{bert_blend_cnn_forward.1} parent=107 // pred_check
          %p2224 = pneg %p2223
        $region138: #{bert_blend_cnn_forward.1} parent=107 // pred_check_branch
          %2226 = sbr.rel (%p2224) target = $region140
        $region139: #{bert_blend_cnn_forward.1} parent=107 // pred_region
          %v2227 = vld [vmem:[#allocation3] sm:$0xff]
          %v2228 = vld [vmem:[#allocation3 + $0x8] sm:$0xf]
          %v2229 = vld [vmem:[%s18] sm:$0xff]
          %v2230 = vld [vmem:[%s18 + $0x8] sm:$0xff]
          %v2231 = vld [vmem:[%s18 + $0x10] sm:$0xff]
          %v2232 = vld [vmem:[%s18 + $0x18] sm:$0xff]
          %v2233 = vld [vmem:[%s18 + $0x20] sm:$0xff]
          %v2234 = vld [vmem:[%s18 + $0x28] sm:$0xff]
          %v2235 = vld [vmem:[%s18 + $0x30] sm:$0xff]
          %v2236 = vld [vmem:[%s18 + $0x38] sm:$0xff]
          %v2237 = vld [vmem:[%s18 + $0x40] sm:$0xff]
          %v2238 = vld [vmem:[%s18 + $0x48] sm:$0xff]
          %v2239 = vld [vmem:[%s18 + $0x50] sm:$0xff]
          %v2240 = vld [vmem:[%s18 + $0x58] sm:$0xff]
          %v2241 = vld [vmem:[%s18 + $0x60] sm:$0xff]
          %v2242 = vld [vmem:[%s18 + $0x68] sm:$0xff]
          %v2243 = vld [vmem:[%s18 + $0x70] sm:$0xff]
          %v2244 = vld [vmem:[%s18 + $0x78] sm:$0xff]
          %2245 = vmatprep.subr.mxu0 0.0
          %2246 = vmatpush1.msra.mxu0 %v2229
          %2247 = vmatprep.subr.mxu0 0.0
          %2248 = vmatpush1.msra.mxu0 %v2230
          %2249 = vmatprep.subr.mxu0 0.0
          %2250 = vmatpush1.msra.mxu0 %v2231
          %2251 = vmatprep.subr.mxu0 0.0
          %2252 = vmatpush1.msra.mxu0 %v2232
          %2253 = vmatprep.subr.mxu0 0.0
          %2254 = vmatpush1.msra.mxu0 %v2233
          %2255 = vmatprep.subr.mxu0 0.0
          %2256 = vmatpush1.msra.mxu0 %v2234
          %2257 = vmatprep.subr.mxu0 0.0
          %2258 = vmatpush1.msra.mxu0 %v2235
          %2259 = vmatprep.subr.mxu0 0.0
          %2260 = vmatpush1.msra.mxu0 %v2236
          %2261 = vmatprep.subr.mxu0 0.0
          %2262 = vmatpush1.msra.mxu0 %v2237
          %2263 = vmatprep.subr.mxu0 0.0
          %2264 = vmatpush1.msra.mxu0 %v2238
          %2265 = vmatprep.subr.mxu0 0.0
          %2266 = vmatpush1.msra.mxu0 %v2239
          %2267 = vmatprep.subr.mxu0 0.0
          %2268 = vmatpush1.msra.mxu0 %v2240
          %2269 = vmatprep.subr.mxu0 0.0
          %2270 = vmatpush1.msra.mxu0 %v2241
          %2271 = vmatprep.subr.mxu0 0.0
          %2272 = vmatpush1.msra.mxu0 %v2242
          %2273 = vmatprep.subr.mxu0 0.0
          %2274 = vmatpush1.msra.mxu0 %v2243
          %2275 = vmatprep.subr.mxu0 0.0
          %2276 = vmatpush1.msra.mxu0 %v2244
          %2277 = vmatprep.subr.mxu0 0.0
          %2278 = vmatpush1.msra.mxu0 0.0
          %2279 = vmatprep.subr.mxu0 0.0
          %2280 = vmatpush1.msra.mxu0 0.0
          %2281 = vmatprep.subr.mxu0 0.0
          %2282 = vmatpush1.msra.mxu0 0.0
          %2283 = vmatprep.subr.mxu0 0.0
          %2284 = vmatpush1.msra.mxu0 0.0
          %2285 = vmatprep.subr.mxu0 0.0
          %2286 = vmatpush1.msra.mxu0 0.0
          %2287 = vmatprep.subr.mxu0 0.0
          %2288 = vmatpush1.msra.mxu0 0.0
          %2289 = vmatprep.subr.mxu0 0.0
          %2290 = vmatpush1.msra.mxu0 0.0
          %2291 = vmatprep.subr.mxu0 0.0
          %2292 = vmatpush1.msra.mxu0 0.0
          %2293 = vmatprep.subr.mxu0 0.0
          %2294 = vmatpush1.msra.mxu0 0.0
          %2295 = vmatprep.subr.mxu0 0.0
          %2296 = vmatpush1.msra.mxu0 0.0
          %2297 = vmatprep.subr.mxu0 0.0
          %2298 = vmatpush1.msra.mxu0 0.0
          %2299 = vmatprep.subr.mxu0 0.0
          %2300 = vmatpush1.msra.mxu0 0.0
          %2301 = vmatprep.subr.mxu0 0.0
          %2302 = vmatpush1.msra.mxu0 0.0
          %2303 = vmatprep.subr.mxu0 0.0
          %2304 = vmatpush1.msra.mxu0 0.0
          %2305 = vmatprep.subr.mxu0 0.0
          %2306 = vmatpush1.msra.mxu0 0.0
          %2307 = vmatprep.subr.mxu0 0.0
          %2308 = vmatpush1.msra.mxu0 0.0
          %2309 = vmatprep.mubr.f32.mxu0 0.0
          %2310 = vmatmul.mubr.f32.gmra.mrb[0].mxu0 %v2227
          %v2311 = vpop.f32.mrb[0].mxu0
          %v2312 = vadd.f32 0.0, %v2311
          %v2313 = vpop.f32.mrb[0].mxu0
          %2314 = vmatprep.mubr.f32.mxu0 0.0
          %2315 = vmatmul.mubr.f32.gmra.mrb[0].mxu0 %v2228
          %v2316 = vpop.f32.mrb[0].mxu0
          %v2317 = vadd.f32 0.0, %v2316
          %v2318 = vpop.f32.mrb[0].mxu0
          %2319 = vdwg.mxu0
          %v2320 = vld [vmem:[%s19] sm:$0x1]
          %v2321 = vlaneseq
          %v2322 = vshrl.u32 %v2321, 7
          %v2323 = vsub.s32 0, %v2322
          %v2324 = vrot.slane %v2320, %v2323
          %v2325 = vadd.f32 %v2324, %v2312
          %v2326 = vadd.f32 %v2324, %v2317
          %vm2329 = vcmask 1046528
          %v2330 = vrot.slane %v2312, 1
          %v2331 = vrot.slane %v2317, 1
          %v2332 = vsel %vm2329, %v2330, %v2331
          %2333 = vrot.lane.b32.xlu0 %v2332, 125
          %v2334 = vpop.permute.xlu0 %2333
          %2335 = vrot.lane.b32.xlu0 %v2331, 125
          %v2336 = vpop.permute.xlu0 %2335
          %v2339 = vadd.f32 %v2325, %v2334
          %v2340 = vadd.f32 %v2326, %v2336
          %v2341 = vmax.f32 %v2339, 0.0
          %v2342 = vmax.f32 %v2340, 0.0
          %vm2343 = vcmask 23552
          %v2344 = vsel %vm2343, %v2341, -inf
          %vm2345 = vcmask 18432
          %v2346 = vsel %vm2345, %v2342, -inf
          %v2347 = vmax.f32 %v2344, %v2346
          %v2348 = vrot.slane %v2347, 4
          %v2349 = vmax.f32 %v2347, %v2348
          %v2350 = vrot.slane %v2349, 2
          %v2351 = vmax.f32 %v2349, %v2350
          %v2352 = vrot.slane %v2351, 1
          %v2353 = vmax.f32 %v2351, %v2352
          %v2354 = vld [vmem:[%s19 + $0x1] sm:$0x1]
          %v2355 = vlaneseq
          %v2356 = vshrl.u32 %v2355, 7
          %v2357 = vsub.s32 0, %v2356
          %v2358 = vrot.slane %v2354, %v2357
          %2359 = vrot.lane.b32.xlu0 %v2312, 122
          %v2360 = vpop.permute.xlu0 %2359
          %2361 = vrot.lane.b32.xlu0 %v2317, 122
          %v2362 = vpop.permute.xlu0 %2361
          %v2365 = vadd.f32 %v2358, %v2360
          %v2366 = vadd.f32 %v2358, %v2362
          %2367 = vrot.lane.b32.xlu0 %v2332, 119
          %v2368 = vpop.permute.xlu0 %2367
          %2369 = vrot.lane.b32.xlu0 %v2331, 119
          %v2370 = vpop.permute.xlu0 %2369
          %v2373 = vadd.f32 %v2365, %v2368
          %v2374 = vadd.f32 %v2366, %v2370
          %v2375 = vmax.f32 %v2373, 0.0
          %v2376 = vmax.f32 %v2374, 0.0
          %v2377 = vsel %vm2343, %v2375, -inf
          %v2378 = vsel %vm2345, %v2376, -inf
          %v2379 = vmax.f32 %v2377, %v2378
          %v2380 = vrot.slane %v2379, 4
          %v2381 = vmax.f32 %v2379, %v2380
          %v2382 = vrot.slane %v2381, 2
          %v2383 = vmax.f32 %v2381, %v2382
          %v2384 = vrot.slane %v2383, 1
          %v2385 = vmax.f32 %v2383, %v2384
          %v2386 = vld [vmem:[%s19 + $0x2] sm:$0x1]
          %v2387 = vlaneseq
          %v2388 = vshrl.u32 %v2387, 7
          %v2389 = vsub.s32 0, %v2388
          %v2390 = vrot.slane %v2386, %v2389
          %2391 = vrot.lane.b32.xlu0 %v2312, 116
          %v2392 = vpop.permute.xlu0 %2391
          %2393 = vrot.lane.b32.xlu0 %v2317, 116
          %v2394 = vpop.permute.xlu0 %2393
          %v2397 = vadd.f32 %v2390, %v2392
          %v2398 = vadd.f32 %v2390, %v2394
          %2399 = vrot.lane.b32.xlu0 %v2332, 113
          %v2400 = vpop.permute.xlu0 %2399
          %2401 = vrot.lane.b32.xlu0 %v2331, 113
          %v2402 = vpop.permute.xlu0 %2401
          %v2405 = vadd.f32 %v2397, %v2400
          %v2406 = vadd.f32 %v2398, %v2402
          %v2407 = vmax.f32 %v2405, 0.0
          %v2408 = vmax.f32 %v2406, 0.0
          %v2409 = vsel %vm2343, %v2407, -inf
          %v2410 = vsel %vm2345, %v2408, -inf
          %v2411 = vmax.f32 %v2409, %v2410
          %v2412 = vrot.slane %v2411, 4
          %v2413 = vmax.f32 %v2411, %v2412
          %v2414 = vrot.slane %v2413, 2
          %v2415 = vmax.f32 %v2413, %v2414
          %v2416 = vrot.slane %v2415, 1
          %v2417 = vmax.f32 %v2415, %v2416
          %2419 = vrot.lane.b32.xlu0 %v2385, 3
          %v2420 = vpop.permute.xlu0 %2419
          %2423 = vrot.lane.b32.xlu0 %v2417, 6
          %v2424 = vpop.permute.xlu0 %2423
          %v2426 = vsel %vm2343, %v2353, %v2420
          %vm2427 = vcmask 48128
          %v2428 = vsel %vm2427, %v2426, %v2424
          %v2429 = vld [vmem:[%s20] sm:$0xff]
          %v2430 = vld [vmem:[%s20 + $0x8] sm:$0x1]
          %v2431 = vld [vmem:[%s21] sm:$0x1]
          %vm2432 = vcmask 72704
          %v2434 = vsel %vm2432, %v2428, 0
          %vm2436 = vcmask 1040384
          %v2438 = vsel %vm2436, %v2430, 0
          %2440 = vmatprep.subr.mxu0 0.0
          %2441 = vmatpush1.msra.mxu0 %v2429
          %2442 = vmatprep.subr.mxu0 0.0
          %2443 = vmatpush1.msra.mxu0 %v2438
          %2444 = vmatprep.subr.mxu0 0.0
          %2445 = vmatpush1.msra.mxu0 0.0
          %2446 = vmatprep.subr.mxu0 0.0
          %2447 = vmatpush1.msra.mxu0 0.0
          %2448 = vmatprep.subr.mxu0 0.0
          %2449 = vmatpush1.msra.mxu0 0.0
          %2450 = vmatprep.subr.mxu0 0.0
          %2451 = vmatpush1.msra.mxu0 0.0
          %2452 = vmatprep.subr.mxu0 0.0
          %2453 = vmatpush1.msra.mxu0 0.0
          %2454 = vmatprep.subr.mxu0 0.0
          %2455 = vmatpush1.msra.mxu0 0.0
          %2456 = vmatprep.subr.mxu0 0.0
          %2457 = vmatpush1.msra.mxu0 0.0
          %2458 = vmatprep.subr.mxu0 0.0
          %2459 = vmatpush1.msra.mxu0 0.0
          %2460 = vmatprep.subr.mxu0 0.0
          %2461 = vmatpush1.msra.mxu0 0.0
          %2462 = vmatprep.subr.mxu0 0.0
          %2463 = vmatpush1.msra.mxu0 0.0
          %2464 = vmatprep.subr.mxu0 0.0
          %2465 = vmatpush1.msra.mxu0 0.0
          %2466 = vmatprep.subr.mxu0 0.0
          %2467 = vmatpush1.msra.mxu0 0.0
          %2468 = vmatprep.subr.mxu0 0.0
          %2469 = vmatpush1.msra.mxu0 0.0
          %2470 = vmatprep.subr.mxu0 0.0
          %2471 = vmatpush1.msra.mxu0 0.0
          %2472 = vmatprep.subr.mxu0 0.0
          %2473 = vmatpush1.msra.mxu0 0.0
          %2474 = vmatprep.subr.mxu0 0.0
          %2475 = vmatpush1.msra.mxu0 0.0
          %2476 = vmatprep.subr.mxu0 0.0
          %2477 = vmatpush1.msra.mxu0 0.0
          %2478 = vmatprep.subr.mxu0 0.0
          %2479 = vmatpush1.msra.mxu0 0.0
          %2480 = vmatprep.subr.mxu0 0.0
          %2481 = vmatpush1.msra.mxu0 0.0
          %2482 = vmatprep.subr.mxu0 0.0
          %2483 = vmatpush1.msra.mxu0 0.0
          %2484 = vmatprep.subr.mxu0 0.0
          %2485 = vmatpush1.msra.mxu0 0.0
          %2486 = vmatprep.subr.mxu0 0.0
          %2487 = vmatpush1.msra.mxu0 0.0
          %2488 = vmatprep.subr.mxu0 0.0
          %2489 = vmatpush1.msra.mxu0 0.0
          %2490 = vmatprep.subr.mxu0 0.0
          %2491 = vmatpush1.msra.mxu0 0.0
          %2492 = vmatprep.subr.mxu0 0.0
          %2493 = vmatpush1.msra.mxu0 0.0
          %2494 = vmatprep.subr.mxu0 0.0
          %2495 = vmatpush1.msra.mxu0 0.0
          %2496 = vmatprep.subr.mxu0 0.0
          %2497 = vmatpush1.msra.mxu0 0.0
          %2498 = vmatprep.subr.mxu0 0.0
          %2499 = vmatpush1.msra.mxu0 0.0
          %2500 = vmatprep.subr.mxu0 0.0
          %2501 = vmatpush1.msra.mxu0 0.0
          %2502 = vmatprep.subr.mxu0 0.0
          %2503 = vmatpush1.msra.mxu0 0.0
          %2504 = vmatprep.mubr.f32.mxu0 0.0
          %2505 = vmatmul.mubr.f32.gmra.mrb[0].mxu0 %v2434
          %v2506 = vpop.f32.mrb[0].mxu0
          %v2507 = vadd.f32 %v2431, %v2506
          %v2508 = vpop.f32.mrb[0].mxu0
          %2509 = vdwg.mxu0
          %2510 = vst [vmem:[%s1042] sm:$0x1] %v2507
        $region140: #{bert_blend_cnn_forward.1} parent=107 // pred_fallthru
          _
        %s2511 = sand.u32 %s620, 1
        %s2512 = scalar_lea.sflag [#allocation6], %s2511
        %s2513 = sand.u32 %s620, 1
        %s2514 = scalar_lea.vmem [#allocation15], %s2513
        // Predicated region
        $region141: #{bert_blend_cnn_forward.1} parent=107 // pred_check
          %p2515 = pneg %p630
        $region142: #{bert_blend_cnn_forward.1} parent=107 // pred_check_branch
          %2517 = sbr.rel (%p2515) target = $region144
        $region143: #{bert_blend_cnn_forward.1} parent=107 // pred_region
          %s2519 = ssub.s32 16, 16
          %2520 = vsyncadd %s2512, %s2519
          %s2521 = smul.addr %s52, 16
          %s2522 = scalar_lea.hbm %s22, %s2521
          %s2524 = sshll.u32 %s2514, 4
          %s2525 = int_to_ptr.vmem [resolvable:$true] %s2524
          %2527 = dma.vmem_to_hbm [thread:$0]  %s2525, 16, %s2522, %s2512
        $region144: #{bert_blend_cnn_forward.1} parent=107 // pred_fallthru
          _
      $region108: #{bert_blend_cnn_forward.1} parent=5 // pred_fallthru
        _
      %p2528 = scmp.le.s32.totalorder 2, %s43
      // Predicated region
      $region145: #{bert_blend_cnn_forward.1} parent=5 // pred_check
        %p2529 = pneg %p2528
      $region146: #{bert_blend_cnn_forward.1} parent=5 // pred_check_branch
        %2531 = sbr.rel (%p2529) target = $region148
      $region147: #{bert_blend_cnn_forward.1} parent=5 // pred_region
        %s2532 = ssub.s32 %s43, 2
        // Predicated region
        $region149: #{bert_blend_cnn_forward.1} parent=147 // pred_check
          %p2533 = pneg %p636
        $region150: #{bert_blend_cnn_forward.1} parent=147 // pred_check_branch
          %2535 = sbr.rel (%p2533) target = $region152
        $region151: #{bert_blend_cnn_forward.1} parent=147 // pred_region
          %s2536 = sand.u32 %s621, 1
          %s2537 = scalar_lea.sflag [#allocation6], %s2536
          %s2538 = sand.u32 %s621, 1
          %s2539 = scalar_lea.vmem [#allocation15], %s2538
          %2540 = dma.done %s2537, 16
        $region152: #{bert_blend_cnn_forward.1} parent=147 // pred_fallthru
          _
      $region148: #{bert_blend_cnn_forward.1} parent=5 // pred_fallthru
        _
    $region6: #{bert_blend_cnn_forward.1} parent=1 // loop_footer
      %s47 = sadd.s32 1, %s43
    $region7: #{bert_blend_cnn_forward.1} parent=1 // loop_footer_branch
      %42 = sbr.rel target = $region3
    $region8: #{bert_blend_cnn_forward.1} parent=1 // loop_exit
      _
    %2541 = vsyncpa [#allocation5], 1
    %s2542 = scalar_lea.sflag [#allocation5], 1
    %2543 = vsyncpa %s2542, 1
    %2544 = vsyncpa [#allocation8], 1
    %s2545 = scalar_lea.sflag [#allocation8], 1
    %2546 = vsyncpa %s2545, 1
    %2547 = vsyncpa [#allocation11], 1
    %s2548 = scalar_lea.sflag [#allocation11], 1
    %2549 = vsyncpa %s2548, 1
    %2550 = vsyncpa [#allocation14], 1
    %s2551 = scalar_lea.sflag [#allocation14], 1
    %2552 = vsyncpa %s2551, 1
    %2553 = vsyncpa [#allocation6], 1
    %s2554 = scalar_lea.sflag [#allocation6], 1
    %2555 = vsyncpa %s2554, 1

</llo_original>
